<compile_context>
chip_gen: v7x
topology: tpu7x:2x2x1
jax: 0.10.0
libtpu: 0.0.40
codegen_flags: <defaults>
</compile_context>

<pallas_src>
import jax
import jax.numpy as jnp
import numpy as np
from jax import lax
from jax.experimental import pallas as pl
from jax.experimental.pallas import tpu as pltpu


# --------------------------------------------------------------------------
# Kernel builder: one grid step == B images, everything VMEM / register
# resident between layers.
# --------------------------------------------------------------------------
def _make_fused_kernel(conv_dims, n_fc, B):
    n_conv = len(conv_dims)

    def zero_halo(ref, d):
        # Zero only the pad ring; the interior is fully overwritten each step.
        p, Hp, Wp, Cin = d["pad"], d["Hp"], d["Wp"], d["Cin"]
        if p == 0:
            return
        zrow = jnp.zeros((B, p, Wp, Cin), jnp.float32)
        ref[:, 0:p, :, :] = zrow
        ref[:, Hp - p:Hp, :, :] = zrow
        zcol = jnp.zeros((B, Hp, p, Cin), jnp.float32)
        ref[:, :, 0:p, :] = zcol
        ref[:, :, Wp - p:Wp, :] = zcol

    def kernel(*refs):
        idx = 0
        x_ref = refs[idx]; idx += 1
        conv_w, conv_b = [], []
        for _ in range(n_conv):
            conv_w.append(refs[idx]); conv_b.append(refs[idx + 1]); idx += 2
        fc_w, fc_b = [], []
        for _ in range(n_fc):
            fc_w.append(refs[idx]); fc_b.append(refs[idx + 1]); idx += 2
        o_ref = refs[idx]; idx += 1
        pad_r = list(refs[idx:idx + n_conv])

        # ---- stage 0: batched input block into first padded scratch --------
        d0 = conv_dims[0]
        zero_halo(pad_r[0], d0)
        p0 = d0["pad"]
        pad_r[0][:, p0:p0 + d0["H"], p0:p0 + d0["W"], :] = x_ref[...]

        flat = None
        for l, d in enumerate(conv_dims):
            K, Cin, Cout = d["K"], d["Cin"], d["Cout"]
            Ho, Wo, Hq, Wq = d["Ho"], d["Wo"], d["Hq"], d["Wq"]

            # ---- conv as ONE im2col matmul; operand built in registers -----
            patches = []
            for kh in range(K):
                for kw in range(K):
                    patches.append(
                        pad_r[l][:, kh:kh + Ho, kw:kw + Wo, :].reshape(
                            B * Ho * Wo, Cin))
            col = jnp.concatenate(patches, axis=-1)       # (B*Ho*Wo, K*K*Cin)
            y = jnp.dot(col, conv_w[l][...],
                        preferred_element_type=jnp.float32)
            y = jnp.maximum(y + conv_b[l][...], 0.0)      # bias + ReLU epilogue
            cv = y.reshape(B, Ho, Wo, Cout)

            # ---- 2x2 / stride-2 max pool: H direction (major-axis concat) --
            hp = jnp.concatenate(
                [jnp.maximum(cv[:, 2 * i:2 * i + 1], cv[:, 2 * i + 1:2 * i + 2])
                 for i in range(Hq)], axis=1)             # (B, Hq, Wo, Cout)

            if l + 1 < n_conv:
                # W direction: write pooled columns straight into the next
                # layer's padded scratch (Wq stores per batch of B images).
                dn = conv_dims[l + 1]
                pn = dn["pad"]
                zero_halo(pad_r[l + 1], dn)
                for j in range(Wq):
                    pad_r[l + 1][:, pn:pn + Hq, pn + j, :] = jnp.maximum(
                        hp[:, :, 2 * j, :], hp[:, :, 2 * j + 1, :])
            else:
                # Last conv layer: W-pool + flatten fused into one minor-axis
                # concatenate; the (h, w, c) order is absorbed by the fc1
                # weight permutation in the wrapper.
                feats = []
                for i in range(Hq):
                    for j in range(Wq):
                        feats.append(jnp.maximum(hp[:, i, 2 * j, :],
                                                 hp[:, i, 2 * j + 1, :]))
                flat = jnp.concatenate(feats, axis=-1)    # (B, S*Cl)

        # ---- fused fully-connected stack ------------------------------------
        # TODO(synk): dropout is eval-mode identity (matches model.eval()).
        h = flat
        for l in range(n_fc):
            h = jnp.dot(h, fc_w[l][...],
                        preferred_element_type=jnp.float32) + fc_b[l][...]
            if l + 1 < n_fc:
                h = jnp.maximum(h, 0.0)
        o_ref[...] = h.reshape(B, 1, h.shape[1]).astype(o_ref.dtype)

    return kernel


# --------------------------------------------------------------------------
# Wrapper: static geometry, one-time weight re-layout, single pallas_call.
# --------------------------------------------------------------------------
def cifar_cnn_forward(x_nchw, params, *, max_block=8):
    convs = params["convs"]   # list of (w(out,in,k,k), b(out,), pad)
    fcs = params["fcs"]       # list of (w(out,in), b(out,))
    assert len(convs) >= 1 and len(fcs) >= 1

    N, C0, H0, W0 = x_nchw.shape
    x_nhwc = jnp.transpose(x_nchw, (0, 2, 3, 1)).astype(jnp.float32)

    # Static per-layer geometry (conv then 2x2/2 floor-mode pool).
    conv_dims = []
    H, W, Cin = H0, W0, C0
    for (w, b, pad) in convs:
        Cout, Cin_w, KH, KW = w.shape
        assert Cin_w == Cin and KH == KW
        K = KH
        Hp, Wp = H + 2 * pad, W + 2 * pad
        Ho, Wo = Hp - K + 1, Wp - K + 1
        Hq, Wq = Ho // 2, Wo // 2
        conv_dims.append(dict(H=H, W=W, Cin=Cin, Cout=Cout, K=K, pad=pad,
                              Hp=Hp, Wp=Wp, Ho=Ho, Wo=Wo, Hq=Hq, Wq=Wq))
        H, W, Cin = Hq, Wq, Cout
    Hl, Wl, Cl = H, W, Cin
    S = Hl * Wl

    # Batch B images per grid step; keep grid length >= 2 so both v7x
    # TensorCores get work, and pad N up to a multiple of B.
    B = 1 if N < 2 else max(1, min(max_block, N // 2))
    G = (N + B - 1) // B
    N_pad = G * B
    if N_pad != N:
        x_nhwc = jnp.concatenate(
            [x_nhwc, jnp.zeros((N_pad - N, H0, W0, C0), jnp.float32)], axis=0)

    # One-time weight re-layouts (constants, outside the hot path).
    conv_args = []
    for (w, b, _), d in zip(convs, conv_dims):
        wk = jnp.transpose(w, (2, 3, 1, 0)).reshape(
            d["K"] * d["K"] * d["Cin"], d["Cout"]).astype(jnp.float32)
        conv_args += [wk, b.reshape(1, d["Cout"]).astype(jnp.float32)]

    fc_args = []
    n_fc = len(fcs)
    D_last = D_pad = None
    for i, (w, b) in enumerate(fcs):
        Dout, Din = w.shape
        if i == 0:
            assert Din == Cl * S, (Din, Cl, S)
            # torch flattens (c, h, w); the kernel produces (h, w, c) features,
            # so permute fc1's input columns instead of transposing activations.
            wk = jnp.transpose(w.reshape(Dout, Cl, Hl, Wl),
                               (2, 3, 1, 0)).reshape(S * Cl, Dout)
        else:
            wk = w.T
        wk = wk.astype(jnp.float32)
        bk = b.reshape(1, Dout).astype(jnp.float32)
        if i == n_fc - 1:
            D_last = Dout
            D_pad = ((Dout + 127) // 128) * 128   # lane-dense output block
            if D_pad != Dout:
                wk = jnp.zeros((wk.shape[0], D_pad),
                               jnp.float32).at[:, :Dout].set(wk)
                bk = jnp.zeros((1, D_pad), jnp.float32).at[:, :Dout].set(bk)
        fc_args += [wk, bk]

    kernel = _make_fused_kernel(conv_dims, n_fc, B)

    in_specs = [pl.BlockSpec((B, H0, W0, C0), lambda n: (n, 0, 0, 0))]
    for a in conv_args + fc_args:
        in_specs.append(pl.BlockSpec(a.shape, lambda n: (0, 0)))
    out_spec = pl.BlockSpec((B, 1, D_pad), lambda n: (n, 0, 0))

    scratch_shapes = [pltpu.VMEM((B, d["Hp"], d["Wp"], d["Cin"]), jnp.float32)
                      for d in conv_dims]

    out = pl.pallas_call(
        kernel,
        out_shape=jax.ShapeDtypeStruct((N_pad, 1, D_pad), jnp.float32),
        grid=(G,),
        in_specs=in_specs,
        out_specs=out_spec,
        scratch_shapes=scratch_shapes,
        compiler_params=pltpu.CompilerParams(
            dimension_semantics=("parallel",)),
    )(x_nhwc, *conv_args, *fc_args)
    return out.reshape(N_pad, D_pad)[:N, :D_last]


# --------------------------------------------------------------------------
# Pure-JAX reference (for correctness check)
# --------------------------------------------------------------------------
def ref_forward(x_nchw, params):
    x = x_nchw
    for (w, b, pad) in params["convs"]:
        y = lax.conv_general_dilated(
            x, w, window_strides=(1, 1), padding=[(pad, pad), (pad, pad)],
            dimension_numbers=("NCHW", "OIHW", "NCHW"))
        y = jnp.maximum(y + b[None, :, None, None], 0.0)
        y = lax.reduce_window(y, -jnp.inf, lax.max,
                              (1, 1, 2, 2), (1, 1, 2, 2), "VALID")
        x = y
    x = x.reshape(x.shape[0], -1)
    fcs = params["fcs"]
    for i, (w, b) in enumerate(fcs):
        x = x @ w.T + b
        if i < len(fcs) - 1:
            x = jnp.maximum(x, 0.0)
    return x


if __name__ == "__main__":
    # Small synthetic config consistent with the module:
    # conv_channels=[4,8,16], conv_kernel_sizes=[3,3], conv_padding=[1,1],
    # pool 2/2, fc_sizes=[256,32,10], dropout (eval-mode identity).
    N, Cin0, Himg, Wimg = 2, 4, 16, 16
    conv_channels = [4, 8, 16]
    conv_kernel_sizes = [3, 3]
    conv_padding = [1, 1]
    fc_sizes = [16 * 4 * 4, 32, 10]

    key = jax.random.PRNGKey(0)
    keys = iter(jax.random.split(key, 16))

    convs = []
    for i in range(len(conv_channels) - 1):
        cin, cout, k = conv_channels[i], conv_channels[i + 1], conv_kernel_sizes[i]
        w = (jax.random.normal(next(keys), (cout, cin, k, k), jnp.float32)
             / np.sqrt(cin * k * k))
        b = jax.random.normal(next(keys), (cout,), jnp.float32) * 0.01
        convs.append((w, b, conv_padding[i]))

    fcs = []
    for i in range(len(fc_sizes) - 1):
        din, dout = fc_sizes[i], fc_sizes[i + 1]
        w = jax.random.normal(next(keys), (dout, din), jnp.float32) / np.sqrt(din)
        b = jax.random.normal(next(keys), (dout,), jnp.float32) * 0.01
        fcs.append((w, b))

    params = {"convs": convs, "fcs": fcs}
    x = jax.random.normal(next(keys), (N, Cin0, Himg, Wimg), jnp.float32)

    out = jax.block_until_ready(cifar_cnn_forward(x, params))
    ref = jax.block_until_ready(ref_forward(x, params))

    assert out.shape == (N, fc_sizes[-1]), out.shape
    np.testing.assert_allclose(np.asarray(out), np.asarray(ref),
                               rtol=1e-4, atol=1e-3)
    print("KERNEL_OK")
</pallas_src>

<mosaic_0001>
module attributes {stable_mosaic.version = 11 : i64} {
  func.func @kernel(%arg0: i32, %arg1: memref<1x16x16x4xf32, #tpu.memory_space<vmem>>, %arg2: memref<36x8xf32, #tpu.memory_space<vmem>>, %arg3: memref<1x8xf32, #tpu.memory_space<vmem>>, %arg4: memref<72x16xf32, #tpu.memory_space<vmem>>, %arg5: memref<1x16xf32, #tpu.memory_space<vmem>>, %arg6: memref<256x32xf32, #tpu.memory_space<vmem>>, %arg7: memref<1x32xf32, #tpu.memory_space<vmem>>, %arg8: memref<32x128xf32, #tpu.memory_space<vmem>>, %arg9: memref<1x128xf32, #tpu.memory_space<vmem>>, %arg10: memref<1x1x128xf32, #tpu.memory_space<vmem>>, %arg11: memref<1x18x18x4xf32, #tpu.memory_space<vmem>>, %arg12: memref<1x10x10x8xf32, #tpu.memory_space<vmem>>) attributes {dimension_semantics = [#tpu.dimension_semantics<parallel>], iteration_bounds = array<i64: 2>, scalar_prefetch = 0 : i64, scratch_operands = 2 : i64, tpu.core_type = #tpu.core_type<tc>, window_params = [{transform_indices = @transform_0, window_bounds = array<i64: 1, 16, 16, 4>}, {pipeline_mode = #tpu.pipeline_mode<synchronous>, transform_indices = @transform_1, window_bounds = array<i64: 36, 8>}, {pipeline_mode = #tpu.pipeline_mode<synchronous>, transform_indices = @transform_2, window_bounds = array<i64: 1, 8>}, {pipeline_mode = #tpu.pipeline_mode<synchronous>, transform_indices = @transform_3, window_bounds = array<i64: 72, 16>}, {pipeline_mode = #tpu.pipeline_mode<synchronous>, transform_indices = @transform_4, window_bounds = array<i64: 1, 16>}, {pipeline_mode = #tpu.pipeline_mode<synchronous>, transform_indices = @transform_5, window_bounds = array<i64: 256, 32>}, {pipeline_mode = #tpu.pipeline_mode<synchronous>, transform_indices = @transform_6, window_bounds = array<i64: 1, 32>}, {pipeline_mode = #tpu.pipeline_mode<synchronous>, transform_indices = @transform_7, window_bounds = array<i64: 32, 128>}, {pipeline_mode = #tpu.pipeline_mode<synchronous>, transform_indices = @transform_8, window_bounds = array<i64: 1, 128>}, {transform_indices = @transform_9, window_bounds = array<i64: 1, 1, 128>}]} {
    %cst = arith.constant 0.000000e+00 : f32
    %0 = vector.broadcast %cst : f32 to vector<1x1x18x4xf32>
    %c0 = arith.constant 0 : index
    %c0_0 = arith.constant 0 : index
    %c0_1 = arith.constant 0 : index
    %c0_2 = arith.constant 0 : index
    %1 = vector.load %arg11[%c0, %c0_0, %c0_1, %c0_2] : memref<1x18x18x4xf32, #tpu.memory_space<vmem>>, vector<1x1x18x4xf32>
    tpu.vector_store %arg11[%c0, %c0_0, %c0_1, %c0_2], %0 {strides = array<i32>} : memref<1x18x18x4xf32, #tpu.memory_space<vmem>>, vector<1x1x18x4xf32>,
    %c0_3 = arith.constant 0 : index
    %c17 = arith.constant 17 : index
    %c0_4 = arith.constant 0 : index
    %c0_5 = arith.constant 0 : index
    %2 = vector.load %arg11[%c0_3, %c17, %c0_4, %c0_5] : memref<1x18x18x4xf32, #tpu.memory_space<vmem>>, vector<1x1x18x4xf32>
    tpu.vector_store %arg11[%c0_3, %c17, %c0_4, %c0_5], %0 {strides = array<i32>} : memref<1x18x18x4xf32, #tpu.memory_space<vmem>>, vector<1x1x18x4xf32>,
    %cst_6 = arith.constant 0.000000e+00 : f32
    %3 = vector.broadcast %cst_6 : f32 to vector<1x18x1x4xf32>
    %c0_7 = arith.constant 0 : index
    %c0_8 = arith.constant 0 : index
    %c0_9 = arith.constant 0 : index
    %c0_10 = arith.constant 0 : index
    %4 = vector.load %arg11[%c0_7, %c0_8, %c0_9, %c0_10] : memref<1x18x18x4xf32, #tpu.memory_space<vmem>>, vector<1x18x1x4xf32>
    tpu.vector_store %arg11[%c0_7, %c0_8, %c0_9, %c0_10], %3 {strides = array<i32>} : memref<1x18x18x4xf32, #tpu.memory_space<vmem>>, vector<1x18x1x4xf32>,
    %c0_11 = arith.constant 0 : index
    %c0_12 = arith.constant 0 : index
    %c17_13 = arith.constant 17 : index
    %c0_14 = arith.constant 0 : index
    %5 = vector.load %arg11[%c0_11, %c0_12, %c17_13, %c0_14] : memref<1x18x18x4xf32, #tpu.memory_space<vmem>>, vector<1x18x1x4xf32>
    tpu.vector_store %arg11[%c0_11, %c0_12, %c17_13, %c0_14], %3 {strides = array<i32>} : memref<1x18x18x4xf32, #tpu.memory_space<vmem>>, vector<1x18x1x4xf32>,
    %c0_15 = arith.constant 0 : index
    %c0_16 = arith.constant 0 : index
    %c0_17 = arith.constant 0 : index
    %c0_18 = arith.constant 0 : index
    %6 = vector.load %arg1[%c0_15, %c0_16, %c0_17, %c0_18] : memref<1x16x16x4xf32, #tpu.memory_space<vmem>>, vector<1x16x16x4xf32>
    %c0_19 = arith.constant 0 : index
    %c1 = arith.constant 1 : index
    %c1_20 = arith.constant 1 : index
    %c0_21 = arith.constant 0 : index
    %7 = vector.load %arg11[%c0_19, %c1, %c1_20, %c0_21] : memref<1x18x18x4xf32, #tpu.memory_space<vmem>>, vector<1x16x16x4xf32>
    tpu.vector_store %arg11[%c0_19, %c1, %c1_20, %c0_21], %6 {strides = array<i32>} : memref<1x18x18x4xf32, #tpu.memory_space<vmem>>, vector<1x16x16x4xf32>,
    %c0_22 = arith.constant 0 : index
    %c0_23 = arith.constant 0 : index
    %c0_24 = arith.constant 0 : index
    %c0_25 = arith.constant 0 : index
    %8 = vector.load %arg11[%c0_22, %c0_23, %c0_24, %c0_25] : memref<1x18x18x4xf32, #tpu.memory_space<vmem>>, vector<1x16x16x4xf32>
    %9 = vector.shape_cast %8 : vector<1x16x16x4xf32> to vector<256x4xf32>
    %c0_26 = arith.constant 0 : index
    %c0_27 = arith.constant 0 : index
    %c1_28 = arith.constant 1 : index
    %c0_29 = arith.constant 0 : index
    %10 = vector.load %arg11[%c0_26, %c0_27, %c1_28, %c0_29] : memref<1x18x18x4xf32, #tpu.memory_space<vmem>>, vector<1x16x16x4xf32>
    %11 = vector.shape_cast %10 : vector<1x16x16x4xf32> to vector<256x4xf32>
    %c0_30 = arith.constant 0 : index
    %c0_31 = arith.constant 0 : index
    %c2 = arith.constant 2 : index
    %c0_32 = arith.constant 0 : index
    %12 = vector.load %arg11[%c0_30, %c0_31, %c2, %c0_32] : memref<1x18x18x4xf32, #tpu.memory_space<vmem>>, vector<1x16x16x4xf32>
    %13 = vector.shape_cast %12 : vector<1x16x16x4xf32> to vector<256x4xf32>
    %c0_33 = arith.constant 0 : index
    %c1_34 = arith.constant 1 : index
    %c0_35 = arith.constant 0 : index
    %c0_36 = arith.constant 0 : index
    %14 = vector.load %arg11[%c0_33, %c1_34, %c0_35, %c0_36] : memref<1x18x18x4xf32, #tpu.memory_space<vmem>>, vector<1x16x16x4xf32>
    %15 = vector.shape_cast %14 : vector<1x16x16x4xf32> to vector<256x4xf32>
    %c0_37 = arith.constant 0 : index
    %c1_38 = arith.constant 1 : index
    %c1_39 = arith.constant 1 : index
    %c0_40 = arith.constant 0 : index
    %16 = vector.load %arg11[%c0_37, %c1_38, %c1_39, %c0_40] : memref<1x18x18x4xf32, #tpu.memory_space<vmem>>, vector<1x16x16x4xf32>
    %17 = vector.shape_cast %16 : vector<1x16x16x4xf32> to vector<256x4xf32>
    %c0_41 = arith.constant 0 : index
    %c1_42 = arith.constant 1 : index
    %c2_43 = arith.constant 2 : index
    %c0_44 = arith.constant 0 : index
    %18 = vector.load %arg11[%c0_41, %c1_42, %c2_43, %c0_44] : memref<1x18x18x4xf32, #tpu.memory_space<vmem>>, vector<1x16x16x4xf32>
    %19 = vector.shape_cast %18 : vector<1x16x16x4xf32> to vector<256x4xf32>
    %c0_45 = arith.constant 0 : index
    %c2_46 = arith.constant 2 : index
    %c0_47 = arith.constant 0 : index
    %c0_48 = arith.constant 0 : index
    %20 = vector.load %arg11[%c0_45, %c2_46, %c0_47, %c0_48] : memref<1x18x18x4xf32, #tpu.memory_space<vmem>>, vector<1x16x16x4xf32>
    %21 = vector.shape_cast %20 : vector<1x16x16x4xf32> to vector<256x4xf32>
    %c0_49 = arith.constant 0 : index
    %c2_50 = arith.constant 2 : index
    %c1_51 = arith.constant 1 : index
    %c0_52 = arith.constant 0 : index
    %22 = vector.load %arg11[%c0_49, %c2_50, %c1_51, %c0_52] : memref<1x18x18x4xf32, #tpu.memory_space<vmem>>, vector<1x16x16x4xf32>
    %23 = vector.shape_cast %22 : vector<1x16x16x4xf32> to vector<256x4xf32>
    %c0_53 = arith.constant 0 : index
    %c2_54 = arith.constant 2 : index
    %c2_55 = arith.constant 2 : index
    %c0_56 = arith.constant 0 : index
    %24 = vector.load %arg11[%c0_53, %c2_54, %c2_55, %c0_56] : memref<1x18x18x4xf32, #tpu.memory_space<vmem>>, vector<1x16x16x4xf32>
    %25 = vector.shape_cast %24 : vector<1x16x16x4xf32> to vector<256x4xf32>
    %26 = tpu.concatenate %9, %11, %13, %15, %17, %19, %21, %23, %25 in 1 : vector<256x4xf32>, vector<256x4xf32>, vector<256x4xf32>, vector<256x4xf32>, vector<256x4xf32>, vector<256x4xf32>, vector<256x4xf32>, vector<256x4xf32>, vector<256x4xf32> -> vector<256x36xf32>
    %c0_57 = arith.constant 0 : index
    %c0_58 = arith.constant 0 : index
    %27 = vector.load %arg2[%c0_57, %c0_58] : memref<36x8xf32, #tpu.memory_space<vmem>>, vector<36x8xf32>
    %cst_59 = arith.constant dense<0.000000e+00> : vector<256x8xf32>
    %28 = tpu.matmul %26, %27, %cst_59 {dimension_numbers = #tpu.dot_dimension_numbers<[1], [0], [0], [1], [0, 0, 1, 1], [], []>} : vector<256x36xf32>, vector<36x8xf32>, vector<256x8xf32> -> vector<256x8xf32>
    %c0_60 = arith.constant 0 : index
    %c0_61 = arith.constant 0 : index
    %29 = vector.load %arg3[%c0_60, %c0_61] : memref<1x8xf32, #tpu.memory_space<vmem>>, vector<1x8xf32>
    %30 = vector.broadcast %29 : vector<1x8xf32> to vector<256x8xf32>
    %31 = arith.addf %28, %30 : vector<256x8xf32>
    %cst_62 = arith.constant 0.000000e+00 : f32
    %32 = vector.broadcast %cst_62 : f32 to vector<256x8xf32>
    %33 = arith.maximumf %31, %32 : vector<256x8xf32>
    %34 = vector.shape_cast %33 : vector<256x8xf32> to vector<1x16x16x8xf32>
    %35 = vector.extract_strided_slice %34 {offsets = [0, 0, 0, 0], sizes = [1, 1, 16, 8], strides = [1, 1, 1, 1]} : vector<1x16x16x8xf32> to vector<1x1x16x8xf32>
    %36 = vector.extract_strided_slice %34 {offsets = [0, 1, 0, 0], sizes = [1, 1, 16, 8], strides = [1, 1, 1, 1]} : vector<1x16x16x8xf32> to vector<1x1x16x8xf32>
    %37 = arith.maximumf %35, %36 : vector<1x1x16x8xf32>
    %38 = vector.extract_strided_slice %34 {offsets = [0, 2, 0, 0], sizes = [1, 1, 16, 8], strides = [1, 1, 1, 1]} : vector<1x16x16x8xf32> to vector<1x1x16x8xf32>
    %39 = vector.extract_strided_slice %34 {offsets = [0, 3, 0, 0], sizes = [1, 1, 16, 8], strides = [1, 1, 1, 1]} : vector<1x16x16x8xf32> to vector<1x1x16x8xf32>
    %40 = arith.maximumf %38, %39 : vector<1x1x16x8xf32>
    %41 = vector.extract_strided_slice %34 {offsets = [0, 4, 0, 0], sizes = [1, 1, 16, 8], strides = [1, 1, 1, 1]} : vector<1x16x16x8xf32> to vector<1x1x16x8xf32>
    %42 = vector.extract_strided_slice %34 {offsets = [0, 5, 0, 0], sizes = [1, 1, 16, 8], strides = [1, 1, 1, 1]} : vector<1x16x16x8xf32> to vector<1x1x16x8xf32>
    %43 = arith.maximumf %41, %42 : vector<1x1x16x8xf32>
    %44 = vector.extract_strided_slice %34 {offsets = [0, 6, 0, 0], sizes = [1, 1, 16, 8], strides = [1, 1, 1, 1]} : vector<1x16x16x8xf32> to vector<1x1x16x8xf32>
    %45 = vector.extract_strided_slice %34 {offsets = [0, 7, 0, 0], sizes = [1, 1, 16, 8], strides = [1, 1, 1, 1]} : vector<1x16x16x8xf32> to vector<1x1x16x8xf32>
    %46 = arith.maximumf %44, %45 : vector<1x1x16x8xf32>
    %47 = vector.extract_strided_slice %34 {offsets = [0, 8, 0, 0], sizes = [1, 1, 16, 8], strides = [1, 1, 1, 1]} : vector<1x16x16x8xf32> to vector<1x1x16x8xf32>
    %48 = vector.extract_strided_slice %34 {offsets = [0, 9, 0, 0], sizes = [1, 1, 16, 8], strides = [1, 1, 1, 1]} : vector<1x16x16x8xf32> to vector<1x1x16x8xf32>
    %49 = arith.maximumf %47, %48 : vector<1x1x16x8xf32>
    %50 = vector.extract_strided_slice %34 {offsets = [0, 10, 0, 0], sizes = [1, 1, 16, 8], strides = [1, 1, 1, 1]} : vector<1x16x16x8xf32> to vector<1x1x16x8xf32>
    %51 = vector.extract_strided_slice %34 {offsets = [0, 11, 0, 0], sizes = [1, 1, 16, 8], strides = [1, 1, 1, 1]} : vector<1x16x16x8xf32> to vector<1x1x16x8xf32>
    %52 = arith.maximumf %50, %51 : vector<1x1x16x8xf32>
    %53 = vector.extract_strided_slice %34 {offsets = [0, 12, 0, 0], sizes = [1, 1, 16, 8], strides = [1, 1, 1, 1]} : vector<1x16x16x8xf32> to vector<1x1x16x8xf32>
    %54 = vector.extract_strided_slice %34 {offsets = [0, 13, 0, 0], sizes = [1, 1, 16, 8], strides = [1, 1, 1, 1]} : vector<1x16x16x8xf32> to vector<1x1x16x8xf32>
    %55 = arith.maximumf %53, %54 : vector<1x1x16x8xf32>
    %56 = vector.extract_strided_slice %34 {offsets = [0, 14, 0, 0], sizes = [1, 1, 16, 8], strides = [1, 1, 1, 1]} : vector<1x16x16x8xf32> to vector<1x1x16x8xf32>
    %57 = vector.extract_strided_slice %34 {offsets = [0, 15, 0, 0], sizes = [1, 1, 16, 8], strides = [1, 1, 1, 1]} : vector<1x16x16x8xf32> to vector<1x1x16x8xf32>
    %58 = arith.maximumf %56, %57 : vector<1x1x16x8xf32>
    %59 = tpu.concatenate %37, %40, %43, %46, %49, %52, %55, %58 in 1 : vector<1x1x16x8xf32>, vector<1x1x16x8xf32>, vector<1x1x16x8xf32>, vector<1x1x16x8xf32>, vector<1x1x16x8xf32>, vector<1x1x16x8xf32>, vector<1x1x16x8xf32>, vector<1x1x16x8xf32> -> vector<1x8x16x8xf32>
    %cst_63 = arith.constant 0.000000e+00 : f32
    %60 = vector.broadcast %cst_63 : f32 to vector<1x1x10x8xf32>
    %c0_64 = arith.constant 0 : index
    %c0_65 = arith.constant 0 : index
    %c0_66 = arith.constant 0 : index
    %c0_67 = arith.constant 0 : index
    %61 = vector.load %arg12[%c0_64, %c0_65, %c0_66, %c0_67] : memref<1x10x10x8xf32, #tpu.memory_space<vmem>>, vector<1x1x10x8xf32>
    tpu.vector_store %arg12[%c0_64, %c0_65, %c0_66, %c0_67], %60 {strides = array<i32>} : memref<1x10x10x8xf32, #tpu.memory_space<vmem>>, vector<1x1x10x8xf32>,
    %c0_68 = arith.constant 0 : index
    %c9 = arith.constant 9 : index
    %c0_69 = arith.constant 0 : index
    %c0_70 = arith.constant 0 : index
    %62 = vector.load %arg12[%c0_68, %c9, %c0_69, %c0_70] : memref<1x10x10x8xf32, #tpu.memory_space<vmem>>, vector<1x1x10x8xf32>
    tpu.vector_store %arg12[%c0_68, %c9, %c0_69, %c0_70], %60 {strides = array<i32>} : memref<1x10x10x8xf32, #tpu.memory_space<vmem>>, vector<1x1x10x8xf32>,
    %cst_71 = arith.constant 0.000000e+00 : f32
    %63 = vector.broadcast %cst_71 : f32 to vector<1x10x1x8xf32>
    %c0_72 = arith.constant 0 : index
    %c0_73 = arith.constant 0 : index
    %c0_74 = arith.constant 0 : index
    %c0_75 = arith.constant 0 : index
    %64 = vector.load %arg12[%c0_72, %c0_73, %c0_74, %c0_75] : memref<1x10x10x8xf32, #tpu.memory_space<vmem>>, vector<1x10x1x8xf32>
    tpu.vector_store %arg12[%c0_72, %c0_73, %c0_74, %c0_75], %63 {strides = array<i32>} : memref<1x10x10x8xf32, #tpu.memory_space<vmem>>, vector<1x10x1x8xf32>,
    %c0_76 = arith.constant 0 : index
    %c0_77 = arith.constant 0 : index
    %c9_78 = arith.constant 9 : index
    %c0_79 = arith.constant 0 : index
    %65 = vector.load %arg12[%c0_76, %c0_77, %c9_78, %c0_79] : memref<1x10x10x8xf32, #tpu.memory_space<vmem>>, vector<1x10x1x8xf32>
    tpu.vector_store %arg12[%c0_76, %c0_77, %c9_78, %c0_79], %63 {strides = array<i32>} : memref<1x10x10x8xf32, #tpu.memory_space<vmem>>, vector<1x10x1x8xf32>,
    %66 = vector.extract_strided_slice %59 {offsets = [0, 0, 0, 0], sizes = [1, 8, 1, 8], strides = [1, 1, 1, 1]} : vector<1x8x16x8xf32> to vector<1x8x1x8xf32>
    %67 = vector.shape_cast %66 : vector<1x8x1x8xf32> to vector<1x8x8xf32>
    %68 = vector.extract_strided_slice %59 {offsets = [0, 0, 1, 0], sizes = [1, 8, 1, 8], strides = [1, 1, 1, 1]} : vector<1x8x16x8xf32> to vector<1x8x1x8xf32>
    %69 = vector.shape_cast %68 : vector<1x8x1x8xf32> to vector<1x8x8xf32>
    %70 = arith.maximumf %67, %69 : vector<1x8x8xf32>
    %c0_80 = arith.constant 0 : index
    %c1_81 = arith.constant 1 : index
    %c1_82 = arith.constant 1 : index
    %c0_83 = arith.constant 0 : index
    %71 = vector.load %arg12[%c0_80, %c1_81, %c1_82, %c0_83] : memref<1x10x10x8xf32, #tpu.memory_space<vmem>>, vector<1x8x1x8xf32>
    %72 = vector.shape_cast %71 : vector<1x8x1x8xf32> to vector<1x8x8xf32>
    %73 = vector.shape_cast %70 : vector<1x8x8xf32> to vector<1x8x1x8xf32>
    tpu.vector_store %arg12[%c0_80, %c1_81, %c1_82, %c0_83], %73 {strides = array<i32>} : memref<1x10x10x8xf32, #tpu.memory_space<vmem>>, vector<1x8x1x8xf32>,
    %74 = vector.extract_strided_slice %59 {offsets = [0, 0, 2, 0], sizes = [1, 8, 1, 8], strides = [1, 1, 1, 1]} : vector<1x8x16x8xf32> to vector<1x8x1x8xf32>
    %75 = vector.shape_cast %74 : vector<1x8x1x8xf32> to vector<1x8x8xf32>
    %76 = vector.extract_strided_slice %59 {offsets = [0, 0, 3, 0], sizes = [1, 8, 1, 8], strides = [1, 1, 1, 1]} : vector<1x8x16x8xf32> to vector<1x8x1x8xf32>
    %77 = vector.shape_cast %76 : vector<1x8x1x8xf32> to vector<1x8x8xf32>
    %78 = arith.maximumf %75, %77 : vector<1x8x8xf32>
    %c0_84 = arith.constant 0 : index
    %c1_85 = arith.constant 1 : index
    %c2_86 = arith.constant 2 : index
    %c0_87 = arith.constant 0 : index
    %79 = vector.load %arg12[%c0_84, %c1_85, %c2_86, %c0_87] : memref<1x10x10x8xf32, #tpu.memory_space<vmem>>, vector<1x8x1x8xf32>
    %80 = vector.shape_cast %79 : vector<1x8x1x8xf32> to vector<1x8x8xf32>
    %81 = vector.shape_cast %78 : vector<1x8x8xf32> to vector<1x8x1x8xf32>
    tpu.vector_store %arg12[%c0_84, %c1_85, %c2_86, %c0_87], %81 {strides = array<i32>} : memref<1x10x10x8xf32, #tpu.memory_space<vmem>>, vector<1x8x1x8xf32>,
    %82 = vector.extract_strided_slice %59 {offsets = [0, 0, 4, 0], sizes = [1, 8, 1, 8], strides = [1, 1, 1, 1]} : vector<1x8x16x8xf32> to vector<1x8x1x8xf32>
    %83 = vector.shape_cast %82 : vector<1x8x1x8xf32> to vector<1x8x8xf32>
    %84 = vector.extract_strided_slice %59 {offsets = [0, 0, 5, 0], sizes = [1, 8, 1, 8], strides = [1, 1, 1, 1]} : vector<1x8x16x8xf32> to vector<1x8x1x8xf32>
    %85 = vector.shape_cast %84 : vector<1x8x1x8xf32> to vector<1x8x8xf32>
    %86 = arith.maximumf %83, %85 : vector<1x8x8xf32>
    %c0_88 = arith.constant 0 : index
    %c1_89 = arith.constant 1 : index
    %c3 = arith.constant 3 : index
    %c0_90 = arith.constant 0 : index
    %87 = vector.load %arg12[%c0_88, %c1_89, %c3, %c0_90] : memref<1x10x10x8xf32, #tpu.memory_space<vmem>>, vector<1x8x1x8xf32>
    %88 = vector.shape_cast %87 : vector<1x8x1x8xf32> to vector<1x8x8xf32>
    %89 = vector.shape_cast %86 : vector<1x8x8xf32> to vector<1x8x1x8xf32>
    tpu.vector_store %arg12[%c0_88, %c1_89, %c3, %c0_90], %89 {strides = array<i32>} : memref<1x10x10x8xf32, #tpu.memory_space<vmem>>, vector<1x8x1x8xf32>,
    %90 = vector.extract_strided_slice %59 {offsets = [0, 0, 6, 0], sizes = [1, 8, 1, 8], strides = [1, 1, 1, 1]} : vector<1x8x16x8xf32> to vector<1x8x1x8xf32>
    %91 = vector.shape_cast %90 : vector<1x8x1x8xf32> to vector<1x8x8xf32>
    %92 = vector.extract_strided_slice %59 {offsets = [0, 0, 7, 0], sizes = [1, 8, 1, 8], strides = [1, 1, 1, 1]} : vector<1x8x16x8xf32> to vector<1x8x1x8xf32>
    %93 = vector.shape_cast %92 : vector<1x8x1x8xf32> to vector<1x8x8xf32>
    %94 = arith.maximumf %91, %93 : vector<1x8x8xf32>
    %c0_91 = arith.constant 0 : index
    %c1_92 = arith.constant 1 : index
    %c4 = arith.constant 4 : index
    %c0_93 = arith.constant 0 : index
    %95 = vector.load %arg12[%c0_91, %c1_92, %c4, %c0_93] : memref<1x10x10x8xf32, #tpu.memory_space<vmem>>, vector<1x8x1x8xf32>
    %96 = vector.shape_cast %95 : vector<1x8x1x8xf32> to vector<1x8x8xf32>
    %97 = vector.shape_cast %94 : vector<1x8x8xf32> to vector<1x8x1x8xf32>
    tpu.vector_store %arg12[%c0_91, %c1_92, %c4, %c0_93], %97 {strides = array<i32>} : memref<1x10x10x8xf32, #tpu.memory_space<vmem>>, vector<1x8x1x8xf32>,
    %98 = vector.extract_strided_slice %59 {offsets = [0, 0, 8, 0], sizes = [1, 8, 1, 8], strides = [1, 1, 1, 1]} : vector<1x8x16x8xf32> to vector<1x8x1x8xf32>
    %99 = vector.shape_cast %98 : vector<1x8x1x8xf32> to vector<1x8x8xf32>
    %100 = vector.extract_strided_slice %59 {offsets = [0, 0, 9, 0], sizes = [1, 8, 1, 8], strides = [1, 1, 1, 1]} : vector<1x8x16x8xf32> to vector<1x8x1x8xf32>
    %101 = vector.shape_cast %100 : vector<1x8x1x8xf32> to vector<1x8x8xf32>
    %102 = arith.maximumf %99, %101 : vector<1x8x8xf32>
    %c0_94 = arith.constant 0 : index
    %c1_95 = arith.constant 1 : index
    %c5 = arith.constant 5 : index
    %c0_96 = arith.constant 0 : index
    %103 = vector.load %arg12[%c0_94, %c1_95, %c5, %c0_96] : memref<1x10x10x8xf32, #tpu.memory_space<vmem>>, vector<1x8x1x8xf32>
    %104 = vector.shape_cast %103 : vector<1x8x1x8xf32> to vector<1x8x8xf32>
    %105 = vector.shape_cast %102 : vector<1x8x8xf32> to vector<1x8x1x8xf32>
    tpu.vector_store %arg12[%c0_94, %c1_95, %c5, %c0_96], %105 {strides = array<i32>} : memref<1x10x10x8xf32, #tpu.memory_space<vmem>>, vector<1x8x1x8xf32>,
    %106 = vector.extract_strided_slice %59 {offsets = [0, 0, 10, 0], sizes = [1, 8, 1, 8], strides = [1, 1, 1, 1]} : vector<1x8x16x8xf32> to vector<1x8x1x8xf32>
    %107 = vector.shape_cast %106 : vector<1x8x1x8xf32> to vector<1x8x8xf32>
    %108 = vector.extract_strided_slice %59 {offsets = [0, 0, 11, 0], sizes = [1, 8, 1, 8], strides = [1, 1, 1, 1]} : vector<1x8x16x8xf32> to vector<1x8x1x8xf32>
    %109 = vector.shape_cast %108 : vector<1x8x1x8xf32> to vector<1x8x8xf32>
    %110 = arith.maximumf %107, %109 : vector<1x8x8xf32>
    %c0_97 = arith.constant 0 : index
    %c1_98 = arith.constant 1 : index
    %c6 = arith.constant 6 : index
    %c0_99 = arith.constant 0 : index
    %111 = vector.load %arg12[%c0_97, %c1_98, %c6, %c0_99] : memref<1x10x10x8xf32, #tpu.memory_space<vmem>>, vector<1x8x1x8xf32>
    %112 = vector.shape_cast %111 : vector<1x8x1x8xf32> to vector<1x8x8xf32>
    %113 = vector.shape_cast %110 : vector<1x8x8xf32> to vector<1x8x1x8xf32>
    tpu.vector_store %arg12[%c0_97, %c1_98, %c6, %c0_99], %113 {strides = array<i32>} : memref<1x10x10x8xf32, #tpu.memory_space<vmem>>, vector<1x8x1x8xf32>,
    %114 = vector.extract_strided_slice %59 {offsets = [0, 0, 12, 0], sizes = [1, 8, 1, 8], strides = [1, 1, 1, 1]} : vector<1x8x16x8xf32> to vector<1x8x1x8xf32>
    %115 = vector.shape_cast %114 : vector<1x8x1x8xf32> to vector<1x8x8xf32>
    %116 = vector.extract_strided_slice %59 {offsets = [0, 0, 13, 0], sizes = [1, 8, 1, 8], strides = [1, 1, 1, 1]} : vector<1x8x16x8xf32> to vector<1x8x1x8xf32>
    %117 = vector.shape_cast %116 : vector<1x8x1x8xf32> to vector<1x8x8xf32>
    %118 = arith.maximumf %115, %117 : vector<1x8x8xf32>
    %c0_100 = arith.constant 0 : index
    %c1_101 = arith.constant 1 : index
    %c7 = arith.constant 7 : index
    %c0_102 = arith.constant 0 : index
    %119 = vector.load %arg12[%c0_100, %c1_101, %c7, %c0_102] : memref<1x10x10x8xf32, #tpu.memory_space<vmem>>, vector<1x8x1x8xf32>
    %120 = vector.shape_cast %119 : vector<1x8x1x8xf32> to vector<1x8x8xf32>
    %121 = vector.shape_cast %118 : vector<1x8x8xf32> to vector<1x8x1x8xf32>
    tpu.vector_store %arg12[%c0_100, %c1_101, %c7, %c0_102], %121 {strides = array<i32>} : memref<1x10x10x8xf32, #tpu.memory_space<vmem>>, vector<1x8x1x8xf32>,
    %122 = vector.extract_strided_slice %59 {offsets = [0, 0, 14, 0], sizes = [1, 8, 1, 8], strides = [1, 1, 1, 1]} : vector<1x8x16x8xf32> to vector<1x8x1x8xf32>
    %123 = vector.shape_cast %122 : vector<1x8x1x8xf32> to vector<1x8x8xf32>
    %124 = vector.extract_strided_slice %59 {offsets = [0, 0, 15, 0], sizes = [1, 8, 1, 8], strides = [1, 1, 1, 1]} : vector<1x8x16x8xf32> to vector<1x8x1x8xf32>
    %125 = vector.shape_cast %124 : vector<1x8x1x8xf32> to vector<1x8x8xf32>
    %126 = arith.maximumf %123, %125 : vector<1x8x8xf32>
    %c0_103 = arith.constant 0 : index
    %c1_104 = arith.constant 1 : index
    %c8 = arith.constant 8 : index
    %c0_105 = arith.constant 0 : index
    %127 = vector.load %arg12[%c0_103, %c1_104, %c8, %c0_105] : memref<1x10x10x8xf32, #tpu.memory_space<vmem>>, vector<1x8x1x8xf32>
    %128 = vector.shape_cast %127 : vector<1x8x1x8xf32> to vector<1x8x8xf32>
    %129 = vector.shape_cast %126 : vector<1x8x8xf32> to vector<1x8x1x8xf32>
    tpu.vector_store %arg12[%c0_103, %c1_104, %c8, %c0_105], %129 {strides = array<i32>} : memref<1x10x10x8xf32, #tpu.memory_space<vmem>>, vector<1x8x1x8xf32>,
    %c0_106 = arith.constant 0 : index
    %c0_107 = arith.constant 0 : index
    %c0_108 = arith.constant 0 : index
    %c0_109 = arith.constant 0 : index
    %130 = vector.load %arg12[%c0_106, %c0_107, %c0_108, %c0_109] : memref<1x10x10x8xf32, #tpu.memory_space<vmem>>, vector<1x8x8x8xf32>
    %131 = vector.shape_cast %130 : vector<1x8x8x8xf32> to vector<64x8xf32>
    %c0_110 = arith.constant 0 : index
    %c0_111 = arith.constant 0 : index
    %c1_112 = arith.constant 1 : index
    %c0_113 = arith.constant 0 : index
    %132 = vector.load %arg12[%c0_110, %c0_111, %c1_112, %c0_113] : memref<1x10x10x8xf32, #tpu.memory_space<vmem>>, vector<1x8x8x8xf32>
    %133 = vector.shape_cast %132 : vector<1x8x8x8xf32> to vector<64x8xf32>
    %c0_114 = arith.constant 0 : index
    %c0_115 = arith.constant 0 : index
    %c2_116 = arith.constant 2 : index
    %c0_117 = arith.constant 0 : index
    %134 = vector.load %arg12[%c0_114, %c0_115, %c2_116, %c0_117] : memref<1x10x10x8xf32, #tpu.memory_space<vmem>>, vector<1x8x8x8xf32>
    %135 = vector.shape_cast %134 : vector<1x8x8x8xf32> to vector<64x8xf32>
    %c0_118 = arith.constant 0 : index
    %c1_119 = arith.constant 1 : index
    %c0_120 = arith.constant 0 : index
    %c0_121 = arith.constant 0 : index
    %136 = vector.load %arg12[%c0_118, %c1_119, %c0_120, %c0_121] : memref<1x10x10x8xf32, #tpu.memory_space<vmem>>, vector<1x8x8x8xf32>
    %137 = vector.shape_cast %136 : vector<1x8x8x8xf32> to vector<64x8xf32>
    %c0_122 = arith.constant 0 : index
    %c1_123 = arith.constant 1 : index
    %c1_124 = arith.constant 1 : index
    %c0_125 = arith.constant 0 : index
    %138 = vector.load %arg12[%c0_122, %c1_123, %c1_124, %c0_125] : memref<1x10x10x8xf32, #tpu.memory_space<vmem>>, vector<1x8x8x8xf32>
    %139 = vector.shape_cast %138 : vector<1x8x8x8xf32> to vector<64x8xf32>
    %c0_126 = arith.constant 0 : index
    %c1_127 = arith.constant 1 : index
    %c2_128 = arith.constant 2 : index
    %c0_129 = arith.constant 0 : index
    %140 = vector.load %arg12[%c0_126, %c1_127, %c2_128, %c0_129] : memref<1x10x10x8xf32, #tpu.memory_space<vmem>>, vector<1x8x8x8xf32>
    %141 = vector.shape_cast %140 : vector<1x8x8x8xf32> to vector<64x8xf32>
    %c0_130 = arith.constant 0 : index
    %c2_131 = arith.constant 2 : index
    %c0_132 = arith.constant 0 : index
    %c0_133 = arith.constant 0 : index
    %142 = vector.load %arg12[%c0_130, %c2_131, %c0_132, %c0_133] : memref<1x10x10x8xf32, #tpu.memory_space<vmem>>, vector<1x8x8x8xf32>
    %143 = vector.shape_cast %142 : vector<1x8x8x8xf32> to vector<64x8xf32>
    %c0_134 = arith.constant 0 : index
    %c2_135 = arith.constant 2 : index
    %c1_136 = arith.constant 1 : index
    %c0_137 = arith.constant 0 : index
    %144 = vector.load %arg12[%c0_134, %c2_135, %c1_136, %c0_137] : memref<1x10x10x8xf32, #tpu.memory_space<vmem>>, vector<1x8x8x8xf32>
    %145 = vector.shape_cast %144 : vector<1x8x8x8xf32> to vector<64x8xf32>
    %c0_138 = arith.constant 0 : index
    %c2_139 = arith.constant 2 : index
    %c2_140 = arith.constant 2 : index
    %c0_141 = arith.constant 0 : index
    %146 = vector.load %arg12[%c0_138, %c2_139, %c2_140, %c0_141] : memref<1x10x10x8xf32, #tpu.memory_space<vmem>>, vector<1x8x8x8xf32>
    %147 = vector.shape_cast %146 : vector<1x8x8x8xf32> to vector<64x8xf32>
    %148 = tpu.concatenate %131, %133, %135, %137, %139, %141, %143, %145, %147 in 1 : vector<64x8xf32>, vector<64x8xf32>, vector<64x8xf32>, vector<64x8xf32>, vector<64x8xf32>, vector<64x8xf32>, vector<64x8xf32>, vector<64x8xf32>, vector<64x8xf32> -> vector<64x72xf32>
    %c0_142 = arith.constant 0 : index
    %c0_143 = arith.constant 0 : index
    %149 = vector.load %arg4[%c0_142, %c0_143] : memref<72x16xf32, #tpu.memory_space<vmem>>, vector<72x16xf32>
    %cst_144 = arith.constant dense<0.000000e+00> : vector<64x16xf32>
    %150 = tpu.matmul %148, %149, %cst_144 {dimension_numbers = #tpu.dot_dimension_numbers<[1], [0], [0], [1], [0, 0, 1, 1], [], []>} : vector<64x72xf32>, vector<72x16xf32>, vector<64x16xf32> -> vector<64x16xf32>
    %c0_145 = arith.constant 0 : index
    %c0_146 = arith.constant 0 : index
    %151 = vector.load %arg5[%c0_145, %c0_146] : memref<1x16xf32, #tpu.memory_space<vmem>>, vector<1x16xf32>
    %152 = vector.broadcast %151 : vector<1x16xf32> to vector<64x16xf32>
    %153 = arith.addf %150, %152 : vector<64x16xf32>
    %cst_147 = arith.constant 0.000000e+00 : f32
    %154 = vector.broadcast %cst_147 : f32 to vector<64x16xf32>
    %155 = arith.maximumf %153, %154 : vector<64x16xf32>
    %156 = vector.shape_cast %155 : vector<64x16xf32> to vector<1x8x8x16xf32>
    %157 = vector.extract_strided_slice %156 {offsets = [0, 0, 0, 0], sizes = [1, 1, 8, 16], strides = [1, 1, 1, 1]} : vector<1x8x8x16xf32> to vector<1x1x8x16xf32>
    %158 = vector.extract_strided_slice %156 {offsets = [0, 1, 0, 0], sizes = [1, 1, 8, 16], strides = [1, 1, 1, 1]} : vector<1x8x8x16xf32> to vector<1x1x8x16xf32>
    %159 = arith.maximumf %157, %158 : vector<1x1x8x16xf32>
    %160 = vector.extract_strided_slice %156 {offsets = [0, 2, 0, 0], sizes = [1, 1, 8, 16], strides = [1, 1, 1, 1]} : vector<1x8x8x16xf32> to vector<1x1x8x16xf32>
    %161 = vector.extract_strided_slice %156 {offsets = [0, 3, 0, 0], sizes = [1, 1, 8, 16], strides = [1, 1, 1, 1]} : vector<1x8x8x16xf32> to vector<1x1x8x16xf32>
    %162 = arith.maximumf %160, %161 : vector<1x1x8x16xf32>
    %163 = vector.extract_strided_slice %156 {offsets = [0, 4, 0, 0], sizes = [1, 1, 8, 16], strides = [1, 1, 1, 1]} : vector<1x8x8x16xf32> to vector<1x1x8x16xf32>
    %164 = vector.extract_strided_slice %156 {offsets = [0, 5, 0, 0], sizes = [1, 1, 8, 16], strides = [1, 1, 1, 1]} : vector<1x8x8x16xf32> to vector<1x1x8x16xf32>
    %165 = arith.maximumf %163, %164 : vector<1x1x8x16xf32>
    %166 = vector.extract_strided_slice %156 {offsets = [0, 6, 0, 0], sizes = [1, 1, 8, 16], strides = [1, 1, 1, 1]} : vector<1x8x8x16xf32> to vector<1x1x8x16xf32>
    %167 = vector.extract_strided_slice %156 {offsets = [0, 7, 0, 0], sizes = [1, 1, 8, 16], strides = [1, 1, 1, 1]} : vector<1x8x8x16xf32> to vector<1x1x8x16xf32>
    %168 = arith.maximumf %166, %167 : vector<1x1x8x16xf32>
    %169 = tpu.concatenate %159, %162, %165, %168 in 1 : vector<1x1x8x16xf32>, vector<1x1x8x16xf32>, vector<1x1x8x16xf32>, vector<1x1x8x16xf32> -> vector<1x4x8x16xf32>
    %170 = vector.extract_strided_slice %169 {offsets = [0, 0, 0, 0], sizes = [1, 1, 1, 16], strides = [1, 1, 1, 1]} : vector<1x4x8x16xf32> to vector<1x1x1x16xf32>
    %171 = vector.shape_cast %170 : vector<1x1x1x16xf32> to vector<1x16xf32>
    %172 = vector.extract_strided_slice %169 {offsets = [0, 0, 1, 0], sizes = [1, 1, 1, 16], strides = [1, 1, 1, 1]} : vector<1x4x8x16xf32> to vector<1x1x1x16xf32>
    %173 = vector.shape_cast %172 : vector<1x1x1x16xf32> to vector<1x16xf32>
    %174 = arith.maximumf %171, %173 : vector<1x16xf32>
    %175 = vector.extract_strided_slice %169 {offsets = [0, 0, 2, 0], sizes = [1, 1, 1, 16], strides = [1, 1, 1, 1]} : vector<1x4x8x16xf32> to vector<1x1x1x16xf32>
    %176 = vector.shape_cast %175 : vector<1x1x1x16xf32> to vector<1x16xf32>
    %177 = vector.extract_strided_slice %169 {offsets = [0, 0, 3, 0], sizes = [1, 1, 1, 16], strides = [1, 1, 1, 1]} : vector<1x4x8x16xf32> to vector<1x1x1x16xf32>
    %178 = vector.shape_cast %177 : vector<1x1x1x16xf32> to vector<1x16xf32>
    %179 = arith.maximumf %176, %178 : vector<1x16xf32>
    %180 = vector.extract_strided_slice %169 {offsets = [0, 0, 4, 0], sizes = [1, 1, 1, 16], strides = [1, 1, 1, 1]} : vector<1x4x8x16xf32> to vector<1x1x1x16xf32>
    %181 = vector.shape_cast %180 : vector<1x1x1x16xf32> to vector<1x16xf32>
    %182 = vector.extract_strided_slice %169 {offsets = [0, 0, 5, 0], sizes = [1, 1, 1, 16], strides = [1, 1, 1, 1]} : vector<1x4x8x16xf32> to vector<1x1x1x16xf32>
    %183 = vector.shape_cast %182 : vector<1x1x1x16xf32> to vector<1x16xf32>
    %184 = arith.maximumf %181, %183 : vector<1x16xf32>
    %185 = vector.extract_strided_slice %169 {offsets = [0, 0, 6, 0], sizes = [1, 1, 1, 16], strides = [1, 1, 1, 1]} : vector<1x4x8x16xf32> to vector<1x1x1x16xf32>
    %186 = vector.shape_cast %185 : vector<1x1x1x16xf32> to vector<1x16xf32>
    %187 = vector.extract_strided_slice %169 {offsets = [0, 0, 7, 0], sizes = [1, 1, 1, 16], strides = [1, 1, 1, 1]} : vector<1x4x8x16xf32> to vector<1x1x1x16xf32>
    %188 = vector.shape_cast %187 : vector<1x1x1x16xf32> to vector<1x16xf32>
    %189 = arith.maximumf %186, %188 : vector<1x16xf32>
    %190 = vector.extract_strided_slice %169 {offsets = [0, 1, 0, 0], sizes = [1, 1, 1, 16], strides = [1, 1, 1, 1]} : vector<1x4x8x16xf32> to vector<1x1x1x16xf32>
    %191 = vector.shape_cast %190 : vector<1x1x1x16xf32> to vector<1x16xf32>
    %192 = vector.extract_strided_slice %169 {offsets = [0, 1, 1, 0], sizes = [1, 1, 1, 16], strides = [1, 1, 1, 1]} : vector<1x4x8x16xf32> to vector<1x1x1x16xf32>
    %193 = vector.shape_cast %192 : vector<1x1x1x16xf32> to vector<1x16xf32>
    %194 = arith.maximumf %191, %193 : vector<1x16xf32>
    %195 = vector.extract_strided_slice %169 {offsets = [0, 1, 2, 0], sizes = [1, 1, 1, 16], strides = [1, 1, 1, 1]} : vector<1x4x8x16xf32> to vector<1x1x1x16xf32>
    %196 = vector.shape_cast %195 : vector<1x1x1x16xf32> to vector<1x16xf32>
    %197 = vector.extract_strided_slice %169 {offsets = [0, 1, 3, 0], sizes = [1, 1, 1, 16], strides = [1, 1, 1, 1]} : vector<1x4x8x16xf32> to vector<1x1x1x16xf32>
    %198 = vector.shape_cast %197 : vector<1x1x1x16xf32> to vector<1x16xf32>
    %199 = arith.maximumf %196, %198 : vector<1x16xf32>
    %200 = vector.extract_strided_slice %169 {offsets = [0, 1, 4, 0], sizes = [1, 1, 1, 16], strides = [1, 1, 1, 1]} : vector<1x4x8x16xf32> to vector<1x1x1x16xf32>
    %201 = vector.shape_cast %200 : vector<1x1x1x16xf32> to vector<1x16xf32>
    %202 = vector.extract_strided_slice %169 {offsets = [0, 1, 5, 0], sizes = [1, 1, 1, 16], strides = [1, 1, 1, 1]} : vector<1x4x8x16xf32> to vector<1x1x1x16xf32>
    %203 = vector.shape_cast %202 : vector<1x1x1x16xf32> to vector<1x16xf32>
    %204 = arith.maximumf %201, %203 : vector<1x16xf32>
    %205 = vector.extract_strided_slice %169 {offsets = [0, 1, 6, 0], sizes = [1, 1, 1, 16], strides = [1, 1, 1, 1]} : vector<1x4x8x16xf32> to vector<1x1x1x16xf32>
    %206 = vector.shape_cast %205 : vector<1x1x1x16xf32> to vector<1x16xf32>
    %207 = vector.extract_strided_slice %169 {offsets = [0, 1, 7, 0], sizes = [1, 1, 1, 16], strides = [1, 1, 1, 1]} : vector<1x4x8x16xf32> to vector<1x1x1x16xf32>
    %208 = vector.shape_cast %207 : vector<1x1x1x16xf32> to vector<1x16xf32>
    %209 = arith.maximumf %206, %208 : vector<1x16xf32>
    %210 = vector.extract_strided_slice %169 {offsets = [0, 2, 0, 0], sizes = [1, 1, 1, 16], strides = [1, 1, 1, 1]} : vector<1x4x8x16xf32> to vector<1x1x1x16xf32>
    %211 = vector.shape_cast %210 : vector<1x1x1x16xf32> to vector<1x16xf32>
    %212 = vector.extract_strided_slice %169 {offsets = [0, 2, 1, 0], sizes = [1, 1, 1, 16], strides = [1, 1, 1, 1]} : vector<1x4x8x16xf32> to vector<1x1x1x16xf32>
    %213 = vector.shape_cast %212 : vector<1x1x1x16xf32> to vector<1x16xf32>
    %214 = arith.maximumf %211, %213 : vector<1x16xf32>
    %215 = vector.extract_strided_slice %169 {offsets = [0, 2, 2, 0], sizes = [1, 1, 1, 16], strides = [1, 1, 1, 1]} : vector<1x4x8x16xf32> to vector<1x1x1x16xf32>
    %216 = vector.shape_cast %215 : vector<1x1x1x16xf32> to vector<1x16xf32>
    %217 = vector.extract_strided_slice %169 {offsets = [0, 2, 3, 0], sizes = [1, 1, 1, 16], strides = [1, 1, 1, 1]} : vector<1x4x8x16xf32> to vector<1x1x1x16xf32>
    %218 = vector.shape_cast %217 : vector<1x1x1x16xf32> to vector<1x16xf32>
    %219 = arith.maximumf %216, %218 : vector<1x16xf32>
    %220 = vector.extract_strided_slice %169 {offsets = [0, 2, 4, 0], sizes = [1, 1, 1, 16], strides = [1, 1, 1, 1]} : vector<1x4x8x16xf32> to vector<1x1x1x16xf32>
    %221 = vector.shape_cast %220 : vector<1x1x1x16xf32> to vector<1x16xf32>
    %222 = vector.extract_strided_slice %169 {offsets = [0, 2, 5, 0], sizes = [1, 1, 1, 16], strides = [1, 1, 1, 1]} : vector<1x4x8x16xf32> to vector<1x1x1x16xf32>
    %223 = vector.shape_cast %222 : vector<1x1x1x16xf32> to vector<1x16xf32>
    %224 = arith.maximumf %221, %223 : vector<1x16xf32>
    %225 = vector.extract_strided_slice %169 {offsets = [0, 2, 6, 0], sizes = [1, 1, 1, 16], strides = [1, 1, 1, 1]} : vector<1x4x8x16xf32> to vector<1x1x1x16xf32>
    %226 = vector.shape_cast %225 : vector<1x1x1x16xf32> to vector<1x16xf32>
    %227 = vector.extract_strided_slice %169 {offsets = [0, 2, 7, 0], sizes = [1, 1, 1, 16], strides = [1, 1, 1, 1]} : vector<1x4x8x16xf32> to vector<1x1x1x16xf32>
    %228 = vector.shape_cast %227 : vector<1x1x1x16xf32> to vector<1x16xf32>
    %229 = arith.maximumf %226, %228 : vector<1x16xf32>
    %230 = vector.extract_strided_slice %169 {offsets = [0, 3, 0, 0], sizes = [1, 1, 1, 16], strides = [1, 1, 1, 1]} : vector<1x4x8x16xf32> to vector<1x1x1x16xf32>
    %231 = vector.shape_cast %230 : vector<1x1x1x16xf32> to vector<1x16xf32>
    %232 = vector.extract_strided_slice %169 {offsets = [0, 3, 1, 0], sizes = [1, 1, 1, 16], strides = [1, 1, 1, 1]} : vector<1x4x8x16xf32> to vector<1x1x1x16xf32>
    %233 = vector.shape_cast %232 : vector<1x1x1x16xf32> to vector<1x16xf32>
    %234 = arith.maximumf %231, %233 : vector<1x16xf32>
    %235 = vector.extract_strided_slice %169 {offsets = [0, 3, 2, 0], sizes = [1, 1, 1, 16], strides = [1, 1, 1, 1]} : vector<1x4x8x16xf32> to vector<1x1x1x16xf32>
    %236 = vector.shape_cast %235 : vector<1x1x1x16xf32> to vector<1x16xf32>
    %237 = vector.extract_strided_slice %169 {offsets = [0, 3, 3, 0], sizes = [1, 1, 1, 16], strides = [1, 1, 1, 1]} : vector<1x4x8x16xf32> to vector<1x1x1x16xf32>
    %238 = vector.shape_cast %237 : vector<1x1x1x16xf32> to vector<1x16xf32>
    %239 = arith.maximumf %236, %238 : vector<1x16xf32>
    %240 = vector.extract_strided_slice %169 {offsets = [0, 3, 4, 0], sizes = [1, 1, 1, 16], strides = [1, 1, 1, 1]} : vector<1x4x8x16xf32> to vector<1x1x1x16xf32>
    %241 = vector.shape_cast %240 : vector<1x1x1x16xf32> to vector<1x16xf32>
    %242 = vector.extract_strided_slice %169 {offsets = [0, 3, 5, 0], sizes = [1, 1, 1, 16], strides = [1, 1, 1, 1]} : vector<1x4x8x16xf32> to vector<1x1x1x16xf32>
    %243 = vector.shape_cast %242 : vector<1x1x1x16xf32> to vector<1x16xf32>
    %244 = arith.maximumf %241, %243 : vector<1x16xf32>
    %245 = vector.extract_strided_slice %169 {offsets = [0, 3, 6, 0], sizes = [1, 1, 1, 16], strides = [1, 1, 1, 1]} : vector<1x4x8x16xf32> to vector<1x1x1x16xf32>
    %246 = vector.shape_cast %245 : vector<1x1x1x16xf32> to vector<1x16xf32>
    %247 = vector.extract_strided_slice %169 {offsets = [0, 3, 7, 0], sizes = [1, 1, 1, 16], strides = [1, 1, 1, 1]} : vector<1x4x8x16xf32> to vector<1x1x1x16xf32>
    %248 = vector.shape_cast %247 : vector<1x1x1x16xf32> to vector<1x16xf32>
    %249 = arith.maximumf %246, %248 : vector<1x16xf32>
    %250 = tpu.concatenate %174, %179, %184, %189, %194, %199, %204, %209, %214, %219, %224, %229, %234, %239, %244, %249 in 1 : vector<1x16xf32>, vector<1x16xf32>, vector<1x16xf32>, vector<1x16xf32>, vector<1x16xf32>, vector<1x16xf32>, vector<1x16xf32>, vector<1x16xf32>, vector<1x16xf32>, vector<1x16xf32>, vector<1x16xf32>, vector<1x16xf32>, vector<1x16xf32>, vector<1x16xf32>, vector<1x16xf32>, vector<1x16xf32> -> vector<1x256xf32>
    %c0_148 = arith.constant 0 : index
    %c0_149 = arith.constant 0 : index
    %251 = vector.load %arg6[%c0_148, %c0_149] : memref<256x32xf32, #tpu.memory_space<vmem>>, vector<256x32xf32>
    %cst_150 = arith.constant dense<0.000000e+00> : vector<1x32xf32>
    %252 = tpu.matmul %250, %251, %cst_150 {dimension_numbers = #tpu.dot_dimension_numbers<[1], [0], [0], [1], [0, 0, 1, 1], [], []>} : vector<1x256xf32>, vector<256x32xf32>, vector<1x32xf32> -> vector<1x32xf32>
    %c0_151 = arith.constant 0 : index
    %c0_152 = arith.constant 0 : index
    %253 = vector.load %arg7[%c0_151, %c0_152] : memref<1x32xf32, #tpu.memory_space<vmem>>, vector<1x32xf32>
    %254 = arith.addf %252, %253 : vector<1x32xf32>
    %cst_153 = arith.constant 0.000000e+00 : f32
    %255 = vector.broadcast %cst_153 : f32 to vector<1x32xf32>
    %256 = arith.maximumf %254, %255 : vector<1x32xf32>
    %c0_154 = arith.constant 0 : index
    %c0_155 = arith.constant 0 : index
    %257 = vector.load %arg8[%c0_154, %c0_155] : memref<32x128xf32, #tpu.memory_space<vmem>>, vector<32x128xf32>
    %cst_156 = arith.constant dense<0.000000e+00> : vector<1x128xf32>
    %258 = tpu.matmul %256, %257, %cst_156 {dimension_numbers = #tpu.dot_dimension_numbers<[1], [0], [0], [1], [0, 0, 1, 1], [], []>} : vector<1x32xf32>, vector<32x128xf32>, vector<1x128xf32> -> vector<1x128xf32>
    %c0_157 = arith.constant 0 : index
    %c0_158 = arith.constant 0 : index
    %259 = vector.load %arg9[%c0_157, %c0_158] : memref<1x128xf32, #tpu.memory_space<vmem>>, vector<1x128xf32>
    %260 = arith.addf %258, %259 : vector<1x128xf32>
    %261 = vector.shape_cast %260 : vector<1x128xf32> to vector<1x1x128xf32>
    %c0_159 = arith.constant 0 : index
    %c0_160 = arith.constant 0 : index
    %c0_161 = arith.constant 0 : index
    %262 = vector.load %arg10[%c0_159, %c0_160, %c0_161] : memref<1x1x128xf32, #tpu.memory_space<vmem>>, vector<1x1x128xf32>
    tpu.vector_store %arg10[%c0_159, %c0_160, %c0_161], %261 {strides = array<i32>} : memref<1x1x128xf32, #tpu.memory_space<vmem>>, vector<1x1x128xf32>,
    return
  }
  func.func @transform_0(%arg0: i32) -> (i32, i32, i32, i32) {
    %c0_i32 = arith.constant 0 : i32
    %c0_i32_0 = arith.constant 0 : i32
    %c0_i32_1 = arith.constant 0 : i32
    %c0_i32_2 = arith.constant 0 : i32
    return %arg0, %c0_i32, %c0_i32_0, %c0_i32_1 : i32, i32, i32, i32
  }
  func.func @transform_1(%arg0: i32) -> (i32, i32) {
    %c0_i32 = arith.constant 0 : i32
    %c0_i32_0 = arith.constant 0 : i32
    %c0_i32_1 = arith.constant 0 : i32
    return %c0_i32, %c0_i32_0 : i32, i32
  }
  func.func @transform_2(%arg0: i32) -> (i32, i32) {
    %c0_i32 = arith.constant 0 : i32
    %c0_i32_0 = arith.constant 0 : i32
    %c0_i32_1 = arith.constant 0 : i32
    return %c0_i32, %c0_i32_0 : i32, i32
  }
  func.func @transform_3(%arg0: i32) -> (i32, i32) {
    %c0_i32 = arith.constant 0 : i32
    %c0_i32_0 = arith.constant 0 : i32
    %c0_i32_1 = arith.constant 0 : i32
    return %c0_i32, %c0_i32_0 : i32, i32
  }
  func.func @transform_4(%arg0: i32) -> (i32, i32) {
    %c0_i32 = arith.constant 0 : i32
    %c0_i32_0 = arith.constant 0 : i32
    %c0_i32_1 = arith.constant 0 : i32
    return %c0_i32, %c0_i32_0 : i32, i32
  }
  func.func @transform_5(%arg0: i32) -> (i32, i32) {
    %c0_i32 = arith.constant 0 : i32
    %c0_i32_0 = arith.constant 0 : i32
    %c0_i32_1 = arith.constant 0 : i32
    return %c0_i32, %c0_i32_0 : i32, i32
  }
  func.func @transform_6(%arg0: i32) -> (i32, i32) {
    %c0_i32 = arith.constant 0 : i32
    %c0_i32_0 = arith.constant 0 : i32
    %c0_i32_1 = arith.constant 0 : i32
    return %c0_i32, %c0_i32_0 : i32, i32
  }
  func.func @transform_7(%arg0: i32) -> (i32, i32) {
    %c0_i32 = arith.constant 0 : i32
    %c0_i32_0 = arith.constant 0 : i32
    %c0_i32_1 = arith.constant 0 : i32
    return %c0_i32, %c0_i32_0 : i32, i32
  }
  func.func @transform_8(%arg0: i32) -> (i32, i32) {
    %c0_i32 = arith.constant 0 : i32
    %c0_i32_0 = arith.constant 0 : i32
    %c0_i32_1 = arith.constant 0 : i32
    return %c0_i32, %c0_i32_0 : i32, i32
  }
  func.func @transform_9(%arg0: i32) -> (i32, i32, i32) {
    %c0_i32 = arith.constant 0 : i32
    %c0_i32_0 = arith.constant 0 : i32
    %c0_i32_1 = arith.constant 0 : i32
    return %arg0, %c0_i32, %c0_i32_0 : i32, i32, i32
  }
}

</mosaic_0001>

<llo_original>
// kernel: tpu_custom_call.1
$region0: #{tpu_custom_call.1}
  #allocation0 [shape = 'u32[]', space=smem, size = 0x4, offset = 0x4, fixed_abs, tag = 'smem constant byte address 0x4 - core index']
  #allocation1 [shape = 'u32[144,128]{1,0:T(1,128)}', space=vmem, size = 0x12000, scoped, tag = 'internal scratch']
  #allocation2 [shape = 'f32[1,18,18,4]{3,2,1,0:T(8,128)}', space=vmem, size = 0x36000, scoped, tag = 'scratch operand']
  #allocation3 [shape = 'f32[1,10,10,8]{3,2,1,0:T(8,128)}', space=vmem, size = 0x14000, scoped, tag = 'scratch operand']
  %s0 = inlined_call_operand.vmem [shape: f32[2,16,16,4], index: 0, kind: input, shape index: {}]
  %s1 = inlined_call_operand.vmem [shape: f32[36,8], index: 1, kind: input, shape index: {}]
  %s2 = inlined_call_operand.vmem [shape: f32[1,8], index: 2, kind: input, shape index: {}]
  %s3 = inlined_call_operand.vmem [shape: f32[72,16], index: 3, kind: input, shape index: {}]
  %s4 = inlined_call_operand.vmem [shape: f32[1,16], index: 4, kind: input, shape index: {}]
  %s5 = inlined_call_operand.vmem [shape: f32[256,32], index: 5, kind: input, shape index: {}]
  %s6 = inlined_call_operand.vmem [shape: f32[1,32], index: 6, kind: input, shape index: {}]
  %s7 = inlined_call_operand.vmem [shape: f32[32,128], index: 7, kind: input, shape index: {}]
  %s8 = inlined_call_operand.vmem [shape: f32[1,128], index: 8, kind: input, shape index: {}]
  %s9 = inlined_call_operand.hbm [shape: f32[2,1,128], index: 9, kind: output, shape index: {}]
  %s10 = sld [smem:[#allocation0]]
  $region69: #{tpu_custom_call.1} parent=0
    _
  %s12 = ssub.s32 1, %s10
  %s13 = scalar_select 0, %s12, %s10
  $region1: #{tpu_custom_call.1} parent=0
    #allocation4 [shape = 'u8[1024]{0}', space=vmem, size = 0x400, scoped, tag = 'output window, operand 0']
    #allocation5 [shape = 's32[2]{0}', space=sflag, size = 0x8, scoped, tag = 'scoped memory for tpu_custom_call.1']
    %14 = vsyncpa [#allocation5], 0
    %s15 = scalar_lea.sflag [#allocation5], 1
    %16 = vsyncpa %s15, 0
    loop: start=0, step=1, limit=4
    $region2: #{tpu_custom_call.1} parent=1 // loop_pre_header
      _
    $region3: #{tpu_custom_call.1} parent=1 // loop_header
      %s18 = sphi 0, %s22
      %p19 = scmp.ge.s32.totalorder %s18, 4
      %s28 = sphi 0, %s30
      %s31 = sphi 0, %s28
      %s32 = sphi 0, %s31
      %s48 = sphi 0, %s32
      %s52 = sphi 0, %s52
      %s54 = sphi 0, %s52
      %s55 = sphi 0, %s54
      %s69 = sphi 0, %s55
      %s73 = sphi 0, %s73
      %s75 = sphi 0, %s73
      %s76 = sphi 0, %s75
      %s90 = sphi 0, %s76
      %s94 = sphi 0, %s94
      %s96 = sphi 0, %s94
      %s97 = sphi 0, %s96
      %s111 = sphi 0, %s97
      %s115 = sphi 0, %s115
      %s117 = sphi 0, %s115
      %s118 = sphi 0, %s117
      %s132 = sphi 0, %s118
      %s136 = sphi 0, %s136
      %s138 = sphi 0, %s136
      %s139 = sphi 0, %s138
      %s153 = sphi 0, %s139
      %s157 = sphi 0, %s157
      %s159 = sphi 0, %s157
      %s160 = sphi 0, %s159
      %s174 = sphi 0, %s160
      %s178 = sphi 0, %s178
      %s180 = sphi 0, %s178
      %s181 = sphi 0, %s180
      %s195 = sphi 0, %s181
      %s199 = sphi 0, %s199
      %s201 = sphi 0, %s199
      %s202 = sphi 0, %s201
      %s216 = sphi 0, %s202
      %s222 = sphi 0, %s224
      %s225 = sphi 0, %s222
      %s226 = sphi 0, %s225
      %s242 = sphi 0, %s226
    $region4: #{tpu_custom_call.1} parent=1 // loop_header_branch
      %21 = sbr.rel (%p19) target = $region8
    $region5: #{tpu_custom_call.1} parent=1 // loop_body
      %s23 = ssub.s32 %s18, 1
      %s24 = ssub.s32 %s18, 2
      %s25 = sadd.s32 %s18, 1
      %s26 = ssub.s32 %s18, %s25
      %p27 = scmp.eq.s32.totalorder %s26, 0
      %s29 = sadd.s32 %s28, 1
      %s30 = scalar_select %p27, %s28, %s29
      %p33 = pneg %p27
      %p34 = scmp.eq.s32.totalorder %s18, 1
      %p35 = por %p33, %p34
      %p36 = scmp.ne.s32.totalorder %s28, %s31
      %p37 = scmp.eq.s32.totalorder %s18, 0
      %p38 = por %p36, %p37
      %p39 = scmp.ne.s32.totalorder %s28, %s31
      %p40 = scmp.eq.s32.totalorder %s23, 1
      %p41 = por %p39, %p40
      %p42 = scmp.ne.s32.totalorder %s31, %s32
      %p43 = scmp.eq.s32.totalorder %s23, 0
      %p44 = por %p42, %p43
      %p45 = scmp.ne.s32.totalorder %s31, %s32
      %p46 = scmp.eq.s32.totalorder %s24, 1
      %p47 = por %p45, %p46
      %p49 = scmp.ne.s32.totalorder %s32, %s48
      %p50 = scmp.eq.s32.totalorder %s24, 0
      %p51 = por %p49, %p50
      %s53 = sadd.s32 %s52, 1
      %p56 = scmp.eq.s32.totalorder %s18, 1
      %p57 = scmp.ne.s32.totalorder %s52, %s54
      %p58 = scmp.eq.s32.totalorder %s18, 0
      %p59 = por %p57, %p58
      %p60 = scmp.ne.s32.totalorder %s52, %s54
      %p61 = scmp.eq.s32.totalorder %s23, 1
      %p62 = por %p60, %p61
      %p63 = scmp.ne.s32.totalorder %s54, %s55
      %p64 = scmp.eq.s32.totalorder %s23, 0
      %p65 = por %p63, %p64
      %p66 = scmp.ne.s32.totalorder %s54, %s55
      %p67 = scmp.eq.s32.totalorder %s24, 1
      %p68 = por %p66, %p67
      %p70 = scmp.ne.s32.totalorder %s55, %s69
      %p71 = scmp.eq.s32.totalorder %s24, 0
      %p72 = por %p70, %p71
      %s74 = sadd.s32 %s73, 1
      %p77 = scmp.eq.s32.totalorder %s18, 1
      %p78 = scmp.ne.s32.totalorder %s73, %s75
      %p79 = scmp.eq.s32.totalorder %s18, 0
      %p80 = por %p78, %p79
      %p81 = scmp.ne.s32.totalorder %s73, %s75
      %p82 = scmp.eq.s32.totalorder %s23, 1
      %p83 = por %p81, %p82
      %p84 = scmp.ne.s32.totalorder %s75, %s76
      %p85 = scmp.eq.s32.totalorder %s23, 0
      %p86 = por %p84, %p85
      %p87 = scmp.ne.s32.totalorder %s75, %s76
      %p88 = scmp.eq.s32.totalorder %s24, 1
      %p89 = por %p87, %p88
      %p91 = scmp.ne.s32.totalorder %s76, %s90
      %p92 = scmp.eq.s32.totalorder %s24, 0
      %p93 = por %p91, %p92
      %s95 = sadd.s32 %s94, 1
      %p98 = scmp.eq.s32.totalorder %s18, 1
      %p99 = scmp.ne.s32.totalorder %s94, %s96
      %p100 = scmp.eq.s32.totalorder %s18, 0
      %p101 = por %p99, %p100
      %p102 = scmp.ne.s32.totalorder %s94, %s96
      %p103 = scmp.eq.s32.totalorder %s23, 1
      %p104 = por %p102, %p103
      %p105 = scmp.ne.s32.totalorder %s96, %s97
      %p106 = scmp.eq.s32.totalorder %s23, 0
      %p107 = por %p105, %p106
      %p108 = scmp.ne.s32.totalorder %s96, %s97
      %p109 = scmp.eq.s32.totalorder %s24, 1
      %p110 = por %p108, %p109
      %p112 = scmp.ne.s32.totalorder %s97, %s111
      %p113 = scmp.eq.s32.totalorder %s24, 0
      %p114 = por %p112, %p113
      %s116 = sadd.s32 %s115, 1
      %p119 = scmp.eq.s32.totalorder %s18, 1
      %p120 = scmp.ne.s32.totalorder %s115, %s117
      %p121 = scmp.eq.s32.totalorder %s18, 0
      %p122 = por %p120, %p121
      %p123 = scmp.ne.s32.totalorder %s115, %s117
      %p124 = scmp.eq.s32.totalorder %s23, 1
      %p125 = por %p123, %p124
      %p126 = scmp.ne.s32.totalorder %s117, %s118
      %p127 = scmp.eq.s32.totalorder %s23, 0
      %p128 = por %p126, %p127
      %p129 = scmp.ne.s32.totalorder %s117, %s118
      %p130 = scmp.eq.s32.totalorder %s24, 1
      %p131 = por %p129, %p130
      %p133 = scmp.ne.s32.totalorder %s118, %s132
      %p134 = scmp.eq.s32.totalorder %s24, 0
      %p135 = por %p133, %p134
      %s137 = sadd.s32 %s136, 1
      %p140 = scmp.eq.s32.totalorder %s18, 1
      %p141 = scmp.ne.s32.totalorder %s136, %s138
      %p142 = scmp.eq.s32.totalorder %s18, 0
      %p143 = por %p141, %p142
      %p144 = scmp.ne.s32.totalorder %s136, %s138
      %p145 = scmp.eq.s32.totalorder %s23, 1
      %p146 = por %p144, %p145
      %p147 = scmp.ne.s32.totalorder %s138, %s139
      %p148 = scmp.eq.s32.totalorder %s23, 0
      %p149 = por %p147, %p148
      %p150 = scmp.ne.s32.totalorder %s138, %s139
      %p151 = scmp.eq.s32.totalorder %s24, 1
      %p152 = por %p150, %p151
      %p154 = scmp.ne.s32.totalorder %s139, %s153
      %p155 = scmp.eq.s32.totalorder %s24, 0
      %p156 = por %p154, %p155
      %s158 = sadd.s32 %s157, 1
      %p161 = scmp.eq.s32.totalorder %s18, 1
      %p162 = scmp.ne.s32.totalorder %s157, %s159
      %p163 = scmp.eq.s32.totalorder %s18, 0
      %p164 = por %p162, %p163
      %p165 = scmp.ne.s32.totalorder %s157, %s159
      %p166 = scmp.eq.s32.totalorder %s23, 1
      %p167 = por %p165, %p166
      %p168 = scmp.ne.s32.totalorder %s159, %s160
      %p169 = scmp.eq.s32.totalorder %s23, 0
      %p170 = por %p168, %p169
      %p171 = scmp.ne.s32.totalorder %s159, %s160
      %p172 = scmp.eq.s32.totalorder %s24, 1
      %p173 = por %p171, %p172
      %p175 = scmp.ne.s32.totalorder %s160, %s174
      %p176 = scmp.eq.s32.totalorder %s24, 0
      %p177 = por %p175, %p176
      %s179 = sadd.s32 %s178, 1
      %p182 = scmp.eq.s32.totalorder %s18, 1
      %p183 = scmp.ne.s32.totalorder %s178, %s180
      %p184 = scmp.eq.s32.totalorder %s18, 0
      %p185 = por %p183, %p184
      %p186 = scmp.ne.s32.totalorder %s178, %s180
      %p187 = scmp.eq.s32.totalorder %s23, 1
      %p188 = por %p186, %p187
      %p189 = scmp.ne.s32.totalorder %s180, %s181
      %p190 = scmp.eq.s32.totalorder %s23, 0
      %p191 = por %p189, %p190
      %p192 = scmp.ne.s32.totalorder %s180, %s181
      %p193 = scmp.eq.s32.totalorder %s24, 1
      %p194 = por %p192, %p193
      %p196 = scmp.ne.s32.totalorder %s181, %s195
      %p197 = scmp.eq.s32.totalorder %s24, 0
      %p198 = por %p196, %p197
      %s200 = sadd.s32 %s199, 1
      %p203 = scmp.eq.s32.totalorder %s18, 1
      %p204 = scmp.ne.s32.totalorder %s199, %s201
      %p205 = scmp.eq.s32.totalorder %s18, 0
      %p206 = por %p204, %p205
      %p207 = scmp.ne.s32.totalorder %s199, %s201
      %p208 = scmp.eq.s32.totalorder %s23, 1
      %p209 = por %p207, %p208
      %p210 = scmp.ne.s32.totalorder %s201, %s202
      %p211 = scmp.eq.s32.totalorder %s23, 0
      %p212 = por %p210, %p211
      %p213 = scmp.ne.s32.totalorder %s201, %s202
      %p214 = scmp.eq.s32.totalorder %s24, 1
      %p215 = por %p213, %p214
      %p217 = scmp.ne.s32.totalorder %s202, %s216
      %p218 = scmp.eq.s32.totalorder %s24, 0
      %p219 = por %p217, %p218
      %s220 = ssub.s32 %s18, %s25
      %p221 = scmp.eq.s32.totalorder %s220, 0
      %s223 = sadd.s32 %s222, 1
      %s224 = scalar_select %p221, %s222, %s223
      %p227 = pneg %p221
      %p228 = scmp.eq.s32.totalorder %s18, 1
      %p229 = por %p227, %p228
      %p230 = scmp.ne.s32.totalorder %s222, %s225
      %p231 = scmp.eq.s32.totalorder %s18, 0
      %p232 = por %p230, %p231
      %p233 = scmp.ne.s32.totalorder %s222, %s225
      %p234 = scmp.eq.s32.totalorder %s23, 1
      %p235 = por %p233, %p234
      %p236 = scmp.ne.s32.totalorder %s225, %s226
      %p237 = scmp.eq.s32.totalorder %s23, 0
      %p238 = por %p236, %p237
      %p239 = scmp.ne.s32.totalorder %s225, %s226
      %p240 = scmp.eq.s32.totalorder %s24, 1
      %p241 = por %p239, %p240
      %p243 = scmp.ne.s32.totalorder %s226, %s242
      %p244 = scmp.eq.s32.totalorder %s24, 0
      %p245 = por %p243, %p244
      %p246 = scmp.le.s32.totalorder 1, %s18
      %p247 = scmp.lt.s32.totalorder %s18, 3
      %p248 = pnand %p246, %p247
      %p249 = pneg %p248
      // Predicated region
      $region9: #{tpu_custom_call.1} parent=5 // pred_check
        _
      $region10: #{tpu_custom_call.1} parent=5 // pred_check_branch
        %251 = sbr.rel (%p248) target = $region12
      $region11: #{tpu_custom_call.1} parent=5 // pred_region
        %s252 = ssub.s32 %s18, 1
        // Predicated region
        $region13: #{tpu_custom_call.1} parent=11 // pred_check
          %p253 = pneg %p65
        $region14: #{tpu_custom_call.1} parent=11 // pred_check_branch
          %255 = sbr.rel (%p253) target = $region16
        $region15: #{tpu_custom_call.1} parent=11 // pred_region
          _
        $region16: #{tpu_custom_call.1} parent=11 // pred_fallthru
          _
        // Predicated region
        $region17: #{tpu_custom_call.1} parent=11 // pred_check
          %p256 = pneg %p86
        $region18: #{tpu_custom_call.1} parent=11 // pred_check_branch
          %258 = sbr.rel (%p256) target = $region20
        $region19: #{tpu_custom_call.1} parent=11 // pred_region
          _
        $region20: #{tpu_custom_call.1} parent=11 // pred_fallthru
          _
        // Predicated region
        $region21: #{tpu_custom_call.1} parent=11 // pred_check
          %p259 = pneg %p107
        $region22: #{tpu_custom_call.1} parent=11 // pred_check_branch
          %261 = sbr.rel (%p259) target = $region24
        $region23: #{tpu_custom_call.1} parent=11 // pred_region
          _
        $region24: #{tpu_custom_call.1} parent=11 // pred_fallthru
          _
        // Predicated region
        $region25: #{tpu_custom_call.1} parent=11 // pred_check
          %p262 = pneg %p128
        $region26: #{tpu_custom_call.1} parent=11 // pred_check_branch
          %264 = sbr.rel (%p262) target = $region28
        $region27: #{tpu_custom_call.1} parent=11 // pred_region
          _
        $region28: #{tpu_custom_call.1} parent=11 // pred_fallthru
          _
        // Predicated region
        $region29: #{tpu_custom_call.1} parent=11 // pred_check
          %p265 = pneg %p149
        $region30: #{tpu_custom_call.1} parent=11 // pred_check_branch
          %267 = sbr.rel (%p265) target = $region32
        $region31: #{tpu_custom_call.1} parent=11 // pred_region
          _
        $region32: #{tpu_custom_call.1} parent=11 // pred_fallthru
          _
        // Predicated region
        $region33: #{tpu_custom_call.1} parent=11 // pred_check
          %p268 = pneg %p170
        $region34: #{tpu_custom_call.1} parent=11 // pred_check_branch
          %270 = sbr.rel (%p268) target = $region36
        $region35: #{tpu_custom_call.1} parent=11 // pred_region
          _
        $region36: #{tpu_custom_call.1} parent=11 // pred_fallthru
          _
        // Predicated region
        $region37: #{tpu_custom_call.1} parent=11 // pred_check
          %p271 = pneg %p191
        $region38: #{tpu_custom_call.1} parent=11 // pred_check_branch
          %273 = sbr.rel (%p271) target = $region40
        $region39: #{tpu_custom_call.1} parent=11 // pred_region
          _
        $region40: #{tpu_custom_call.1} parent=11 // pred_fallthru
          _
        // Predicated region
        $region41: #{tpu_custom_call.1} parent=11 // pred_check
          %p274 = pneg %p212
        $region42: #{tpu_custom_call.1} parent=11 // pred_check_branch
          %276 = sbr.rel (%p274) target = $region44
        $region43: #{tpu_custom_call.1} parent=11 // pred_region
          _
        $region44: #{tpu_custom_call.1} parent=11 // pred_fallthru
          _
      $region12: #{tpu_custom_call.1} parent=5 // pred_fallthru
        _
      %p277 = scmp.lt.s32.totalorder %s18, 2
      // Predicated region
      $region45: #{tpu_custom_call.1} parent=5 // pred_check
        %p278 = pneg %p277
      $region46: #{tpu_custom_call.1} parent=5 // pred_check_branch
        %280 = sbr.rel (%p278) target = $region48
      $region47: #{tpu_custom_call.1} parent=5 // pred_region
        // Predicated region
        $region49: #{tpu_custom_call.1} parent=47 // pred_check
          %p281 = pneg %p38
        $region50: #{tpu_custom_call.1} parent=47 // pred_check_branch
          %283 = sbr.rel (%p281) target = $region52
        $region51: #{tpu_custom_call.1} parent=47 // pred_region
          %p284 = scmp.lt.s32.totalorder %s18, 1
          %s285 = scalar_select %p284, %s18, 1
          %s286 = smul.addr %s285, 32
          %s287 = smul.addr %s286, 8
          %s288 = scalar_lea.vmem %s0, %s287
        $region52: #{tpu_custom_call.1} parent=47 // pred_fallthru
          _
      $region48: #{tpu_custom_call.1} parent=5 // pred_fallthru
        _
      %p289 = scmp.le.s32.totalorder 1, %s18
      %p290 = scmp.lt.s32.totalorder %s18, 3
      %p291 = pnand %p289, %p290
      %p292 = pneg %p291
      // Predicated region
      $region53: #{tpu_custom_call.1} parent=5 // pred_check
        _
      $region54: #{tpu_custom_call.1} parent=5 // pred_check_branch
        %294 = sbr.rel (%p291) target = $region56
      $region55: #{tpu_custom_call.1} parent=5 // pred_region
        %s295 = ssub.s32 %s18, 1
        %p296 = scmp.lt.s32.totalorder %s23, 1
        %s297 = scalar_select %p296, %s23, 1
        %s298 = smul.addr %s297, 32
        %s299 = smul.addr %s298, 8
        %s300 = scalar_lea.vmem %s0, %s299
        %p301 = pneg %p44
        %p302 = pneg %p41
        %p303 = pneg %p65
        %p304 = pneg %p62
        %p305 = pneg %p86
        %p306 = pneg %p83
        %p307 = pneg %p107
        %p308 = pneg %p104
        %p309 = pneg %p128
        %p310 = pneg %p125
        %p311 = pneg %p149
        %p312 = pneg %p146
        %p313 = pneg %p170
        %p314 = pneg %p167
        %p315 = pneg %p191
        %p316 = pneg %p188
        %p317 = pneg %p212
        %p318 = pneg %p209
        %p319 = pneg %p238
        %p320 = pneg %p235
        %s321 = sand.u32 %s225, 1
        %s322 = scalar_lea.sflag [#allocation5], %s321
        %s323 = sand.u32 %s225, 1
        %s324 = scalar_lea.vmem [#allocation4], %s323
        %p325 = scmp.lt.s32.totalorder %s23, 1
        %s326 = scalar_select %p325, %s23, 1
        %s327 = smul.addr %s326, 32
        %s328 = smul.addr %s327, 8
        %s329 = scalar_lea.vmem %s0, %s328
        %vm330 = vcmask 31744
        %331 = vst.msk [vmem:[#allocation2] sm:$0xff] %vm330, 0.0
        %332 = vst.msk [vmem:[#allocation2 + $0x8] sm:$0xff] %vm330, 0.0
        %vm333 = vcmask 25600
        %334 = vst.msk [vmem:[#allocation2 + $0x10] sm:$0x3] %vm333, 0.0
        %s335 = scalar_lea.vmem [#allocation2], 408
        %336 = vst.msk [vmem:[%s335] sm:$0xff] %vm330, 0.0
        %337 = vst.msk [vmem:[%s335 + $0x8] sm:$0xff] %vm330, 0.0
        %338 = vst.msk [vmem:[%s335 + $0x10] sm:$0x3] %vm333, 0.0
        %vm339 = vcmask 24576
        %340 = vst.msk [vmem:[#allocation2] sm:$0x1] %vm339, 0.0
        %341 = vst.msk [vmem:[#allocation2 + $0x18] sm:$0x1] %vm339, 0.0
        %342 = vst.msk [vmem:[#allocation2 + $0x30] sm:$0x1] %vm339, 0.0
        %343 = vst.msk [vmem:[#allocation2 + $0x48] sm:$0x1] %vm339, 0.0
        %344 = vst.msk [vmem:[#allocation2 + $0x60] sm:$0x1] %vm339, 0.0
        %345 = vst.msk [vmem:[#allocation2 + $0x78] sm:$0x1] %vm339, 0.0
        %346 = vst.msk [vmem:[#allocation2 + $0x90] sm:$0x1] %vm339, 0.0
        %347 = vst.msk [vmem:[#allocation2 + $0xa8] sm:$0x1] %vm339, 0.0
        %348 = vst.msk [vmem:[#allocation2 + $0xc0] sm:$0x1] %vm339, 0.0
        %349 = vst.msk [vmem:[#allocation2 + $0xd8] sm:$0x1] %vm339, 0.0
        %350 = vst.msk [vmem:[#allocation2 + $0xf0] sm:$0x1] %vm339, 0.0
        %351 = vst.msk [vmem:[#allocation2 + $0x108] sm:$0x1] %vm339, 0.0
        %352 = vst.msk [vmem:[#allocation2 + $0x120] sm:$0x1] %vm339, 0.0
        %353 = vst.msk [vmem:[#allocation2 + $0x138] sm:$0x1] %vm339, 0.0
        %354 = vst.msk [vmem:[#allocation2 + $0x150] sm:$0x1] %vm339, 0.0
        %355 = vst.msk [vmem:[#allocation2 + $0x168] sm:$0x1] %vm339, 0.0
        %356 = vst.msk [vmem:[#allocation2 + $0x180] sm:$0x1] %vm339, 0.0
        %357 = vst.msk [vmem:[#allocation2 + $0x198] sm:$0x1] %vm339, 0.0
        %358 = vst.msk [vmem:[#allocation2 + $0x11] sm:$0x1] %vm339, 0.0
        %359 = vst.msk [vmem:[#allocation2 + $0x29] sm:$0x1] %vm339, 0.0
        %360 = vst.msk [vmem:[#allocation2 + $0x41] sm:$0x1] %vm339, 0.0
        %361 = vst.msk [vmem:[#allocation2 + $0x59] sm:$0x1] %vm339, 0.0
        %362 = vst.msk [vmem:[#allocation2 + $0x71] sm:$0x1] %vm339, 0.0
        %363 = vst.msk [vmem:[#allocation2 + $0x89] sm:$0x1] %vm339, 0.0
        %364 = vst.msk [vmem:[#allocation2 + $0xa1] sm:$0x1] %vm339, 0.0
        %365 = vst.msk [vmem:[#allocation2 + $0xb9] sm:$0x1] %vm339, 0.0
        %366 = vst.msk [vmem:[#allocation2 + $0xd1] sm:$0x1] %vm339, 0.0
        %367 = vst.msk [vmem:[#allocation2 + $0xe9] sm:$0x1] %vm339, 0.0
        %368 = vst.msk [vmem:[#allocation2 + $0x101] sm:$0x1] %vm339, 0.0
        %369 = vst.msk [vmem:[#allocation2 + $0x119] sm:$0x1] %vm339, 0.0
        %370 = vst.msk [vmem:[#allocation2 + $0x131] sm:$0x1] %vm339, 0.0
        %371 = vst.msk [vmem:[#allocation2 + $0x149] sm:$0x1] %vm339, 0.0
        %372 = vst.msk [vmem:[#allocation2 + $0x161] sm:$0x1] %vm339, 0.0
        %373 = vst.msk [vmem:[#allocation2 + $0x179] sm:$0x1] %vm339, 0.0
        %374 = vst.msk [vmem:[#allocation2 + $0x191] sm:$0x1] %vm339, 0.0
        %375 = vst.msk [vmem:[#allocation2 + $0x1a9] sm:$0x1] %vm339, 0.0
        %v376 = vld [vmem:[%s329] sm:$0xff]
        %v377 = vld [vmem:[%s329 + $0x8] sm:$0xff]
        %v378 = vld [vmem:[%s329 + $0x10] sm:$0xff]
        %v379 = vld [vmem:[%s329 + $0x18] sm:$0xff]
        %v380 = vld [vmem:[%s329 + $0x20] sm:$0xff]
        %v381 = vld [vmem:[%s329 + $0x28] sm:$0xff]
        %v382 = vld [vmem:[%s329 + $0x30] sm:$0xff]
        %v383 = vld [vmem:[%s329 + $0x38] sm:$0xff]
        %v384 = vld [vmem:[%s329 + $0x40] sm:$0xff]
        %v385 = vld [vmem:[%s329 + $0x48] sm:$0xff]
        %v386 = vld [vmem:[%s329 + $0x50] sm:$0xff]
        %v387 = vld [vmem:[%s329 + $0x58] sm:$0xff]
        %v388 = vld [vmem:[%s329 + $0x60] sm:$0xff]
        %v389 = vld [vmem:[%s329 + $0x68] sm:$0xff]
        %v390 = vld [vmem:[%s329 + $0x70] sm:$0xff]
        %v391 = vld [vmem:[%s329 + $0x78] sm:$0xff]
        %v392 = vld [vmem:[%s329 + $0x80] sm:$0xff]
        %v393 = vld [vmem:[%s329 + $0x88] sm:$0xff]
        %v394 = vld [vmem:[%s329 + $0x90] sm:$0xff]
        %v395 = vld [vmem:[%s329 + $0x98] sm:$0xff]
        %v396 = vld [vmem:[%s329 + $0xa0] sm:$0xff]
        %v397 = vld [vmem:[%s329 + $0xa8] sm:$0xff]
        %v398 = vld [vmem:[%s329 + $0xb0] sm:$0xff]
        %v399 = vld [vmem:[%s329 + $0xb8] sm:$0xff]
        %v400 = vld [vmem:[%s329 + $0xc0] sm:$0xff]
        %v401 = vld [vmem:[%s329 + $0xc8] sm:$0xff]
        %v402 = vld [vmem:[%s329 + $0xd0] sm:$0xff]
        %v403 = vld [vmem:[%s329 + $0xd8] sm:$0xff]
        %v404 = vld [vmem:[%s329 + $0xe0] sm:$0xff]
        %v405 = vld [vmem:[%s329 + $0xe8] sm:$0xff]
        %v406 = vld [vmem:[%s329 + $0xf0] sm:$0xff]
        %v407 = vld [vmem:[%s329 + $0xf8] sm:$0xff]
        %s408 = scalar_lea.vmem [#allocation2], 24
        %409 = vst.msk [vmem:[%s408 + $0x1] sm:$0xff] %vm330, %v376
        %410 = vst.msk [vmem:[%s408 + $0x9] sm:$0xff] %vm330, %v377
        %411 = vst.msk [vmem:[%s408 + $0x19] sm:$0xff] %vm330, %v378
        %412 = vst.msk [vmem:[%s408 + $0x21] sm:$0xff] %vm330, %v379
        %413 = vst.msk [vmem:[%s408 + $0x31] sm:$0xff] %vm330, %v380
        %414 = vst.msk [vmem:[%s408 + $0x39] sm:$0xff] %vm330, %v381
        %415 = vst.msk [vmem:[%s408 + $0x49] sm:$0xff] %vm330, %v382
        %416 = vst.msk [vmem:[%s408 + $0x51] sm:$0xff] %vm330, %v383
        %417 = vst.msk [vmem:[%s408 + $0x61] sm:$0xff] %vm330, %v384
        %418 = vst.msk [vmem:[%s408 + $0x69] sm:$0xff] %vm330, %v385
        %419 = vst.msk [vmem:[%s408 + $0x79] sm:$0xff] %vm330, %v386
        %420 = vst.msk [vmem:[%s408 + $0x81] sm:$0xff] %vm330, %v387
        %421 = vst.msk [vmem:[%s408 + $0x91] sm:$0xff] %vm330, %v388
        %422 = vst.msk [vmem:[%s408 + $0x99] sm:$0xff] %vm330, %v389
        %423 = vst.msk [vmem:[%s408 + $0xa9] sm:$0xff] %vm330, %v390
        %424 = vst.msk [vmem:[%s408 + $0xb1] sm:$0xff] %vm330, %v391
        %425 = vst.msk [vmem:[%s408 + $0xc1] sm:$0xff] %vm330, %v392
        %426 = vst.msk [vmem:[%s408 + $0xc9] sm:$0xff] %vm330, %v393
        %427 = vst.msk [vmem:[%s408 + $0xd9] sm:$0xff] %vm330, %v394
        %428 = vst.msk [vmem:[%s408 + $0xe1] sm:$0xff] %vm330, %v395
        %429 = vst.msk [vmem:[%s408 + $0xf1] sm:$0xff] %vm330, %v396
        %430 = vst.msk [vmem:[%s408 + $0xf9] sm:$0xff] %vm330, %v397
        %431 = vst.msk [vmem:[%s408 + $0x109] sm:$0xff] %vm330, %v398
        %432 = vst.msk [vmem:[%s408 + $0x111] sm:$0xff] %vm330, %v399
        %433 = vst.msk [vmem:[%s408 + $0x121] sm:$0xff] %vm330, %v400
        %434 = vst.msk [vmem:[%s408 + $0x129] sm:$0xff] %vm330, %v401
        %435 = vst.msk [vmem:[%s408 + $0x139] sm:$0xff] %vm330, %v402
        %436 = vst.msk [vmem:[%s408 + $0x141] sm:$0xff] %vm330, %v403
        %437 = vst.msk [vmem:[%s408 + $0x151] sm:$0xff] %vm330, %v404
        %438 = vst.msk [vmem:[%s408 + $0x159] sm:$0xff] %vm330, %v405
        %439 = vst.msk [vmem:[%s408 + $0x169] sm:$0xff] %vm330, %v406
        %440 = vst.msk [vmem:[%s408 + $0x171] sm:$0xff] %vm330, %v407
        %v441 = vld [vmem:[#allocation2] sm:$0xff]
        %v442 = vld [vmem:[#allocation2 + $0x8] sm:$0xff]
        %v443 = vld [vmem:[#allocation2 + $0x18] sm:$0xff]
        %v444 = vld [vmem:[#allocation2 + $0x20] sm:$0xff]
        %v445 = vld [vmem:[#allocation2 + $0x30] sm:$0xff]
        %v446 = vld [vmem:[#allocation2 + $0x38] sm:$0xff]
        %v447 = vld [vmem:[#allocation2 + $0x48] sm:$0xff]
        %v448 = vld [vmem:[#allocation2 + $0x50] sm:$0xff]
        %v449 = vld [vmem:[#allocation2 + $0x60] sm:$0xff]
        %v450 = vld [vmem:[#allocation2 + $0x68] sm:$0xff]
        %v451 = vld [vmem:[#allocation2 + $0x78] sm:$0xff]
        %v452 = vld [vmem:[#allocation2 + $0x80] sm:$0xff]
        %v453 = vld [vmem:[#allocation2 + $0x90] sm:$0xff]
        %v454 = vld [vmem:[#allocation2 + $0x98] sm:$0xff]
        %v455 = vld [vmem:[#allocation2 + $0xa8] sm:$0xff]
        %v456 = vld [vmem:[#allocation2 + $0xb0] sm:$0xff]
        %v457 = vld [vmem:[#allocation2 + $0xc0] sm:$0xff]
        %v458 = vld [vmem:[#allocation2 + $0xc8] sm:$0xff]
        %v459 = vld [vmem:[#allocation2 + $0xd8] sm:$0xff]
        %v460 = vld [vmem:[#allocation2 + $0xe0] sm:$0xff]
        %v461 = vld [vmem:[#allocation2 + $0xf0] sm:$0xff]
        %v462 = vld [vmem:[#allocation2 + $0xf8] sm:$0xff]
        %v463 = vld [vmem:[#allocation2 + $0x108] sm:$0xff]
        %v464 = vld [vmem:[#allocation2 + $0x110] sm:$0xff]
        %v465 = vld [vmem:[#allocation2 + $0x120] sm:$0xff]
        %v466 = vld [vmem:[#allocation2 + $0x128] sm:$0xff]
        %v467 = vld [vmem:[#allocation2 + $0x138] sm:$0xff]
        %v468 = vld [vmem:[#allocation2 + $0x140] sm:$0xff]
        %v469 = vld [vmem:[#allocation2 + $0x150] sm:$0xff]
        %v470 = vld [vmem:[#allocation2 + $0x158] sm:$0xff]
        %v471 = vld [vmem:[#allocation2 + $0x168] sm:$0xff]
        %v472 = vld [vmem:[#allocation2 + $0x170] sm:$0xff]
        %v473 = vld [vmem:[#allocation2 + $0x1] sm:$0xff]
        %v474 = vld [vmem:[#allocation2 + $0x9] sm:$0xff]
        %v475 = vld [vmem:[#allocation2 + $0x19] sm:$0xff]
        %v476 = vld [vmem:[#allocation2 + $0x21] sm:$0xff]
        %v477 = vld [vmem:[#allocation2 + $0x31] sm:$0xff]
        %v478 = vld [vmem:[#allocation2 + $0x39] sm:$0xff]
        %v479 = vld [vmem:[#allocation2 + $0x49] sm:$0xff]
        %v480 = vld [vmem:[#allocation2 + $0x51] sm:$0xff]
        %v481 = vld [vmem:[#allocation2 + $0x61] sm:$0xff]
        %v482 = vld [vmem:[#allocation2 + $0x69] sm:$0xff]
        %v483 = vld [vmem:[#allocation2 + $0x79] sm:$0xff]
        %v484 = vld [vmem:[#allocation2 + $0x81] sm:$0xff]
        %v485 = vld [vmem:[#allocation2 + $0x91] sm:$0xff]
        %v486 = vld [vmem:[#allocation2 + $0x99] sm:$0xff]
        %v487 = vld [vmem:[#allocation2 + $0xa9] sm:$0xff]
        %v488 = vld [vmem:[#allocation2 + $0xb1] sm:$0xff]
        %v489 = vld [vmem:[#allocation2 + $0xc1] sm:$0xff]
        %v490 = vld [vmem:[#allocation2 + $0xc9] sm:$0xff]
        %v491 = vld [vmem:[#allocation2 + $0xd9] sm:$0xff]
        %v492 = vld [vmem:[#allocation2 + $0xe1] sm:$0xff]
        %v493 = vld [vmem:[#allocation2 + $0xf1] sm:$0xff]
        %v494 = vld [vmem:[#allocation2 + $0xf9] sm:$0xff]
        %v495 = vld [vmem:[#allocation2 + $0x109] sm:$0xff]
        %v496 = vld [vmem:[#allocation2 + $0x111] sm:$0xff]
        %v497 = vld [vmem:[#allocation2 + $0x121] sm:$0xff]
        %v498 = vld [vmem:[#allocation2 + $0x129] sm:$0xff]
        %v499 = vld [vmem:[#allocation2 + $0x139] sm:$0xff]
        %v500 = vld [vmem:[#allocation2 + $0x141] sm:$0xff]
        %v501 = vld [vmem:[#allocation2 + $0x151] sm:$0xff]
        %v502 = vld [vmem:[#allocation2 + $0x159] sm:$0xff]
        %v503 = vld [vmem:[#allocation2 + $0x169] sm:$0xff]
        %v504 = vld [vmem:[#allocation2 + $0x171] sm:$0xff]
        %v505 = vld [vmem:[#allocation2 + $0x2] sm:$0xff]
        %v506 = vld [vmem:[#allocation2 + $0xa] sm:$0xff]
        %v507 = vld [vmem:[#allocation2 + $0x1a] sm:$0xff]
        %v508 = vld [vmem:[#allocation2 + $0x22] sm:$0xff]
        %v509 = vld [vmem:[#allocation2 + $0x32] sm:$0xff]
        %v510 = vld [vmem:[#allocation2 + $0x3a] sm:$0xff]
        %v511 = vld [vmem:[#allocation2 + $0x4a] sm:$0xff]
        %v512 = vld [vmem:[#allocation2 + $0x52] sm:$0xff]
        %v513 = vld [vmem:[#allocation2 + $0x62] sm:$0xff]
        %v514 = vld [vmem:[#allocation2 + $0x6a] sm:$0xff]
        %v515 = vld [vmem:[#allocation2 + $0x7a] sm:$0xff]
        %v516 = vld [vmem:[#allocation2 + $0x82] sm:$0xff]
        %v517 = vld [vmem:[#allocation2 + $0x92] sm:$0xff]
        %v518 = vld [vmem:[#allocation2 + $0x9a] sm:$0xff]
        %v519 = vld [vmem:[#allocation2 + $0xaa] sm:$0xff]
        %v520 = vld [vmem:[#allocation2 + $0xb2] sm:$0xff]
        %v521 = vld [vmem:[#allocation2 + $0xc2] sm:$0xff]
        %v522 = vld [vmem:[#allocation2 + $0xca] sm:$0xff]
        %v523 = vld [vmem:[#allocation2 + $0xda] sm:$0xff]
        %v524 = vld [vmem:[#allocation2 + $0xe2] sm:$0xff]
        %v525 = vld [vmem:[#allocation2 + $0xf2] sm:$0xff]
        %v526 = vld [vmem:[#allocation2 + $0xfa] sm:$0xff]
        %v527 = vld [vmem:[#allocation2 + $0x10a] sm:$0xff]
        %v528 = vld [vmem:[#allocation2 + $0x112] sm:$0xff]
        %v529 = vld [vmem:[#allocation2 + $0x122] sm:$0xff]
        %v530 = vld [vmem:[#allocation2 + $0x12a] sm:$0xff]
        %v531 = vld [vmem:[#allocation2 + $0x13a] sm:$0xff]
        %v532 = vld [vmem:[#allocation2 + $0x142] sm:$0xff]
        %v533 = vld [vmem:[#allocation2 + $0x152] sm:$0xff]
        %v534 = vld [vmem:[#allocation2 + $0x15a] sm:$0xff]
        %v535 = vld [vmem:[#allocation2 + $0x16a] sm:$0xff]
        %v536 = vld [vmem:[#allocation2 + $0x172] sm:$0xff]
        %v537 = vld [vmem:[%s408] sm:$0xff]
        %v538 = vld [vmem:[%s408 + $0x8] sm:$0xff]
        %v539 = vld [vmem:[%s408 + $0x18] sm:$0xff]
        %v540 = vld [vmem:[%s408 + $0x20] sm:$0xff]
        %v541 = vld [vmem:[%s408 + $0x30] sm:$0xff]
        %v542 = vld [vmem:[%s408 + $0x38] sm:$0xff]
        %v543 = vld [vmem:[%s408 + $0x48] sm:$0xff]
        %v544 = vld [vmem:[%s408 + $0x50] sm:$0xff]
        %v545 = vld [vmem:[%s408 + $0x60] sm:$0xff]
        %v546 = vld [vmem:[%s408 + $0x68] sm:$0xff]
        %v547 = vld [vmem:[%s408 + $0x78] sm:$0xff]
        %v548 = vld [vmem:[%s408 + $0x80] sm:$0xff]
        %v549 = vld [vmem:[%s408 + $0x90] sm:$0xff]
        %v550 = vld [vmem:[%s408 + $0x98] sm:$0xff]
        %v551 = vld [vmem:[%s408 + $0xa8] sm:$0xff]
        %v552 = vld [vmem:[%s408 + $0xb0] sm:$0xff]
        %v553 = vld [vmem:[%s408 + $0xc0] sm:$0xff]
        %v554 = vld [vmem:[%s408 + $0xc8] sm:$0xff]
        %v555 = vld [vmem:[%s408 + $0xd8] sm:$0xff]
        %v556 = vld [vmem:[%s408 + $0xe0] sm:$0xff]
        %v557 = vld [vmem:[%s408 + $0xf0] sm:$0xff]
        %v558 = vld [vmem:[%s408 + $0xf8] sm:$0xff]
        %v559 = vld [vmem:[%s408 + $0x108] sm:$0xff]
        %v560 = vld [vmem:[%s408 + $0x110] sm:$0xff]
        %v561 = vld [vmem:[%s408 + $0x120] sm:$0xff]
        %v562 = vld [vmem:[%s408 + $0x128] sm:$0xff]
        %v563 = vld [vmem:[%s408 + $0x138] sm:$0xff]
        %v564 = vld [vmem:[%s408 + $0x140] sm:$0xff]
        %v565 = vld [vmem:[%s408 + $0x150] sm:$0xff]
        %v566 = vld [vmem:[%s408 + $0x158] sm:$0xff]
        %v567 = vld [vmem:[%s408 + $0x168] sm:$0xff]
        %v568 = vld [vmem:[%s408 + $0x170] sm:$0xff]
        %v569 = vld [vmem:[%s408 + $0x1] sm:$0xff]
        %v570 = vld [vmem:[%s408 + $0x9] sm:$0xff]
        %v571 = vld [vmem:[%s408 + $0x19] sm:$0xff]
        %v572 = vld [vmem:[%s408 + $0x21] sm:$0xff]
        %v573 = vld [vmem:[%s408 + $0x31] sm:$0xff]
        %v574 = vld [vmem:[%s408 + $0x39] sm:$0xff]
        %v575 = vld [vmem:[%s408 + $0x49] sm:$0xff]
        %v576 = vld [vmem:[%s408 + $0x51] sm:$0xff]
        %v577 = vld [vmem:[%s408 + $0x61] sm:$0xff]
        %v578 = vld [vmem:[%s408 + $0x69] sm:$0xff]
        %v579 = vld [vmem:[%s408 + $0x79] sm:$0xff]
        %v580 = vld [vmem:[%s408 + $0x81] sm:$0xff]
        %v581 = vld [vmem:[%s408 + $0x91] sm:$0xff]
        %v582 = vld [vmem:[%s408 + $0x99] sm:$0xff]
        %v583 = vld [vmem:[%s408 + $0xa9] sm:$0xff]
        %v584 = vld [vmem:[%s408 + $0xb1] sm:$0xff]
        %v585 = vld [vmem:[%s408 + $0xc1] sm:$0xff]
        %v586 = vld [vmem:[%s408 + $0xc9] sm:$0xff]
        %v587 = vld [vmem:[%s408 + $0xd9] sm:$0xff]
        %v588 = vld [vmem:[%s408 + $0xe1] sm:$0xff]
        %v589 = vld [vmem:[%s408 + $0xf1] sm:$0xff]
        %v590 = vld [vmem:[%s408 + $0xf9] sm:$0xff]
        %v591 = vld [vmem:[%s408 + $0x109] sm:$0xff]
        %v592 = vld [vmem:[%s408 + $0x111] sm:$0xff]
        %v593 = vld [vmem:[%s408 + $0x121] sm:$0xff]
        %v594 = vld [vmem:[%s408 + $0x129] sm:$0xff]
        %v595 = vld [vmem:[%s408 + $0x139] sm:$0xff]
        %v596 = vld [vmem:[%s408 + $0x141] sm:$0xff]
        %v597 = vld [vmem:[%s408 + $0x151] sm:$0xff]
        %v598 = vld [vmem:[%s408 + $0x159] sm:$0xff]
        %v599 = vld [vmem:[%s408 + $0x169] sm:$0xff]
        %v600 = vld [vmem:[%s408 + $0x171] sm:$0xff]
        %v601 = vld [vmem:[%s408 + $0x2] sm:$0xff]
        %v602 = vld [vmem:[%s408 + $0xa] sm:$0xff]
        %v603 = vld [vmem:[%s408 + $0x1a] sm:$0xff]
        %v604 = vld [vmem:[%s408 + $0x22] sm:$0xff]
        %v605 = vld [vmem:[%s408 + $0x32] sm:$0xff]
        %v606 = vld [vmem:[%s408 + $0x3a] sm:$0xff]
        %v607 = vld [vmem:[%s408 + $0x4a] sm:$0xff]
        %v608 = vld [vmem:[%s408 + $0x52] sm:$0xff]
        %v609 = vld [vmem:[%s408 + $0x62] sm:$0xff]
        %v610 = vld [vmem:[%s408 + $0x6a] sm:$0xff]
        %v611 = vld [vmem:[%s408 + $0x7a] sm:$0xff]
        %v612 = vld [vmem:[%s408 + $0x82] sm:$0xff]
        %v613 = vld [vmem:[%s408 + $0x92] sm:$0xff]
        %v614 = vld [vmem:[%s408 + $0x9a] sm:$0xff]
        %v615 = vld [vmem:[%s408 + $0xaa] sm:$0xff]
        %v616 = vld [vmem:[%s408 + $0xb2] sm:$0xff]
        %v617 = vld [vmem:[%s408 + $0xc2] sm:$0xff]
        %v618 = vld [vmem:[%s408 + $0xca] sm:$0xff]
        %v619 = vld [vmem:[%s408 + $0xda] sm:$0xff]
        %v620 = vld [vmem:[%s408 + $0xe2] sm:$0xff]
        %v621 = vld [vmem:[%s408 + $0xf2] sm:$0xff]
        %v622 = vld [vmem:[%s408 + $0xfa] sm:$0xff]
        %v623 = vld [vmem:[%s408 + $0x10a] sm:$0xff]
        %v624 = vld [vmem:[%s408 + $0x112] sm:$0xff]
        %v625 = vld [vmem:[%s408 + $0x122] sm:$0xff]
        %v626 = vld [vmem:[%s408 + $0x12a] sm:$0xff]
        %v627 = vld [vmem:[%s408 + $0x13a] sm:$0xff]
        %v628 = vld [vmem:[%s408 + $0x142] sm:$0xff]
        %v629 = vld [vmem:[%s408 + $0x152] sm:$0xff]
        %v630 = vld [vmem:[%s408 + $0x15a] sm:$0xff]
        %v631 = vld [vmem:[%s408 + $0x16a] sm:$0xff]
        %v632 = vld [vmem:[%s408 + $0x172] sm:$0xff]
        %s633 = scalar_lea.vmem [#allocation2], 48
        %v634 = vld [vmem:[%s633] sm:$0xff]
        %v635 = vld [vmem:[%s633 + $0x8] sm:$0xff]
        %v636 = vld [vmem:[%s633 + $0x18] sm:$0xff]
        %v637 = vld [vmem:[%s633 + $0x20] sm:$0xff]
        %v638 = vld [vmem:[%s633 + $0x30] sm:$0xff]
        %v639 = vld [vmem:[%s633 + $0x38] sm:$0xff]
        %v640 = vld [vmem:[%s633 + $0x48] sm:$0xff]
        %v641 = vld [vmem:[%s633 + $0x50] sm:$0xff]
        %v642 = vld [vmem:[%s633 + $0x60] sm:$0xff]
        %v643 = vld [vmem:[%s633 + $0x68] sm:$0xff]
        %v644 = vld [vmem:[%s633 + $0x78] sm:$0xff]
        %v645 = vld [vmem:[%s633 + $0x80] sm:$0xff]
        %v646 = vld [vmem:[%s633 + $0x90] sm:$0xff]
        %v647 = vld [vmem:[%s633 + $0x98] sm:$0xff]
        %v648 = vld [vmem:[%s633 + $0xa8] sm:$0xff]
        %v649 = vld [vmem:[%s633 + $0xb0] sm:$0xff]
        %v650 = vld [vmem:[%s633 + $0xc0] sm:$0xff]
        %v651 = vld [vmem:[%s633 + $0xc8] sm:$0xff]
        %v652 = vld [vmem:[%s633 + $0xd8] sm:$0xff]
        %v653 = vld [vmem:[%s633 + $0xe0] sm:$0xff]
        %v654 = vld [vmem:[%s633 + $0xf0] sm:$0xff]
        %v655 = vld [vmem:[%s633 + $0xf8] sm:$0xff]
        %v656 = vld [vmem:[%s633 + $0x108] sm:$0xff]
        %v657 = vld [vmem:[%s633 + $0x110] sm:$0xff]
        %v658 = vld [vmem:[%s633 + $0x120] sm:$0xff]
        %v659 = vld [vmem:[%s633 + $0x128] sm:$0xff]
        %v660 = vld [vmem:[%s633 + $0x138] sm:$0xff]
        %v661 = vld [vmem:[%s633 + $0x140] sm:$0xff]
        %v662 = vld [vmem:[%s633 + $0x150] sm:$0xff]
        %v663 = vld [vmem:[%s633 + $0x158] sm:$0xff]
        %v664 = vld [vmem:[%s633 + $0x168] sm:$0xff]
        %v665 = vld [vmem:[%s633 + $0x170] sm:$0xff]
        %v666 = vld [vmem:[%s633 + $0x1] sm:$0xff]
        %v667 = vld [vmem:[%s633 + $0x9] sm:$0xff]
        %v668 = vld [vmem:[%s633 + $0x19] sm:$0xff]
        %v669 = vld [vmem:[%s633 + $0x21] sm:$0xff]
        %v670 = vld [vmem:[%s633 + $0x31] sm:$0xff]
        %v671 = vld [vmem:[%s633 + $0x39] sm:$0xff]
        %v672 = vld [vmem:[%s633 + $0x49] sm:$0xff]
        %v673 = vld [vmem:[%s633 + $0x51] sm:$0xff]
        %v674 = vld [vmem:[%s633 + $0x61] sm:$0xff]
        %v675 = vld [vmem:[%s633 + $0x69] sm:$0xff]
        %v676 = vld [vmem:[%s633 + $0x79] sm:$0xff]
        %v677 = vld [vmem:[%s633 + $0x81] sm:$0xff]
        %v678 = vld [vmem:[%s633 + $0x91] sm:$0xff]
        %v679 = vld [vmem:[%s633 + $0x99] sm:$0xff]
        %v680 = vld [vmem:[%s633 + $0xa9] sm:$0xff]
        %v681 = vld [vmem:[%s633 + $0xb1] sm:$0xff]
        %v682 = vld [vmem:[%s633 + $0xc1] sm:$0xff]
        %v683 = vld [vmem:[%s633 + $0xc9] sm:$0xff]
        %v684 = vld [vmem:[%s633 + $0xd9] sm:$0xff]
        %v685 = vld [vmem:[%s633 + $0xe1] sm:$0xff]
        %v686 = vld [vmem:[%s633 + $0xf1] sm:$0xff]
        %v687 = vld [vmem:[%s633 + $0xf9] sm:$0xff]
        %v688 = vld [vmem:[%s633 + $0x109] sm:$0xff]
        %v689 = vld [vmem:[%s633 + $0x111] sm:$0xff]
        %v690 = vld [vmem:[%s633 + $0x121] sm:$0xff]
        %v691 = vld [vmem:[%s633 + $0x129] sm:$0xff]
        %v692 = vld [vmem:[%s633 + $0x139] sm:$0xff]
        %v693 = vld [vmem:[%s633 + $0x141] sm:$0xff]
        %v694 = vld [vmem:[%s633 + $0x151] sm:$0xff]
        %v695 = vld [vmem:[%s633 + $0x159] sm:$0xff]
        %v696 = vld [vmem:[%s633 + $0x169] sm:$0xff]
        %v697 = vld [vmem:[%s633 + $0x171] sm:$0xff]
        %v698 = vld [vmem:[%s633 + $0x2] sm:$0xff]
        %v699 = vld [vmem:[%s633 + $0xa] sm:$0xff]
        %v700 = vld [vmem:[%s633 + $0x1a] sm:$0xff]
        %v701 = vld [vmem:[%s633 + $0x22] sm:$0xff]
        %v702 = vld [vmem:[%s633 + $0x32] sm:$0xff]
        %v703 = vld [vmem:[%s633 + $0x3a] sm:$0xff]
        %v704 = vld [vmem:[%s633 + $0x4a] sm:$0xff]
        %v705 = vld [vmem:[%s633 + $0x52] sm:$0xff]
        %v706 = vld [vmem:[%s633 + $0x62] sm:$0xff]
        %v707 = vld [vmem:[%s633 + $0x6a] sm:$0xff]
        %v708 = vld [vmem:[%s633 + $0x7a] sm:$0xff]
        %v709 = vld [vmem:[%s633 + $0x82] sm:$0xff]
        %v710 = vld [vmem:[%s633 + $0x92] sm:$0xff]
        %v711 = vld [vmem:[%s633 + $0x9a] sm:$0xff]
        %v712 = vld [vmem:[%s633 + $0xaa] sm:$0xff]
        %v713 = vld [vmem:[%s633 + $0xb2] sm:$0xff]
        %v714 = vld [vmem:[%s633 + $0xc2] sm:$0xff]
        %v715 = vld [vmem:[%s633 + $0xca] sm:$0xff]
        %v716 = vld [vmem:[%s633 + $0xda] sm:$0xff]
        %v717 = vld [vmem:[%s633 + $0xe2] sm:$0xff]
        %v718 = vld [vmem:[%s633 + $0xf2] sm:$0xff]
        %v719 = vld [vmem:[%s633 + $0xfa] sm:$0xff]
        %v720 = vld [vmem:[%s633 + $0x10a] sm:$0xff]
        %v721 = vld [vmem:[%s633 + $0x112] sm:$0xff]
        %v722 = vld [vmem:[%s633 + $0x122] sm:$0xff]
        %v723 = vld [vmem:[%s633 + $0x12a] sm:$0xff]
        %v724 = vld [vmem:[%s633 + $0x13a] sm:$0xff]
        %v725 = vld [vmem:[%s633 + $0x142] sm:$0xff]
        %v726 = vld [vmem:[%s633 + $0x152] sm:$0xff]
        %v727 = vld [vmem:[%s633 + $0x15a] sm:$0xff]
        %v728 = vld [vmem:[%s633 + $0x16a] sm:$0xff]
        %v729 = vld [vmem:[%s633 + $0x172] sm:$0xff]
        %762 = vrot.lane.b32.xlu0 %v473, 4
        %v763 = vpop.permute.xlu0 %762
        %764 = vrot.lane.b32.xlu0 %v474, 4
        %v765 = vpop.permute.xlu0 %764
        %766 = vrot.lane.b32.xlu0 %v475, 4
        %v767 = vpop.permute.xlu0 %766
        %768 = vrot.lane.b32.xlu0 %v476, 4
        %v769 = vpop.permute.xlu0 %768
        %770 = vrot.lane.b32.xlu0 %v477, 4
        %v771 = vpop.permute.xlu0 %770
        %772 = vrot.lane.b32.xlu0 %v478, 4
        %v773 = vpop.permute.xlu0 %772
        %774 = vrot.lane.b32.xlu0 %v479, 4
        %v775 = vpop.permute.xlu0 %774
        %776 = vrot.lane.b32.xlu0 %v480, 4
        %v777 = vpop.permute.xlu0 %776
        %778 = vrot.lane.b32.xlu0 %v481, 4
        %v779 = vpop.permute.xlu0 %778
        %780 = vrot.lane.b32.xlu0 %v482, 4
        %v781 = vpop.permute.xlu0 %780
        %782 = vrot.lane.b32.xlu0 %v483, 4
        %v783 = vpop.permute.xlu0 %782
        %784 = vrot.lane.b32.xlu0 %v484, 4
        %v785 = vpop.permute.xlu0 %784
        %786 = vrot.lane.b32.xlu0 %v485, 4
        %v787 = vpop.permute.xlu0 %786
        %788 = vrot.lane.b32.xlu0 %v486, 4
        %v789 = vpop.permute.xlu0 %788
        %790 = vrot.lane.b32.xlu0 %v487, 4
        %v791 = vpop.permute.xlu0 %790
        %792 = vrot.lane.b32.xlu0 %v488, 4
        %v793 = vpop.permute.xlu0 %792
        %794 = vrot.lane.b32.xlu0 %v489, 4
        %v795 = vpop.permute.xlu0 %794
        %796 = vrot.lane.b32.xlu0 %v490, 4
        %v797 = vpop.permute.xlu0 %796
        %798 = vrot.lane.b32.xlu0 %v491, 4
        %v799 = vpop.permute.xlu0 %798
        %800 = vrot.lane.b32.xlu0 %v492, 4
        %v801 = vpop.permute.xlu0 %800
        %802 = vrot.lane.b32.xlu0 %v493, 4
        %v803 = vpop.permute.xlu0 %802
        %804 = vrot.lane.b32.xlu0 %v494, 4
        %v805 = vpop.permute.xlu0 %804
        %806 = vrot.lane.b32.xlu0 %v495, 4
        %v807 = vpop.permute.xlu0 %806
        %808 = vrot.lane.b32.xlu0 %v496, 4
        %v809 = vpop.permute.xlu0 %808
        %810 = vrot.lane.b32.xlu0 %v497, 4
        %v811 = vpop.permute.xlu0 %810
        %812 = vrot.lane.b32.xlu0 %v498, 4
        %v813 = vpop.permute.xlu0 %812
        %814 = vrot.lane.b32.xlu0 %v499, 4
        %v815 = vpop.permute.xlu0 %814
        %816 = vrot.lane.b32.xlu0 %v500, 4
        %v817 = vpop.permute.xlu0 %816
        %818 = vrot.lane.b32.xlu0 %v501, 4
        %v819 = vpop.permute.xlu0 %818
        %820 = vrot.lane.b32.xlu0 %v502, 4
        %v821 = vpop.permute.xlu0 %820
        %822 = vrot.lane.b32.xlu0 %v503, 4
        %v823 = vpop.permute.xlu0 %822
        %824 = vrot.lane.b32.xlu0 %v504, 4
        %v825 = vpop.permute.xlu0 %824
        %890 = vrot.lane.b32.xlu0 %v505, 8
        %v891 = vpop.permute.xlu0 %890
        %892 = vrot.lane.b32.xlu0 %v506, 8
        %v893 = vpop.permute.xlu0 %892
        %894 = vrot.lane.b32.xlu0 %v507, 8
        %v895 = vpop.permute.xlu0 %894
        %896 = vrot.lane.b32.xlu0 %v508, 8
        %v897 = vpop.permute.xlu0 %896
        %898 = vrot.lane.b32.xlu0 %v509, 8
        %v899 = vpop.permute.xlu0 %898
        %900 = vrot.lane.b32.xlu0 %v510, 8
        %v901 = vpop.permute.xlu0 %900
        %902 = vrot.lane.b32.xlu0 %v511, 8
        %v903 = vpop.permute.xlu0 %902
        %904 = vrot.lane.b32.xlu0 %v512, 8
        %v905 = vpop.permute.xlu0 %904
        %906 = vrot.lane.b32.xlu0 %v513, 8
        %v907 = vpop.permute.xlu0 %906
        %908 = vrot.lane.b32.xlu0 %v514, 8
        %v909 = vpop.permute.xlu0 %908
        %910 = vrot.lane.b32.xlu0 %v515, 8
        %v911 = vpop.permute.xlu0 %910
        %912 = vrot.lane.b32.xlu0 %v516, 8
        %v913 = vpop.permute.xlu0 %912
        %914 = vrot.lane.b32.xlu0 %v517, 8
        %v915 = vpop.permute.xlu0 %914
        %916 = vrot.lane.b32.xlu0 %v518, 8
        %v917 = vpop.permute.xlu0 %916
        %918 = vrot.lane.b32.xlu0 %v519, 8
        %v919 = vpop.permute.xlu0 %918
        %920 = vrot.lane.b32.xlu0 %v520, 8
        %v921 = vpop.permute.xlu0 %920
        %922 = vrot.lane.b32.xlu0 %v521, 8
        %v923 = vpop.permute.xlu0 %922
        %924 = vrot.lane.b32.xlu0 %v522, 8
        %v925 = vpop.permute.xlu0 %924
        %926 = vrot.lane.b32.xlu0 %v523, 8
        %v927 = vpop.permute.xlu0 %926
        %928 = vrot.lane.b32.xlu0 %v524, 8
        %v929 = vpop.permute.xlu0 %928
        %930 = vrot.lane.b32.xlu0 %v525, 8
        %v931 = vpop.permute.xlu0 %930
        %932 = vrot.lane.b32.xlu0 %v526, 8
        %v933 = vpop.permute.xlu0 %932
        %934 = vrot.lane.b32.xlu0 %v527, 8
        %v935 = vpop.permute.xlu0 %934
        %936 = vrot.lane.b32.xlu0 %v528, 8
        %v937 = vpop.permute.xlu0 %936
        %938 = vrot.lane.b32.xlu0 %v529, 8
        %v939 = vpop.permute.xlu0 %938
        %940 = vrot.lane.b32.xlu0 %v530, 8
        %v941 = vpop.permute.xlu0 %940
        %942 = vrot.lane.b32.xlu0 %v531, 8
        %v943 = vpop.permute.xlu0 %942
        %944 = vrot.lane.b32.xlu0 %v532, 8
        %v945 = vpop.permute.xlu0 %944
        %946 = vrot.lane.b32.xlu0 %v533, 8
        %v947 = vpop.permute.xlu0 %946
        %948 = vrot.lane.b32.xlu0 %v534, 8
        %v949 = vpop.permute.xlu0 %948
        %950 = vrot.lane.b32.xlu0 %v535, 8
        %v951 = vpop.permute.xlu0 %950
        %952 = vrot.lane.b32.xlu0 %v536, 8
        %v953 = vpop.permute.xlu0 %952
        %1018 = vrot.lane.b32.xlu0 %v537, 12
        %v1019 = vpop.permute.xlu0 %1018
        %1020 = vrot.lane.b32.xlu0 %v538, 12
        %v1021 = vpop.permute.xlu0 %1020
        %1022 = vrot.lane.b32.xlu0 %v539, 12
        %v1023 = vpop.permute.xlu0 %1022
        %1024 = vrot.lane.b32.xlu0 %v540, 12
        %v1025 = vpop.permute.xlu0 %1024
        %1026 = vrot.lane.b32.xlu0 %v541, 12
        %v1027 = vpop.permute.xlu0 %1026
        %1028 = vrot.lane.b32.xlu0 %v542, 12
        %v1029 = vpop.permute.xlu0 %1028
        %1030 = vrot.lane.b32.xlu0 %v543, 12
        %v1031 = vpop.permute.xlu0 %1030
        %1032 = vrot.lane.b32.xlu0 %v544, 12
        %v1033 = vpop.permute.xlu0 %1032
        %1034 = vrot.lane.b32.xlu0 %v545, 12
        %v1035 = vpop.permute.xlu0 %1034
        %1036 = vrot.lane.b32.xlu0 %v546, 12
        %v1037 = vpop.permute.xlu0 %1036
        %1038 = vrot.lane.b32.xlu0 %v547, 12
        %v1039 = vpop.permute.xlu0 %1038
        %1040 = vrot.lane.b32.xlu0 %v548, 12
        %v1041 = vpop.permute.xlu0 %1040
        %1042 = vrot.lane.b32.xlu0 %v549, 12
        %v1043 = vpop.permute.xlu0 %1042
        %1044 = vrot.lane.b32.xlu0 %v550, 12
        %v1045 = vpop.permute.xlu0 %1044
        %1046 = vrot.lane.b32.xlu0 %v551, 12
        %v1047 = vpop.permute.xlu0 %1046
        %1048 = vrot.lane.b32.xlu0 %v552, 12
        %v1049 = vpop.permute.xlu0 %1048
        %1050 = vrot.lane.b32.xlu0 %v553, 12
        %v1051 = vpop.permute.xlu0 %1050
        %1052 = vrot.lane.b32.xlu0 %v554, 12
        %v1053 = vpop.permute.xlu0 %1052
        %1054 = vrot.lane.b32.xlu0 %v555, 12
        %v1055 = vpop.permute.xlu0 %1054
        %1056 = vrot.lane.b32.xlu0 %v556, 12
        %v1057 = vpop.permute.xlu0 %1056
        %1058 = vrot.lane.b32.xlu0 %v557, 12
        %v1059 = vpop.permute.xlu0 %1058
        %1060 = vrot.lane.b32.xlu0 %v558, 12
        %v1061 = vpop.permute.xlu0 %1060
        %1062 = vrot.lane.b32.xlu0 %v559, 12
        %v1063 = vpop.permute.xlu0 %1062
        %1064 = vrot.lane.b32.xlu0 %v560, 12
        %v1065 = vpop.permute.xlu0 %1064
        %1066 = vrot.lane.b32.xlu0 %v561, 12
        %v1067 = vpop.permute.xlu0 %1066
        %1068 = vrot.lane.b32.xlu0 %v562, 12
        %v1069 = vpop.permute.xlu0 %1068
        %1070 = vrot.lane.b32.xlu0 %v563, 12
        %v1071 = vpop.permute.xlu0 %1070
        %1072 = vrot.lane.b32.xlu0 %v564, 12
        %v1073 = vpop.permute.xlu0 %1072
        %1074 = vrot.lane.b32.xlu0 %v565, 12
        %v1075 = vpop.permute.xlu0 %1074
        %1076 = vrot.lane.b32.xlu0 %v566, 12
        %v1077 = vpop.permute.xlu0 %1076
        %1078 = vrot.lane.b32.xlu0 %v567, 12
        %v1079 = vpop.permute.xlu0 %1078
        %1080 = vrot.lane.b32.xlu0 %v568, 12
        %v1081 = vpop.permute.xlu0 %1080
        %1146 = vrot.lane.b32.xlu0 %v569, 16
        %v1147 = vpop.permute.xlu0 %1146
        %1148 = vrot.lane.b32.xlu0 %v570, 16
        %v1149 = vpop.permute.xlu0 %1148
        %1150 = vrot.lane.b32.xlu0 %v571, 16
        %v1151 = vpop.permute.xlu0 %1150
        %1152 = vrot.lane.b32.xlu0 %v572, 16
        %v1153 = vpop.permute.xlu0 %1152
        %1154 = vrot.lane.b32.xlu0 %v573, 16
        %v1155 = vpop.permute.xlu0 %1154
        %1156 = vrot.lane.b32.xlu0 %v574, 16
        %v1157 = vpop.permute.xlu0 %1156
        %1158 = vrot.lane.b32.xlu0 %v575, 16
        %v1159 = vpop.permute.xlu0 %1158
        %1160 = vrot.lane.b32.xlu0 %v576, 16
        %v1161 = vpop.permute.xlu0 %1160
        %1162 = vrot.lane.b32.xlu0 %v577, 16
        %v1163 = vpop.permute.xlu0 %1162
        %1164 = vrot.lane.b32.xlu0 %v578, 16
        %v1165 = vpop.permute.xlu0 %1164
        %1166 = vrot.lane.b32.xlu0 %v579, 16
        %v1167 = vpop.permute.xlu0 %1166
        %1168 = vrot.lane.b32.xlu0 %v580, 16
        %v1169 = vpop.permute.xlu0 %1168
        %1170 = vrot.lane.b32.xlu0 %v581, 16
        %v1171 = vpop.permute.xlu0 %1170
        %1172 = vrot.lane.b32.xlu0 %v582, 16
        %v1173 = vpop.permute.xlu0 %1172
        %1174 = vrot.lane.b32.xlu0 %v583, 16
        %v1175 = vpop.permute.xlu0 %1174
        %1176 = vrot.lane.b32.xlu0 %v584, 16
        %v1177 = vpop.permute.xlu0 %1176
        %1178 = vrot.lane.b32.xlu0 %v585, 16
        %v1179 = vpop.permute.xlu0 %1178
        %1180 = vrot.lane.b32.xlu0 %v586, 16
        %v1181 = vpop.permute.xlu0 %1180
        %1182 = vrot.lane.b32.xlu0 %v587, 16
        %v1183 = vpop.permute.xlu0 %1182
        %1184 = vrot.lane.b32.xlu0 %v588, 16
        %v1185 = vpop.permute.xlu0 %1184
        %1186 = vrot.lane.b32.xlu0 %v589, 16
        %v1187 = vpop.permute.xlu0 %1186
        %1188 = vrot.lane.b32.xlu0 %v590, 16
        %v1189 = vpop.permute.xlu0 %1188
        %1190 = vrot.lane.b32.xlu0 %v591, 16
        %v1191 = vpop.permute.xlu0 %1190
        %1192 = vrot.lane.b32.xlu0 %v592, 16
        %v1193 = vpop.permute.xlu0 %1192
        %1194 = vrot.lane.b32.xlu0 %v593, 16
        %v1195 = vpop.permute.xlu0 %1194
        %1196 = vrot.lane.b32.xlu0 %v594, 16
        %v1197 = vpop.permute.xlu0 %1196
        %1198 = vrot.lane.b32.xlu0 %v595, 16
        %v1199 = vpop.permute.xlu0 %1198
        %1200 = vrot.lane.b32.xlu0 %v596, 16
        %v1201 = vpop.permute.xlu0 %1200
        %1202 = vrot.lane.b32.xlu0 %v597, 16
        %v1203 = vpop.permute.xlu0 %1202
        %1204 = vrot.lane.b32.xlu0 %v598, 16
        %v1205 = vpop.permute.xlu0 %1204
        %1206 = vrot.lane.b32.xlu0 %v599, 16
        %v1207 = vpop.permute.xlu0 %1206
        %1208 = vrot.lane.b32.xlu0 %v600, 16
        %v1209 = vpop.permute.xlu0 %1208
        %1274 = vrot.lane.b32.xlu0 %v601, 20
        %v1275 = vpop.permute.xlu0 %1274
        %1276 = vrot.lane.b32.xlu0 %v602, 20
        %v1277 = vpop.permute.xlu0 %1276
        %1278 = vrot.lane.b32.xlu0 %v603, 20
        %v1279 = vpop.permute.xlu0 %1278
        %1280 = vrot.lane.b32.xlu0 %v604, 20
        %v1281 = vpop.permute.xlu0 %1280
        %1282 = vrot.lane.b32.xlu0 %v605, 20
        %v1283 = vpop.permute.xlu0 %1282
        %1284 = vrot.lane.b32.xlu0 %v606, 20
        %v1285 = vpop.permute.xlu0 %1284
        %1286 = vrot.lane.b32.xlu0 %v607, 20
        %v1287 = vpop.permute.xlu0 %1286
        %1288 = vrot.lane.b32.xlu0 %v608, 20
        %v1289 = vpop.permute.xlu0 %1288
        %1290 = vrot.lane.b32.xlu0 %v609, 20
        %v1291 = vpop.permute.xlu0 %1290
        %1292 = vrot.lane.b32.xlu0 %v610, 20
        %v1293 = vpop.permute.xlu0 %1292
        %1294 = vrot.lane.b32.xlu0 %v611, 20
        %v1295 = vpop.permute.xlu0 %1294
        %1296 = vrot.lane.b32.xlu0 %v612, 20
        %v1297 = vpop.permute.xlu0 %1296
        %1298 = vrot.lane.b32.xlu0 %v613, 20
        %v1299 = vpop.permute.xlu0 %1298
        %1300 = vrot.lane.b32.xlu0 %v614, 20
        %v1301 = vpop.permute.xlu0 %1300
        %1302 = vrot.lane.b32.xlu0 %v615, 20
        %v1303 = vpop.permute.xlu0 %1302
        %1304 = vrot.lane.b32.xlu0 %v616, 20
        %v1305 = vpop.permute.xlu0 %1304
        %1306 = vrot.lane.b32.xlu0 %v617, 20
        %v1307 = vpop.permute.xlu0 %1306
        %1308 = vrot.lane.b32.xlu0 %v618, 20
        %v1309 = vpop.permute.xlu0 %1308
        %1310 = vrot.lane.b32.xlu0 %v619, 20
        %v1311 = vpop.permute.xlu0 %1310
        %1312 = vrot.lane.b32.xlu0 %v620, 20
        %v1313 = vpop.permute.xlu0 %1312
        %1314 = vrot.lane.b32.xlu0 %v621, 20
        %v1315 = vpop.permute.xlu0 %1314
        %1316 = vrot.lane.b32.xlu0 %v622, 20
        %v1317 = vpop.permute.xlu0 %1316
        %1318 = vrot.lane.b32.xlu0 %v623, 20
        %v1319 = vpop.permute.xlu0 %1318
        %1320 = vrot.lane.b32.xlu0 %v624, 20
        %v1321 = vpop.permute.xlu0 %1320
        %1322 = vrot.lane.b32.xlu0 %v625, 20
        %v1323 = vpop.permute.xlu0 %1322
        %1324 = vrot.lane.b32.xlu0 %v626, 20
        %v1325 = vpop.permute.xlu0 %1324
        %1326 = vrot.lane.b32.xlu0 %v627, 20
        %v1327 = vpop.permute.xlu0 %1326
        %1328 = vrot.lane.b32.xlu0 %v628, 20
        %v1329 = vpop.permute.xlu0 %1328
        %1330 = vrot.lane.b32.xlu0 %v629, 20
        %v1331 = vpop.permute.xlu0 %1330
        %1332 = vrot.lane.b32.xlu0 %v630, 20
        %v1333 = vpop.permute.xlu0 %1332
        %1334 = vrot.lane.b32.xlu0 %v631, 20
        %v1335 = vpop.permute.xlu0 %1334
        %1336 = vrot.lane.b32.xlu0 %v632, 20
        %v1337 = vpop.permute.xlu0 %1336
        %1402 = vrot.lane.b32.xlu0 %v634, 24
        %v1403 = vpop.permute.xlu0 %1402
        %1404 = vrot.lane.b32.xlu0 %v635, 24
        %v1405 = vpop.permute.xlu0 %1404
        %1406 = vrot.lane.b32.xlu0 %v636, 24
        %v1407 = vpop.permute.xlu0 %1406
        %1408 = vrot.lane.b32.xlu0 %v637, 24
        %v1409 = vpop.permute.xlu0 %1408
        %1410 = vrot.lane.b32.xlu0 %v638, 24
        %v1411 = vpop.permute.xlu0 %1410
        %1412 = vrot.lane.b32.xlu0 %v639, 24
        %v1413 = vpop.permute.xlu0 %1412
        %1414 = vrot.lane.b32.xlu0 %v640, 24
        %v1415 = vpop.permute.xlu0 %1414
        %1416 = vrot.lane.b32.xlu0 %v641, 24
        %v1417 = vpop.permute.xlu0 %1416
        %1418 = vrot.lane.b32.xlu0 %v642, 24
        %v1419 = vpop.permute.xlu0 %1418
        %1420 = vrot.lane.b32.xlu0 %v643, 24
        %v1421 = vpop.permute.xlu0 %1420
        %1422 = vrot.lane.b32.xlu0 %v644, 24
        %v1423 = vpop.permute.xlu0 %1422
        %1424 = vrot.lane.b32.xlu0 %v645, 24
        %v1425 = vpop.permute.xlu0 %1424
        %1426 = vrot.lane.b32.xlu0 %v646, 24
        %v1427 = vpop.permute.xlu0 %1426
        %1428 = vrot.lane.b32.xlu0 %v647, 24
        %v1429 = vpop.permute.xlu0 %1428
        %1430 = vrot.lane.b32.xlu0 %v648, 24
        %v1431 = vpop.permute.xlu0 %1430
        %1432 = vrot.lane.b32.xlu0 %v649, 24
        %v1433 = vpop.permute.xlu0 %1432
        %1434 = vrot.lane.b32.xlu0 %v650, 24
        %v1435 = vpop.permute.xlu0 %1434
        %1436 = vrot.lane.b32.xlu0 %v651, 24
        %v1437 = vpop.permute.xlu0 %1436
        %1438 = vrot.lane.b32.xlu0 %v652, 24
        %v1439 = vpop.permute.xlu0 %1438
        %1440 = vrot.lane.b32.xlu0 %v653, 24
        %v1441 = vpop.permute.xlu0 %1440
        %1442 = vrot.lane.b32.xlu0 %v654, 24
        %v1443 = vpop.permute.xlu0 %1442
        %1444 = vrot.lane.b32.xlu0 %v655, 24
        %v1445 = vpop.permute.xlu0 %1444
        %1446 = vrot.lane.b32.xlu0 %v656, 24
        %v1447 = vpop.permute.xlu0 %1446
        %1448 = vrot.lane.b32.xlu0 %v657, 24
        %v1449 = vpop.permute.xlu0 %1448
        %1450 = vrot.lane.b32.xlu0 %v658, 24
        %v1451 = vpop.permute.xlu0 %1450
        %1452 = vrot.lane.b32.xlu0 %v659, 24
        %v1453 = vpop.permute.xlu0 %1452
        %1454 = vrot.lane.b32.xlu0 %v660, 24
        %v1455 = vpop.permute.xlu0 %1454
        %1456 = vrot.lane.b32.xlu0 %v661, 24
        %v1457 = vpop.permute.xlu0 %1456
        %1458 = vrot.lane.b32.xlu0 %v662, 24
        %v1459 = vpop.permute.xlu0 %1458
        %1460 = vrot.lane.b32.xlu0 %v663, 24
        %v1461 = vpop.permute.xlu0 %1460
        %1462 = vrot.lane.b32.xlu0 %v664, 24
        %v1463 = vpop.permute.xlu0 %1462
        %1464 = vrot.lane.b32.xlu0 %v665, 24
        %v1465 = vpop.permute.xlu0 %1464
        %1530 = vrot.lane.b32.xlu0 %v666, 28
        %v1531 = vpop.permute.xlu0 %1530
        %1532 = vrot.lane.b32.xlu0 %v667, 28
        %v1533 = vpop.permute.xlu0 %1532
        %1534 = vrot.lane.b32.xlu0 %v668, 28
        %v1535 = vpop.permute.xlu0 %1534
        %1536 = vrot.lane.b32.xlu0 %v669, 28
        %v1537 = vpop.permute.xlu0 %1536
        %1538 = vrot.lane.b32.xlu0 %v670, 28
        %v1539 = vpop.permute.xlu0 %1538
        %1540 = vrot.lane.b32.xlu0 %v671, 28
        %v1541 = vpop.permute.xlu0 %1540
        %1542 = vrot.lane.b32.xlu0 %v672, 28
        %v1543 = vpop.permute.xlu0 %1542
        %1544 = vrot.lane.b32.xlu0 %v673, 28
        %v1545 = vpop.permute.xlu0 %1544
        %1546 = vrot.lane.b32.xlu0 %v674, 28
        %v1547 = vpop.permute.xlu0 %1546
        %1548 = vrot.lane.b32.xlu0 %v675, 28
        %v1549 = vpop.permute.xlu0 %1548
        %1550 = vrot.lane.b32.xlu0 %v676, 28
        %v1551 = vpop.permute.xlu0 %1550
        %1552 = vrot.lane.b32.xlu0 %v677, 28
        %v1553 = vpop.permute.xlu0 %1552
        %1554 = vrot.lane.b32.xlu0 %v678, 28
        %v1555 = vpop.permute.xlu0 %1554
        %1556 = vrot.lane.b32.xlu0 %v679, 28
        %v1557 = vpop.permute.xlu0 %1556
        %1558 = vrot.lane.b32.xlu0 %v680, 28
        %v1559 = vpop.permute.xlu0 %1558
        %1560 = vrot.lane.b32.xlu0 %v681, 28
        %v1561 = vpop.permute.xlu0 %1560
        %1562 = vrot.lane.b32.xlu0 %v682, 28
        %v1563 = vpop.permute.xlu0 %1562
        %1564 = vrot.lane.b32.xlu0 %v683, 28
        %v1565 = vpop.permute.xlu0 %1564
        %1566 = vrot.lane.b32.xlu0 %v684, 28
        %v1567 = vpop.permute.xlu0 %1566
        %1568 = vrot.lane.b32.xlu0 %v685, 28
        %v1569 = vpop.permute.xlu0 %1568
        %1570 = vrot.lane.b32.xlu0 %v686, 28
        %v1571 = vpop.permute.xlu0 %1570
        %1572 = vrot.lane.b32.xlu0 %v687, 28
        %v1573 = vpop.permute.xlu0 %1572
        %1574 = vrot.lane.b32.xlu0 %v688, 28
        %v1575 = vpop.permute.xlu0 %1574
        %1576 = vrot.lane.b32.xlu0 %v689, 28
        %v1577 = vpop.permute.xlu0 %1576
        %1578 = vrot.lane.b32.xlu0 %v690, 28
        %v1579 = vpop.permute.xlu0 %1578
        %1580 = vrot.lane.b32.xlu0 %v691, 28
        %v1581 = vpop.permute.xlu0 %1580
        %1582 = vrot.lane.b32.xlu0 %v692, 28
        %v1583 = vpop.permute.xlu0 %1582
        %1584 = vrot.lane.b32.xlu0 %v693, 28
        %v1585 = vpop.permute.xlu0 %1584
        %1586 = vrot.lane.b32.xlu0 %v694, 28
        %v1587 = vpop.permute.xlu0 %1586
        %1588 = vrot.lane.b32.xlu0 %v695, 28
        %v1589 = vpop.permute.xlu0 %1588
        %1590 = vrot.lane.b32.xlu0 %v696, 28
        %v1591 = vpop.permute.xlu0 %1590
        %1592 = vrot.lane.b32.xlu0 %v697, 28
        %v1593 = vpop.permute.xlu0 %1592
        %1658 = vrot.lane.b32.xlu0 %v698, 32
        %v1659 = vpop.permute.xlu0 %1658
        %1660 = vrot.lane.b32.xlu0 %v699, 32
        %v1661 = vpop.permute.xlu0 %1660
        %1662 = vrot.lane.b32.xlu0 %v700, 32
        %v1663 = vpop.permute.xlu0 %1662
        %1664 = vrot.lane.b32.xlu0 %v701, 32
        %v1665 = vpop.permute.xlu0 %1664
        %1666 = vrot.lane.b32.xlu0 %v702, 32
        %v1667 = vpop.permute.xlu0 %1666
        %1668 = vrot.lane.b32.xlu0 %v703, 32
        %v1669 = vpop.permute.xlu0 %1668
        %1670 = vrot.lane.b32.xlu0 %v704, 32
        %v1671 = vpop.permute.xlu0 %1670
        %1672 = vrot.lane.b32.xlu0 %v705, 32
        %v1673 = vpop.permute.xlu0 %1672
        %1674 = vrot.lane.b32.xlu0 %v706, 32
        %v1675 = vpop.permute.xlu0 %1674
        %1676 = vrot.lane.b32.xlu0 %v707, 32
        %v1677 = vpop.permute.xlu0 %1676
        %1678 = vrot.lane.b32.xlu0 %v708, 32
        %v1679 = vpop.permute.xlu0 %1678
        %1680 = vrot.lane.b32.xlu0 %v709, 32
        %v1681 = vpop.permute.xlu0 %1680
        %1682 = vrot.lane.b32.xlu0 %v710, 32
        %v1683 = vpop.permute.xlu0 %1682
        %1684 = vrot.lane.b32.xlu0 %v711, 32
        %v1685 = vpop.permute.xlu0 %1684
        %1686 = vrot.lane.b32.xlu0 %v712, 32
        %v1687 = vpop.permute.xlu0 %1686
        %1688 = vrot.lane.b32.xlu0 %v713, 32
        %v1689 = vpop.permute.xlu0 %1688
        %1690 = vrot.lane.b32.xlu0 %v714, 32
        %v1691 = vpop.permute.xlu0 %1690
        %1692 = vrot.lane.b32.xlu0 %v715, 32
        %v1693 = vpop.permute.xlu0 %1692
        %1694 = vrot.lane.b32.xlu0 %v716, 32
        %v1695 = vpop.permute.xlu0 %1694
        %1696 = vrot.lane.b32.xlu0 %v717, 32
        %v1697 = vpop.permute.xlu0 %1696
        %1698 = vrot.lane.b32.xlu0 %v718, 32
        %v1699 = vpop.permute.xlu0 %1698
        %1700 = vrot.lane.b32.xlu0 %v719, 32
        %v1701 = vpop.permute.xlu0 %1700
        %1702 = vrot.lane.b32.xlu0 %v720, 32
        %v1703 = vpop.permute.xlu0 %1702
        %1704 = vrot.lane.b32.xlu0 %v721, 32
        %v1705 = vpop.permute.xlu0 %1704
        %1706 = vrot.lane.b32.xlu0 %v722, 32
        %v1707 = vpop.permute.xlu0 %1706
        %1708 = vrot.lane.b32.xlu0 %v723, 32
        %v1709 = vpop.permute.xlu0 %1708
        %1710 = vrot.lane.b32.xlu0 %v724, 32
        %v1711 = vpop.permute.xlu0 %1710
        %1712 = vrot.lane.b32.xlu0 %v725, 32
        %v1713 = vpop.permute.xlu0 %1712
        %1714 = vrot.lane.b32.xlu0 %v726, 32
        %v1715 = vpop.permute.xlu0 %1714
        %1716 = vrot.lane.b32.xlu0 %v727, 32
        %v1717 = vpop.permute.xlu0 %1716
        %1718 = vrot.lane.b32.xlu0 %v728, 32
        %v1719 = vpop.permute.xlu0 %1718
        %1720 = vrot.lane.b32.xlu0 %v729, 32
        %v1721 = vpop.permute.xlu0 %1720
        %v1754 = vsel %vm330, %v441, %v763
        %v1755 = vsel %vm330, %v442, %v765
        %v1756 = vsel %vm330, %v443, %v767
        %v1757 = vsel %vm330, %v444, %v769
        %v1758 = vsel %vm330, %v445, %v771
        %v1759 = vsel %vm330, %v446, %v773
        %v1760 = vsel %vm330, %v447, %v775
        %v1761 = vsel %vm330, %v448, %v777
        %v1762 = vsel %vm330, %v449, %v779
        %v1763 = vsel %vm330, %v450, %v781
        %v1764 = vsel %vm330, %v451, %v783
        %v1765 = vsel %vm330, %v452, %v785
        %v1766 = vsel %vm330, %v453, %v787
        %v1767 = vsel %vm330, %v454, %v789
        %v1768 = vsel %vm330, %v455, %v791
        %v1769 = vsel %vm330, %v456, %v793
        %v1770 = vsel %vm330, %v457, %v795
        %v1771 = vsel %vm330, %v458, %v797
        %v1772 = vsel %vm330, %v459, %v799
        %v1773 = vsel %vm330, %v460, %v801
        %v1774 = vsel %vm330, %v461, %v803
        %v1775 = vsel %vm330, %v462, %v805
        %v1776 = vsel %vm330, %v463, %v807
        %v1777 = vsel %vm330, %v464, %v809
        %v1778 = vsel %vm330, %v465, %v811
        %v1779 = vsel %vm330, %v466, %v813
        %v1780 = vsel %vm330, %v467, %v815
        %v1781 = vsel %vm330, %v468, %v817
        %v1782 = vsel %vm330, %v469, %v819
        %v1783 = vsel %vm330, %v470, %v821
        %v1784 = vsel %vm330, %v471, %v823
        %v1785 = vsel %vm330, %v472, %v825
        %vm1786 = vcmask 64512
        %v1787 = vsel %vm1786, %v1754, %v891
        %v1788 = vsel %vm1786, %v1755, %v893
        %v1789 = vsel %vm1786, %v1756, %v895
        %v1790 = vsel %vm1786, %v1757, %v897
        %v1791 = vsel %vm1786, %v1758, %v899
        %v1792 = vsel %vm1786, %v1759, %v901
        %v1793 = vsel %vm1786, %v1760, %v903
        %v1794 = vsel %vm1786, %v1761, %v905
        %v1795 = vsel %vm1786, %v1762, %v907
        %v1796 = vsel %vm1786, %v1763, %v909
        %v1797 = vsel %vm1786, %v1764, %v911
        %v1798 = vsel %vm1786, %v1765, %v913
        %v1799 = vsel %vm1786, %v1766, %v915
        %v1800 = vsel %vm1786, %v1767, %v917
        %v1801 = vsel %vm1786, %v1768, %v919
        %v1802 = vsel %vm1786, %v1769, %v921
        %v1803 = vsel %vm1786, %v1770, %v923
        %v1804 = vsel %vm1786, %v1771, %v925
        %v1805 = vsel %vm1786, %v1772, %v927
        %v1806 = vsel %vm1786, %v1773, %v929
        %v1807 = vsel %vm1786, %v1774, %v931
        %v1808 = vsel %vm1786, %v1775, %v933
        %v1809 = vsel %vm1786, %v1776, %v935
        %v1810 = vsel %vm1786, %v1777, %v937
        %v1811 = vsel %vm1786, %v1778, %v939
        %v1812 = vsel %vm1786, %v1779, %v941
        %v1813 = vsel %vm1786, %v1780, %v943
        %v1814 = vsel %vm1786, %v1781, %v945
        %v1815 = vsel %vm1786, %v1782, %v947
        %v1816 = vsel %vm1786, %v1783, %v949
        %v1817 = vsel %vm1786, %v1784, %v951
        %v1818 = vsel %vm1786, %v1785, %v953
        %vm1819 = vcmask 97280
        %v1820 = vsel %vm1819, %v1787, %v1019
        %v1821 = vsel %vm1819, %v1788, %v1021
        %v1822 = vsel %vm1819, %v1789, %v1023
        %v1823 = vsel %vm1819, %v1790, %v1025
        %v1824 = vsel %vm1819, %v1791, %v1027
        %v1825 = vsel %vm1819, %v1792, %v1029
        %v1826 = vsel %vm1819, %v1793, %v1031
        %v1827 = vsel %vm1819, %v1794, %v1033
        %v1828 = vsel %vm1819, %v1795, %v1035
        %v1829 = vsel %vm1819, %v1796, %v1037
        %v1830 = vsel %vm1819, %v1797, %v1039
        %v1831 = vsel %vm1819, %v1798, %v1041
        %v1832 = vsel %vm1819, %v1799, %v1043
        %v1833 = vsel %vm1819, %v1800, %v1045
        %v1834 = vsel %vm1819, %v1801, %v1047
        %v1835 = vsel %vm1819, %v1802, %v1049
        %v1836 = vsel %vm1819, %v1803, %v1051
        %v1837 = vsel %vm1819, %v1804, %v1053
        %v1838 = vsel %vm1819, %v1805, %v1055
        %v1839 = vsel %vm1819, %v1806, %v1057
        %v1840 = vsel %vm1819, %v1807, %v1059
        %v1841 = vsel %vm1819, %v1808, %v1061
        %v1842 = vsel %vm1819, %v1809, %v1063
        %v1843 = vsel %vm1819, %v1810, %v1065
        %v1844 = vsel %vm1819, %v1811, %v1067
        %v1845 = vsel %vm1819, %v1812, %v1069
        %v1846 = vsel %vm1819, %v1813, %v1071
        %v1847 = vsel %vm1819, %v1814, %v1073
        %v1848 = vsel %vm1819, %v1815, %v1075
        %v1849 = vsel %vm1819, %v1816, %v1077
        %v1850 = vsel %vm1819, %v1817, %v1079
        %v1851 = vsel %vm1819, %v1818, %v1081
        %vm1852 = vcmask 130048
        %v1853 = vsel %vm1852, %v1820, %v1147
        %v1854 = vsel %vm1852, %v1821, %v1149
        %v1855 = vsel %vm1852, %v1822, %v1151
        %v1856 = vsel %vm1852, %v1823, %v1153
        %v1857 = vsel %vm1852, %v1824, %v1155
        %v1858 = vsel %vm1852, %v1825, %v1157
        %v1859 = vsel %vm1852, %v1826, %v1159
        %v1860 = vsel %vm1852, %v1827, %v1161
        %v1861 = vsel %vm1852, %v1828, %v1163
        %v1862 = vsel %vm1852, %v1829, %v1165
        %v1863 = vsel %vm1852, %v1830, %v1167
        %v1864 = vsel %vm1852, %v1831, %v1169
        %v1865 = vsel %vm1852, %v1832, %v1171
        %v1866 = vsel %vm1852, %v1833, %v1173
        %v1867 = vsel %vm1852, %v1834, %v1175
        %v1868 = vsel %vm1852, %v1835, %v1177
        %v1869 = vsel %vm1852, %v1836, %v1179
        %v1870 = vsel %vm1852, %v1837, %v1181
        %v1871 = vsel %vm1852, %v1838, %v1183
        %v1872 = vsel %vm1852, %v1839, %v1185
        %v1873 = vsel %vm1852, %v1840, %v1187
        %v1874 = vsel %vm1852, %v1841, %v1189
        %v1875 = vsel %vm1852, %v1842, %v1191
        %v1876 = vsel %vm1852, %v1843, %v1193
        %v1877 = vsel %vm1852, %v1844, %v1195
        %v1878 = vsel %vm1852, %v1845, %v1197
        %v1879 = vsel %vm1852, %v1846, %v1199
        %v1880 = vsel %vm1852, %v1847, %v1201
        %v1881 = vsel %vm1852, %v1848, %v1203
        %v1882 = vsel %vm1852, %v1849, %v1205
        %v1883 = vsel %vm1852, %v1850, %v1207
        %v1884 = vsel %vm1852, %v1851, %v1209
        %vm1885 = vcmask 162816
        %v1886 = vsel %vm1885, %v1853, %v1275
        %v1887 = vsel %vm1885, %v1854, %v1277
        %v1888 = vsel %vm1885, %v1855, %v1279
        %v1889 = vsel %vm1885, %v1856, %v1281
        %v1890 = vsel %vm1885, %v1857, %v1283
        %v1891 = vsel %vm1885, %v1858, %v1285
        %v1892 = vsel %vm1885, %v1859, %v1287
        %v1893 = vsel %vm1885, %v1860, %v1289
        %v1894 = vsel %vm1885, %v1861, %v1291
        %v1895 = vsel %vm1885, %v1862, %v1293
        %v1896 = vsel %vm1885, %v1863, %v1295
        %v1897 = vsel %vm1885, %v1864, %v1297
        %v1898 = vsel %vm1885, %v1865, %v1299
        %v1899 = vsel %vm1885, %v1866, %v1301
        %v1900 = vsel %vm1885, %v1867, %v1303
        %v1901 = vsel %vm1885, %v1868, %v1305
        %v1902 = vsel %vm1885, %v1869, %v1307
        %v1903 = vsel %vm1885, %v1870, %v1309
        %v1904 = vsel %vm1885, %v1871, %v1311
        %v1905 = vsel %vm1885, %v1872, %v1313
        %v1906 = vsel %vm1885, %v1873, %v1315
        %v1907 = vsel %vm1885, %v1874, %v1317
        %v1908 = vsel %vm1885, %v1875, %v1319
        %v1909 = vsel %vm1885, %v1876, %v1321
        %v1910 = vsel %vm1885, %v1877, %v1323
        %v1911 = vsel %vm1885, %v1878, %v1325
        %v1912 = vsel %vm1885, %v1879, %v1327
        %v1913 = vsel %vm1885, %v1880, %v1329
        %v1914 = vsel %vm1885, %v1881, %v1331
        %v1915 = vsel %vm1885, %v1882, %v1333
        %v1916 = vsel %vm1885, %v1883, %v1335
        %v1917 = vsel %vm1885, %v1884, %v1337
        %vm1918 = vcmask 195584
        %v1919 = vsel %vm1918, %v1886, %v1403
        %v1920 = vsel %vm1918, %v1887, %v1405
        %v1921 = vsel %vm1918, %v1888, %v1407
        %v1922 = vsel %vm1918, %v1889, %v1409
        %v1923 = vsel %vm1918, %v1890, %v1411
        %v1924 = vsel %vm1918, %v1891, %v1413
        %v1925 = vsel %vm1918, %v1892, %v1415
        %v1926 = vsel %vm1918, %v1893, %v1417
        %v1927 = vsel %vm1918, %v1894, %v1419
        %v1928 = vsel %vm1918, %v1895, %v1421
        %v1929 = vsel %vm1918, %v1896, %v1423
        %v1930 = vsel %vm1918, %v1897, %v1425
        %v1931 = vsel %vm1918, %v1898, %v1427
        %v1932 = vsel %vm1918, %v1899, %v1429
        %v1933 = vsel %vm1918, %v1900, %v1431
        %v1934 = vsel %vm1918, %v1901, %v1433
        %v1935 = vsel %vm1918, %v1902, %v1435
        %v1936 = vsel %vm1918, %v1903, %v1437
        %v1937 = vsel %vm1918, %v1904, %v1439
        %v1938 = vsel %vm1918, %v1905, %v1441
        %v1939 = vsel %vm1918, %v1906, %v1443
        %v1940 = vsel %vm1918, %v1907, %v1445
        %v1941 = vsel %vm1918, %v1908, %v1447
        %v1942 = vsel %vm1918, %v1909, %v1449
        %v1943 = vsel %vm1918, %v1910, %v1451
        %v1944 = vsel %vm1918, %v1911, %v1453
        %v1945 = vsel %vm1918, %v1912, %v1455
        %v1946 = vsel %vm1918, %v1913, %v1457
        %v1947 = vsel %vm1918, %v1914, %v1459
        %v1948 = vsel %vm1918, %v1915, %v1461
        %v1949 = vsel %vm1918, %v1916, %v1463
        %v1950 = vsel %vm1918, %v1917, %v1465
        %vm1951 = vcmask 228352
        %v1952 = vsel %vm1951, %v1919, %v1531
        %v1953 = vsel %vm1951, %v1920, %v1533
        %v1954 = vsel %vm1951, %v1921, %v1535
        %v1955 = vsel %vm1951, %v1922, %v1537
        %v1956 = vsel %vm1951, %v1923, %v1539
        %v1957 = vsel %vm1951, %v1924, %v1541
        %v1958 = vsel %vm1951, %v1925, %v1543
        %v1959 = vsel %vm1951, %v1926, %v1545
        %v1960 = vsel %vm1951, %v1927, %v1547
        %v1961 = vsel %vm1951, %v1928, %v1549
        %v1962 = vsel %vm1951, %v1929, %v1551
        %v1963 = vsel %vm1951, %v1930, %v1553
        %v1964 = vsel %vm1951, %v1931, %v1555
        %v1965 = vsel %vm1951, %v1932, %v1557
        %v1966 = vsel %vm1951, %v1933, %v1559
        %v1967 = vsel %vm1951, %v1934, %v1561
        %v1968 = vsel %vm1951, %v1935, %v1563
        %v1969 = vsel %vm1951, %v1936, %v1565
        %v1970 = vsel %vm1951, %v1937, %v1567
        %v1971 = vsel %vm1951, %v1938, %v1569
        %v1972 = vsel %vm1951, %v1939, %v1571
        %v1973 = vsel %vm1951, %v1940, %v1573
        %v1974 = vsel %vm1951, %v1941, %v1575
        %v1975 = vsel %vm1951, %v1942, %v1577
        %v1976 = vsel %vm1951, %v1943, %v1579
        %v1977 = vsel %vm1951, %v1944, %v1581
        %v1978 = vsel %vm1951, %v1945, %v1583
        %v1979 = vsel %vm1951, %v1946, %v1585
        %v1980 = vsel %vm1951, %v1947, %v1587
        %v1981 = vsel %vm1951, %v1948, %v1589
        %v1982 = vsel %vm1951, %v1949, %v1591
        %v1983 = vsel %vm1951, %v1950, %v1593
        %vm1984 = vcmask 261120
        %v1985 = vsel %vm1984, %v1952, %v1659
        %v1986 = vsel %vm1984, %v1953, %v1661
        %v1987 = vsel %vm1984, %v1954, %v1663
        %v1988 = vsel %vm1984, %v1955, %v1665
        %v1989 = vsel %vm1984, %v1956, %v1667
        %v1990 = vsel %vm1984, %v1957, %v1669
        %v1991 = vsel %vm1984, %v1958, %v1671
        %v1992 = vsel %vm1984, %v1959, %v1673
        %v1993 = vsel %vm1984, %v1960, %v1675
        %v1994 = vsel %vm1984, %v1961, %v1677
        %v1995 = vsel %vm1984, %v1962, %v1679
        %v1996 = vsel %vm1984, %v1963, %v1681
        %v1997 = vsel %vm1984, %v1964, %v1683
        %v1998 = vsel %vm1984, %v1965, %v1685
        %v1999 = vsel %vm1984, %v1966, %v1687
        %v2000 = vsel %vm1984, %v1967, %v1689
        %v2001 = vsel %vm1984, %v1968, %v1691
        %v2002 = vsel %vm1984, %v1969, %v1693
        %v2003 = vsel %vm1984, %v1970, %v1695
        %v2004 = vsel %vm1984, %v1971, %v1697
        %v2005 = vsel %vm1984, %v1972, %v1699
        %v2006 = vsel %vm1984, %v1973, %v1701
        %v2007 = vsel %vm1984, %v1974, %v1703
        %v2008 = vsel %vm1984, %v1975, %v1705
        %v2009 = vsel %vm1984, %v1976, %v1707
        %v2010 = vsel %vm1984, %v1977, %v1709
        %v2011 = vsel %vm1984, %v1978, %v1711
        %v2012 = vsel %vm1984, %v1979, %v1713
        %v2013 = vsel %vm1984, %v1980, %v1715
        %v2014 = vsel %vm1984, %v1981, %v1717
        %v2015 = vsel %vm1984, %v1982, %v1719
        %v2016 = vsel %vm1984, %v1983, %v1721
        %v2017 = vld [vmem:[%s1] sm:$0xff]
        %v2018 = vld [vmem:[%s1 + $0x8] sm:$0xff]
        %v2019 = vld [vmem:[%s1 + $0x10] sm:$0xff]
        %v2020 = vld [vmem:[%s1 + $0x18] sm:$0xff]
        %v2021 = vld [vmem:[%s1 + $0x20] sm:$0xf]
        %v2022 = vld [vmem:[%s2] sm:$0x1]
        %v2024 = vlaneseq
        %v2025 = vshrl.u32 %v2024, 7
        %v2026 = vsub.s32 0, %v2025
        %v2027 = vrot.slane %v2022, %v2026
        %vm2029 = vcmask 293888
        %v2031 = vsel %vm2029, %v1985, 0
        %v2034 = vsel %vm2029, %v1986, 0
        %v2037 = vsel %vm2029, %v1987, 0
        %v2040 = vsel %vm2029, %v1988, 0
        %v2043 = vsel %vm2029, %v1989, 0
        %v2046 = vsel %vm2029, %v1990, 0
        %v2049 = vsel %vm2029, %v1991, 0
        %v2052 = vsel %vm2029, %v1992, 0
        %v2055 = vsel %vm2029, %v1993, 0
        %v2058 = vsel %vm2029, %v1994, 0
        %v2061 = vsel %vm2029, %v1995, 0
        %v2064 = vsel %vm2029, %v1996, 0
        %v2067 = vsel %vm2029, %v1997, 0
        %v2070 = vsel %vm2029, %v1998, 0
        %v2073 = vsel %vm2029, %v1999, 0
        %v2076 = vsel %vm2029, %v2000, 0
        %v2079 = vsel %vm2029, %v2001, 0
        %v2082 = vsel %vm2029, %v2002, 0
        %v2085 = vsel %vm2029, %v2003, 0
        %v2088 = vsel %vm2029, %v2004, 0
        %v2091 = vsel %vm2029, %v2005, 0
        %v2094 = vsel %vm2029, %v2006, 0
        %v2097 = vsel %vm2029, %v2007, 0
        %v2100 = vsel %vm2029, %v2008, 0
        %v2103 = vsel %vm2029, %v2009, 0
        %v2106 = vsel %vm2029, %v2010, 0
        %v2109 = vsel %vm2029, %v2011, 0
        %v2112 = vsel %vm2029, %v2012, 0
        %v2115 = vsel %vm2029, %v2013, 0
        %v2118 = vsel %vm2029, %v2014, 0
        %v2121 = vsel %vm2029, %v2015, 0
        %v2124 = vsel %vm2029, %v2016, 0
        %vm2126 = vcmask 1043456
        %v2128 = vsel %vm2126, %v2021, 0
        %2130 = vmatprep.subr.mxu0 0.0
        %2131 = vmatpush1.msra.mxu0 %v2017
        %2132 = vmatprep.subr.mxu0 0.0
        %2133 = vmatpush1.msra.mxu0 %v2018
        %2134 = vmatprep.subr.mxu0 0.0
        %2135 = vmatpush1.msra.mxu0 %v2019
        %2136 = vmatprep.subr.mxu0 0.0
        %2137 = vmatpush1.msra.mxu0 %v2020
        %2138 = vmatprep.subr.mxu0 0.0
        %2139 = vmatpush1.msra.mxu0 %v2128
        %2140 = vmatprep.subr.mxu0 0.0
        %2141 = vmatpush1.msra.mxu0 0.0
        %2142 = vmatprep.subr.mxu0 0.0
        %2143 = vmatpush1.msra.mxu0 0.0
        %2144 = vmatprep.subr.mxu0 0.0
        %2145 = vmatpush1.msra.mxu0 0.0
        %2146 = vmatprep.subr.mxu0 0.0
        %2147 = vmatpush1.msra.mxu0 0.0
        %2148 = vmatprep.subr.mxu0 0.0
        %2149 = vmatpush1.msra.mxu0 0.0
        %2150 = vmatprep.subr.mxu0 0.0
        %2151 = vmatpush1.msra.mxu0 0.0
        %2152 = vmatprep.subr.mxu0 0.0
        %2153 = vmatpush1.msra.mxu0 0.0
        %2154 = vmatprep.subr.mxu0 0.0
        %2155 = vmatpush1.msra.mxu0 0.0
        %2156 = vmatprep.subr.mxu0 0.0
        %2157 = vmatpush1.msra.mxu0 0.0
        %2158 = vmatprep.subr.mxu0 0.0
        %2159 = vmatpush1.msra.mxu0 0.0
        %2160 = vmatprep.subr.mxu0 0.0
        %2161 = vmatpush1.msra.mxu0 0.0
        %2162 = vmatprep.subr.mxu0 0.0
        %2163 = vmatpush1.msra.mxu0 0.0
        %2164 = vmatprep.subr.mxu0 0.0
        %2165 = vmatpush1.msra.mxu0 0.0
        %2166 = vmatprep.subr.mxu0 0.0
        %2167 = vmatpush1.msra.mxu0 0.0
        %2168 = vmatprep.subr.mxu0 0.0
        %2169 = vmatpush1.msra.mxu0 0.0
        %2170 = vmatprep.subr.mxu0 0.0
        %2171 = vmatpush1.msra.mxu0 0.0
        %2172 = vmatprep.subr.mxu0 0.0
        %2173 = vmatpush1.msra.mxu0 0.0
        %2174 = vmatprep.subr.mxu0 0.0
        %2175 = vmatpush1.msra.mxu0 0.0
        %2176 = vmatprep.subr.mxu0 0.0
        %2177 = vmatpush1.msra.mxu0 0.0
        %2178 = vmatprep.subr.mxu0 0.0
        %2179 = vmatpush1.msra.mxu0 0.0
        %2180 = vmatprep.subr.mxu0 0.0
        %2181 = vmatpush1.msra.mxu0 0.0
        %2182 = vmatprep.subr.mxu0 0.0
        %2183 = vmatpush1.msra.mxu0 0.0
        %2184 = vmatprep.subr.mxu0 0.0
        %2185 = vmatpush1.msra.mxu0 0.0
        %2186 = vmatprep.subr.mxu0 0.0
        %2187 = vmatpush1.msra.mxu0 0.0
        %2188 = vmatprep.subr.mxu0 0.0
        %2189 = vmatpush1.msra.mxu0 0.0
        %2190 = vmatprep.subr.mxu0 0.0
        %2191 = vmatpush1.msra.mxu0 0.0
        %2192 = vmatprep.subr.mxu0 0.0
        %2193 = vmatpush1.msra.mxu0 0.0
        %2194 = vmatprep.mubr.f32.mxu0 0.0
        %2195 = vmatmul.mubr.f32.gmra.mrb[0].mxu0 %v2031
        %v2196 = vpop.f32.mrb[0].mxu0
        %v2197 = vadd.f32 %v2027, %v2196
        %v2198 = vpop.f32.mrb[0].mxu0
        %2199 = vmatprep.mubr.f32.mxu0 0.0
        %2200 = vmatmul.mubr.f32.gmra.mrb[0].mxu0 %v2034
        %v2201 = vpop.f32.mrb[0].mxu0
        %v2202 = vadd.f32 %v2027, %v2201
        %v2203 = vpop.f32.mrb[0].mxu0
        %2204 = vmatprep.mubr.f32.mxu0 0.0
        %2205 = vmatmul.mubr.f32.gmra.mrb[0].mxu0 %v2037
        %v2206 = vpop.f32.mrb[0].mxu0
        %v2207 = vadd.f32 %v2027, %v2206
        %v2208 = vpop.f32.mrb[0].mxu0
        %2209 = vmatprep.mubr.f32.mxu0 0.0
        %2210 = vmatmul.mubr.f32.gmra.mrb[0].mxu0 %v2040
        %v2211 = vpop.f32.mrb[0].mxu0
        %v2212 = vadd.f32 %v2027, %v2211
        %v2213 = vpop.f32.mrb[0].mxu0
        %2214 = vmatprep.mubr.f32.mxu0 0.0
        %2215 = vmatmul.mubr.f32.gmra.mrb[0].mxu0 %v2043
        %v2216 = vpop.f32.mrb[0].mxu0
        %v2217 = vadd.f32 %v2027, %v2216
        %v2218 = vpop.f32.mrb[0].mxu0
        %2219 = vmatprep.mubr.f32.mxu0 0.0
        %2220 = vmatmul.mubr.f32.gmra.mrb[0].mxu0 %v2046
        %v2221 = vpop.f32.mrb[0].mxu0
        %v2222 = vadd.f32 %v2027, %v2221
        %v2223 = vpop.f32.mrb[0].mxu0
        %2224 = vmatprep.mubr.f32.mxu0 0.0
        %2225 = vmatmul.mubr.f32.gmra.mrb[0].mxu0 %v2049
        %v2226 = vpop.f32.mrb[0].mxu0
        %v2227 = vadd.f32 %v2027, %v2226
        %v2228 = vpop.f32.mrb[0].mxu0
        %2229 = vmatprep.mubr.f32.mxu0 0.0
        %2230 = vmatmul.mubr.f32.gmra.mrb[0].mxu0 %v2052
        %v2231 = vpop.f32.mrb[0].mxu0
        %v2232 = vadd.f32 %v2027, %v2231
        %v2233 = vpop.f32.mrb[0].mxu0
        %2234 = vmatprep.mubr.f32.mxu0 0.0
        %2235 = vmatmul.mubr.f32.gmra.mrb[0].mxu0 %v2055
        %v2236 = vpop.f32.mrb[0].mxu0
        %v2237 = vadd.f32 %v2027, %v2236
        %v2238 = vpop.f32.mrb[0].mxu0
        %2239 = vmatprep.mubr.f32.mxu0 0.0
        %2240 = vmatmul.mubr.f32.gmra.mrb[0].mxu0 %v2058
        %v2241 = vpop.f32.mrb[0].mxu0
        %v2242 = vadd.f32 %v2027, %v2241
        %v2243 = vpop.f32.mrb[0].mxu0
        %2244 = vmatprep.mubr.f32.mxu0 0.0
        %2245 = vmatmul.mubr.f32.gmra.mrb[0].mxu0 %v2061
        %v2246 = vpop.f32.mrb[0].mxu0
        %v2247 = vadd.f32 %v2027, %v2246
        %v2248 = vpop.f32.mrb[0].mxu0
        %2249 = vmatprep.mubr.f32.mxu0 0.0
        %2250 = vmatmul.mubr.f32.gmra.mrb[0].mxu0 %v2064
        %v2251 = vpop.f32.mrb[0].mxu0
        %v2252 = vadd.f32 %v2027, %v2251
        %v2253 = vpop.f32.mrb[0].mxu0
        %2254 = vmatprep.mubr.f32.mxu0 0.0
        %2255 = vmatmul.mubr.f32.gmra.mrb[0].mxu0 %v2067
        %v2256 = vpop.f32.mrb[0].mxu0
        %v2257 = vadd.f32 %v2027, %v2256
        %v2258 = vpop.f32.mrb[0].mxu0
        %2259 = vmatprep.mubr.f32.mxu0 0.0
        %2260 = vmatmul.mubr.f32.gmra.mrb[0].mxu0 %v2070
        %v2261 = vpop.f32.mrb[0].mxu0
        %v2262 = vadd.f32 %v2027, %v2261
        %v2263 = vpop.f32.mrb[0].mxu0
        %2264 = vmatprep.mubr.f32.mxu0 0.0
        %2265 = vmatmul.mubr.f32.gmra.mrb[0].mxu0 %v2073
        %v2266 = vpop.f32.mrb[0].mxu0
        %v2267 = vadd.f32 %v2027, %v2266
        %v2268 = vpop.f32.mrb[0].mxu0
        %2269 = vmatprep.mubr.f32.mxu0 0.0
        %2270 = vmatmul.mubr.f32.gmra.mrb[0].mxu0 %v2076
        %v2271 = vpop.f32.mrb[0].mxu0
        %v2272 = vadd.f32 %v2027, %v2271
        %v2273 = vpop.f32.mrb[0].mxu0
        %2274 = vmatprep.mubr.f32.mxu0 0.0
        %2275 = vmatmul.mubr.f32.gmra.mrb[0].mxu0 %v2079
        %v2276 = vpop.f32.mrb[0].mxu0
        %v2277 = vadd.f32 %v2027, %v2276
        %v2278 = vpop.f32.mrb[0].mxu0
        %2279 = vmatprep.mubr.f32.mxu0 0.0
        %2280 = vmatmul.mubr.f32.gmra.mrb[0].mxu0 %v2082
        %v2281 = vpop.f32.mrb[0].mxu0
        %v2282 = vadd.f32 %v2027, %v2281
        %v2283 = vpop.f32.mrb[0].mxu0
        %2284 = vmatprep.mubr.f32.mxu0 0.0
        %2285 = vmatmul.mubr.f32.gmra.mrb[0].mxu0 %v2085
        %v2286 = vpop.f32.mrb[0].mxu0
        %v2287 = vadd.f32 %v2027, %v2286
        %v2288 = vpop.f32.mrb[0].mxu0
        %2289 = vmatprep.mubr.f32.mxu0 0.0
        %2290 = vmatmul.mubr.f32.gmra.mrb[0].mxu0 %v2088
        %v2291 = vpop.f32.mrb[0].mxu0
        %v2292 = vadd.f32 %v2027, %v2291
        %v2293 = vpop.f32.mrb[0].mxu0
        %2294 = vmatprep.mubr.f32.mxu0 0.0
        %2295 = vmatmul.mubr.f32.gmra.mrb[0].mxu0 %v2091
        %v2296 = vpop.f32.mrb[0].mxu0
        %v2297 = vadd.f32 %v2027, %v2296
        %v2298 = vpop.f32.mrb[0].mxu0
        %2299 = vmatprep.mubr.f32.mxu0 0.0
        %2300 = vmatmul.mubr.f32.gmra.mrb[0].mxu0 %v2094
        %v2301 = vpop.f32.mrb[0].mxu0
        %v2302 = vadd.f32 %v2027, %v2301
        %v2303 = vpop.f32.mrb[0].mxu0
        %2304 = vmatprep.mubr.f32.mxu0 0.0
        %2305 = vmatmul.mubr.f32.gmra.mrb[0].mxu0 %v2097
        %v2306 = vpop.f32.mrb[0].mxu0
        %v2307 = vadd.f32 %v2027, %v2306
        %v2308 = vpop.f32.mrb[0].mxu0
        %2309 = vmatprep.mubr.f32.mxu0 0.0
        %2310 = vmatmul.mubr.f32.gmra.mrb[0].mxu0 %v2100
        %v2311 = vpop.f32.mrb[0].mxu0
        %v2312 = vadd.f32 %v2027, %v2311
        %v2313 = vpop.f32.mrb[0].mxu0
        %2314 = vmatprep.mubr.f32.mxu0 0.0
        %2315 = vmatmul.mubr.f32.gmra.mrb[0].mxu0 %v2103
        %v2316 = vpop.f32.mrb[0].mxu0
        %v2317 = vadd.f32 %v2027, %v2316
        %v2318 = vpop.f32.mrb[0].mxu0
        %2319 = vmatprep.mubr.f32.mxu0 0.0
        %2320 = vmatmul.mubr.f32.gmra.mrb[0].mxu0 %v2106
        %v2321 = vpop.f32.mrb[0].mxu0
        %v2322 = vadd.f32 %v2027, %v2321
        %v2323 = vpop.f32.mrb[0].mxu0
        %2324 = vmatprep.mubr.f32.mxu0 0.0
        %2325 = vmatmul.mubr.f32.gmra.mrb[0].mxu0 %v2109
        %v2326 = vpop.f32.mrb[0].mxu0
        %v2327 = vadd.f32 %v2027, %v2326
        %v2328 = vpop.f32.mrb[0].mxu0
        %2329 = vmatprep.mubr.f32.mxu0 0.0
        %2330 = vmatmul.mubr.f32.gmra.mrb[0].mxu0 %v2112
        %v2331 = vpop.f32.mrb[0].mxu0
        %v2332 = vadd.f32 %v2027, %v2331
        %v2333 = vpop.f32.mrb[0].mxu0
        %2334 = vmatprep.mubr.f32.mxu0 0.0
        %2335 = vmatmul.mubr.f32.gmra.mrb[0].mxu0 %v2115
        %v2336 = vpop.f32.mrb[0].mxu0
        %v2337 = vadd.f32 %v2027, %v2336
        %v2338 = vpop.f32.mrb[0].mxu0
        %2339 = vmatprep.mubr.f32.mxu0 0.0
        %2340 = vmatmul.mubr.f32.gmra.mrb[0].mxu0 %v2118
        %v2341 = vpop.f32.mrb[0].mxu0
        %v2342 = vadd.f32 %v2027, %v2341
        %v2343 = vpop.f32.mrb[0].mxu0
        %2344 = vmatprep.mubr.f32.mxu0 0.0
        %2345 = vmatmul.mubr.f32.gmra.mrb[0].mxu0 %v2121
        %v2346 = vpop.f32.mrb[0].mxu0
        %v2347 = vadd.f32 %v2027, %v2346
        %v2348 = vpop.f32.mrb[0].mxu0
        %2349 = vmatprep.mubr.f32.mxu0 0.0
        %2350 = vmatmul.mubr.f32.gmra.mrb[0].mxu0 %v2124
        %v2351 = vpop.f32.mrb[0].mxu0
        %v2352 = vadd.f32 %v2027, %v2351
        %v2353 = vpop.f32.mrb[0].mxu0
        %2354 = vdwg.mxu0
        %v2355 = vmax.f32 %v2197, 0.0
        %v2356 = vmax.f32 %v2202, 0.0
        %v2357 = vmax.f32 %v2207, 0.0
        %v2358 = vmax.f32 %v2212, 0.0
        %v2359 = vmax.f32 %v2217, 0.0
        %v2360 = vmax.f32 %v2222, 0.0
        %v2361 = vmax.f32 %v2227, 0.0
        %v2362 = vmax.f32 %v2232, 0.0
        %v2363 = vmax.f32 %v2237, 0.0
        %v2364 = vmax.f32 %v2242, 0.0
        %v2365 = vmax.f32 %v2247, 0.0
        %v2366 = vmax.f32 %v2252, 0.0
        %v2367 = vmax.f32 %v2257, 0.0
        %v2368 = vmax.f32 %v2262, 0.0
        %v2369 = vmax.f32 %v2267, 0.0
        %v2370 = vmax.f32 %v2272, 0.0
        %v2371 = vmax.f32 %v2277, 0.0
        %v2372 = vmax.f32 %v2282, 0.0
        %v2373 = vmax.f32 %v2287, 0.0
        %v2374 = vmax.f32 %v2292, 0.0
        %v2375 = vmax.f32 %v2297, 0.0
        %v2376 = vmax.f32 %v2302, 0.0
        %v2377 = vmax.f32 %v2307, 0.0
        %v2378 = vmax.f32 %v2312, 0.0
        %v2379 = vmax.f32 %v2317, 0.0
        %v2380 = vmax.f32 %v2322, 0.0
        %v2381 = vmax.f32 %v2327, 0.0
        %v2382 = vmax.f32 %v2332, 0.0
        %v2383 = vmax.f32 %v2337, 0.0
        %v2384 = vmax.f32 %v2342, 0.0
        %v2385 = vmax.f32 %v2347, 0.0
        %v2386 = vmax.f32 %v2352, 0.0
        %v2387 = vmax.f32 %v2355, %v2357
        %v2388 = vmax.f32 %v2356, %v2358
        %v2389 = vmax.f32 %v2359, %v2361
        %v2390 = vmax.f32 %v2360, %v2362
        %v2391 = vmax.f32 %v2363, %v2365
        %v2392 = vmax.f32 %v2364, %v2366
        %v2393 = vmax.f32 %v2367, %v2369
        %v2394 = vmax.f32 %v2368, %v2370
        %v2395 = vmax.f32 %v2371, %v2373
        %v2396 = vmax.f32 %v2372, %v2374
        %v2397 = vmax.f32 %v2375, %v2377
        %v2398 = vmax.f32 %v2376, %v2378
        %v2399 = vmax.f32 %v2379, %v2381
        %v2400 = vmax.f32 %v2380, %v2382
        %v2401 = vmax.f32 %v2383, %v2385
        %v2402 = vmax.f32 %v2384, %v2386
        %2403 = vst.msk [vmem:[#allocation3] sm:$0xff] %vm1786, 0.0
        %vm2404 = vcmask 58368
        %2405 = vst.msk [vmem:[#allocation3 + $0x8] sm:$0x3] %vm2404, 0.0
        %s2406 = scalar_lea.vmem [#allocation3], 144
        %2407 = vst.msk [vmem:[%s2406] sm:$0xff] %vm1786, 0.0
        %2408 = vst.msk [vmem:[%s2406 + $0x8] sm:$0x3] %vm2404, 0.0
        %vm2409 = vcmask 57344
        %2410 = vst.msk [vmem:[#allocation3] sm:$0x1] %vm2409, 0.0
        %2411 = vst.msk [vmem:[#allocation3 + $0x10] sm:$0x1] %vm2409, 0.0
        %2412 = vst.msk [vmem:[#allocation3 + $0x20] sm:$0x1] %vm2409, 0.0
        %2413 = vst.msk [vmem:[#allocation3 + $0x30] sm:$0x1] %vm2409, 0.0
        %2414 = vst.msk [vmem:[#allocation3 + $0x40] sm:$0x1] %vm2409, 0.0
        %2415 = vst.msk [vmem:[#allocation3 + $0x50] sm:$0x1] %vm2409, 0.0
        %2416 = vst.msk [vmem:[#allocation3 + $0x60] sm:$0x1] %vm2409, 0.0
        %2417 = vst.msk [vmem:[#allocation3 + $0x70] sm:$0x1] %vm2409, 0.0
        %2418 = vst.msk [vmem:[#allocation3 + $0x80] sm:$0x1] %vm2409, 0.0
        %2419 = vst.msk [vmem:[#allocation3 + $0x90] sm:$0x1] %vm2409, 0.0
        %2420 = vst.msk [vmem:[#allocation3 + $0x9] sm:$0x1] %vm2409, 0.0
        %2421 = vst.msk [vmem:[#allocation3 + $0x19] sm:$0x1] %vm2409, 0.0
        %2422 = vst.msk [vmem:[#allocation3 + $0x29] sm:$0x1] %vm2409, 0.0
        %2423 = vst.msk [vmem:[#allocation3 + $0x39] sm:$0x1] %vm2409, 0.0
        %2424 = vst.msk [vmem:[#allocation3 + $0x49] sm:$0x1] %vm2409, 0.0
        %2425 = vst.msk [vmem:[#allocation3 + $0x59] sm:$0x1] %vm2409, 0.0
        %2426 = vst.msk [vmem:[#allocation3 + $0x69] sm:$0x1] %vm2409, 0.0
        %2427 = vst.msk [vmem:[#allocation3 + $0x79] sm:$0x1] %vm2409, 0.0
        %2428 = vst.msk [vmem:[#allocation3 + $0x89] sm:$0x1] %vm2409, 0.0
        %2429 = vst.msk [vmem:[#allocation3 + $0x99] sm:$0x1] %vm2409, 0.0
        %v2438 = vrot.slane %v2387, 1
        %v2439 = vrot.slane %v2389, 1
        %v2440 = vrot.slane %v2391, 1
        %v2441 = vrot.slane %v2393, 1
        %v2442 = vrot.slane %v2395, 1
        %v2443 = vrot.slane %v2397, 1
        %v2444 = vrot.slane %v2399, 1
        %v2445 = vrot.slane %v2401, 1
        %v2454 = vmax.f32 %v2387, %v2438
        %v2455 = vmax.f32 %v2389, %v2439
        %v2456 = vmax.f32 %v2391, %v2440
        %v2457 = vmax.f32 %v2393, %v2441
        %v2458 = vmax.f32 %v2395, %v2442
        %v2459 = vmax.f32 %v2397, %v2443
        %v2460 = vmax.f32 %v2399, %v2444
        %v2461 = vmax.f32 %v2401, %v2445
        %s2462 = scalar_lea.vmem [#allocation3], 16
        %2463 = vst.msk [vmem:[%s2462 + $0x1] sm:$0x1] %vm2409, %v2454
        %2464 = vst.msk [vmem:[%s2462 + $0x11] sm:$0x1] %vm2409, %v2455
        %2465 = vst.msk [vmem:[%s2462 + $0x21] sm:$0x1] %vm2409, %v2456
        %2466 = vst.msk [vmem:[%s2462 + $0x31] sm:$0x1] %vm2409, %v2457
        %2467 = vst.msk [vmem:[%s2462 + $0x41] sm:$0x1] %vm2409, %v2458
        %2468 = vst.msk [vmem:[%s2462 + $0x51] sm:$0x1] %vm2409, %v2459
        %2469 = vst.msk [vmem:[%s2462 + $0x61] sm:$0x1] %vm2409, %v2460
        %2470 = vst.msk [vmem:[%s2462 + $0x71] sm:$0x1] %vm2409, %v2461
        %vm2471 = vcmask 59394
        %2472 = vst.msk [vmem:[%s2462] sm:$0x4] %vm2471, %v2454
        %2473 = vst.msk [vmem:[%s2462 + $0x10] sm:$0x4] %vm2471, %v2455
        %2474 = vst.msk [vmem:[%s2462 + $0x20] sm:$0x4] %vm2471, %v2456
        %2475 = vst.msk [vmem:[%s2462 + $0x30] sm:$0x4] %vm2471, %v2457
        %2476 = vst.msk [vmem:[%s2462 + $0x40] sm:$0x4] %vm2471, %v2458
        %2477 = vst.msk [vmem:[%s2462 + $0x50] sm:$0x4] %vm2471, %v2459
        %2478 = vst.msk [vmem:[%s2462 + $0x60] sm:$0x4] %vm2471, %v2460
        %2479 = vst.msk [vmem:[%s2462 + $0x70] sm:$0x4] %vm2471, %v2461
        %vm2480 = vcmask 61444
        %2481 = vst.msk [vmem:[%s2462 - $0x1] sm:$0x10] %vm2480, %v2454
        %2482 = vst.msk [vmem:[%s2462 + $0xf] sm:$0x10] %vm2480, %v2455
        %2483 = vst.msk [vmem:[%s2462 + $0x1f] sm:$0x10] %vm2480, %v2456
        %2484 = vst.msk [vmem:[%s2462 + $0x2f] sm:$0x10] %vm2480, %v2457
        %2485 = vst.msk [vmem:[%s2462 + $0x3f] sm:$0x10] %vm2480, %v2458
        %2486 = vst.msk [vmem:[%s2462 + $0x4f] sm:$0x10] %vm2480, %v2459
        %2487 = vst.msk [vmem:[%s2462 + $0x5f] sm:$0x10] %vm2480, %v2460
        %2488 = vst.msk [vmem:[%s2462 + $0x6f] sm:$0x10] %vm2480, %v2461
        %vm2489 = vcmask 63494
        %2490 = vst.msk [vmem:[%s2462 - $0x2] sm:$0x40] %vm2489, %v2454
        %2491 = vst.msk [vmem:[%s2462 + $0xe] sm:$0x40] %vm2489, %v2455
        %2492 = vst.msk [vmem:[%s2462 + $0x1e] sm:$0x40] %vm2489, %v2456
        %2493 = vst.msk [vmem:[%s2462 + $0x2e] sm:$0x40] %vm2489, %v2457
        %2494 = vst.msk [vmem:[%s2462 + $0x3e] sm:$0x40] %vm2489, %v2458
        %2495 = vst.msk [vmem:[%s2462 + $0x4e] sm:$0x40] %vm2489, %v2459
        %2496 = vst.msk [vmem:[%s2462 + $0x5e] sm:$0x40] %vm2489, %v2460
        %2497 = vst.msk [vmem:[%s2462 + $0x6e] sm:$0x40] %vm2489, %v2461
        %v2506 = vrot.slane %v2388, 1
        %v2507 = vrot.slane %v2390, 1
        %v2508 = vrot.slane %v2392, 1
        %v2509 = vrot.slane %v2394, 1
        %v2510 = vrot.slane %v2396, 1
        %v2511 = vrot.slane %v2398, 1
        %v2512 = vrot.slane %v2400, 1
        %v2513 = vrot.slane %v2402, 1
        %v2522 = vmax.f32 %v2388, %v2506
        %v2523 = vmax.f32 %v2390, %v2507
        %v2524 = vmax.f32 %v2392, %v2508
        %v2525 = vmax.f32 %v2394, %v2509
        %v2526 = vmax.f32 %v2396, %v2510
        %v2527 = vmax.f32 %v2398, %v2511
        %v2528 = vmax.f32 %v2400, %v2512
        %v2529 = vmax.f32 %v2402, %v2513
        %2530 = vst.msk [vmem:[%s2462 + $0x5] sm:$0x1] %vm2409, %v2522
        %2531 = vst.msk [vmem:[%s2462 + $0x15] sm:$0x1] %vm2409, %v2523
        %2532 = vst.msk [vmem:[%s2462 + $0x25] sm:$0x1] %vm2409, %v2524
        %2533 = vst.msk [vmem:[%s2462 + $0x35] sm:$0x1] %vm2409, %v2525
        %2534 = vst.msk [vmem:[%s2462 + $0x45] sm:$0x1] %vm2409, %v2526
        %2535 = vst.msk [vmem:[%s2462 + $0x55] sm:$0x1] %vm2409, %v2527
        %2536 = vst.msk [vmem:[%s2462 + $0x65] sm:$0x1] %vm2409, %v2528
        %2537 = vst.msk [vmem:[%s2462 + $0x75] sm:$0x1] %vm2409, %v2529
        %2538 = vst.msk [vmem:[%s2462 + $0x4] sm:$0x4] %vm2471, %v2522
        %2539 = vst.msk [vmem:[%s2462 + $0x14] sm:$0x4] %vm2471, %v2523
        %2540 = vst.msk [vmem:[%s2462 + $0x24] sm:$0x4] %vm2471, %v2524
        %2541 = vst.msk [vmem:[%s2462 + $0x34] sm:$0x4] %vm2471, %v2525
        %2542 = vst.msk [vmem:[%s2462 + $0x44] sm:$0x4] %vm2471, %v2526
        %2543 = vst.msk [vmem:[%s2462 + $0x54] sm:$0x4] %vm2471, %v2527
        %2544 = vst.msk [vmem:[%s2462 + $0x64] sm:$0x4] %vm2471, %v2528
        %2545 = vst.msk [vmem:[%s2462 + $0x74] sm:$0x4] %vm2471, %v2529
        %2546 = vst.msk [vmem:[%s2462 + $0x3] sm:$0x10] %vm2480, %v2522
        %2547 = vst.msk [vmem:[%s2462 + $0x13] sm:$0x10] %vm2480, %v2523
        %2548 = vst.msk [vmem:[%s2462 + $0x23] sm:$0x10] %vm2480, %v2524
        %2549 = vst.msk [vmem:[%s2462 + $0x33] sm:$0x10] %vm2480, %v2525
        %2550 = vst.msk [vmem:[%s2462 + $0x43] sm:$0x10] %vm2480, %v2526
        %2551 = vst.msk [vmem:[%s2462 + $0x53] sm:$0x10] %vm2480, %v2527
        %2552 = vst.msk [vmem:[%s2462 + $0x63] sm:$0x10] %vm2480, %v2528
        %2553 = vst.msk [vmem:[%s2462 + $0x73] sm:$0x10] %vm2480, %v2529
        %2554 = vst.msk [vmem:[%s2462 + $0x2] sm:$0x40] %vm2489, %v2522
        %2555 = vst.msk [vmem:[%s2462 + $0x12] sm:$0x40] %vm2489, %v2523
        %2556 = vst.msk [vmem:[%s2462 + $0x22] sm:$0x40] %vm2489, %v2524
        %2557 = vst.msk [vmem:[%s2462 + $0x32] sm:$0x40] %vm2489, %v2525
        %2558 = vst.msk [vmem:[%s2462 + $0x42] sm:$0x40] %vm2489, %v2526
        %2559 = vst.msk [vmem:[%s2462 + $0x52] sm:$0x40] %vm2489, %v2527
        %2560 = vst.msk [vmem:[%s2462 + $0x62] sm:$0x40] %vm2489, %v2528
        %2561 = vst.msk [vmem:[%s2462 + $0x72] sm:$0x40] %vm2489, %v2529
        %v2562 = vld [vmem:[#allocation3] sm:$0xff]
        %v2563 = vld [vmem:[#allocation3 + $0x10] sm:$0xff]
        %v2564 = vld [vmem:[#allocation3 + $0x20] sm:$0xff]
        %v2565 = vld [vmem:[#allocation3 + $0x30] sm:$0xff]
        %v2566 = vld [vmem:[#allocation3 + $0x40] sm:$0xff]
        %v2567 = vld [vmem:[#allocation3 + $0x50] sm:$0xff]
        %v2568 = vld [vmem:[#allocation3 + $0x60] sm:$0xff]
        %v2569 = vld [vmem:[#allocation3 + $0x70] sm:$0xff]
        %v2570 = vld [vmem:[#allocation3 + $0x1] sm:$0xff]
        %v2571 = vld [vmem:[#allocation3 + $0x11] sm:$0xff]
        %v2572 = vld [vmem:[#allocation3 + $0x21] sm:$0xff]
        %v2573 = vld [vmem:[#allocation3 + $0x31] sm:$0xff]
        %v2574 = vld [vmem:[#allocation3 + $0x41] sm:$0xff]
        %v2575 = vld [vmem:[#allocation3 + $0x51] sm:$0xff]
        %v2576 = vld [vmem:[#allocation3 + $0x61] sm:$0xff]
        %v2577 = vld [vmem:[#allocation3 + $0x71] sm:$0xff]
        %v2578 = vld [vmem:[#allocation3 + $0x2] sm:$0xff]
        %v2579 = vld [vmem:[#allocation3 + $0x12] sm:$0xff]
        %v2580 = vld [vmem:[#allocation3 + $0x22] sm:$0xff]
        %v2581 = vld [vmem:[#allocation3 + $0x32] sm:$0xff]
        %v2582 = vld [vmem:[#allocation3 + $0x42] sm:$0xff]
        %v2583 = vld [vmem:[#allocation3 + $0x52] sm:$0xff]
        %v2584 = vld [vmem:[#allocation3 + $0x62] sm:$0xff]
        %v2585 = vld [vmem:[#allocation3 + $0x72] sm:$0xff]
        %v2586 = vld [vmem:[%s2462] sm:$0xff]
        %v2587 = vld [vmem:[%s2462 + $0x10] sm:$0xff]
        %v2588 = vld [vmem:[%s2462 + $0x20] sm:$0xff]
        %v2589 = vld [vmem:[%s2462 + $0x30] sm:$0xff]
        %v2590 = vld [vmem:[%s2462 + $0x40] sm:$0xff]
        %v2591 = vld [vmem:[%s2462 + $0x50] sm:$0xff]
        %v2592 = vld [vmem:[%s2462 + $0x60] sm:$0xff]
        %v2593 = vld [vmem:[%s2462 + $0x70] sm:$0xff]
        %v2594 = vld [vmem:[%s2462 + $0x1] sm:$0xff]
        %v2595 = vld [vmem:[%s2462 + $0x11] sm:$0xff]
        %v2596 = vld [vmem:[%s2462 + $0x21] sm:$0xff]
        %v2597 = vld [vmem:[%s2462 + $0x31] sm:$0xff]
        %v2598 = vld [vmem:[%s2462 + $0x41] sm:$0xff]
        %v2599 = vld [vmem:[%s2462 + $0x51] sm:$0xff]
        %v2600 = vld [vmem:[%s2462 + $0x61] sm:$0xff]
        %v2601 = vld [vmem:[%s2462 + $0x71] sm:$0xff]
        %v2602 = vld [vmem:[%s2462 + $0x2] sm:$0xff]
        %v2603 = vld [vmem:[%s2462 + $0x12] sm:$0xff]
        %v2604 = vld [vmem:[%s2462 + $0x22] sm:$0xff]
        %v2605 = vld [vmem:[%s2462 + $0x32] sm:$0xff]
        %v2606 = vld [vmem:[%s2462 + $0x42] sm:$0xff]
        %v2607 = vld [vmem:[%s2462 + $0x52] sm:$0xff]
        %v2608 = vld [vmem:[%s2462 + $0x62] sm:$0xff]
        %v2609 = vld [vmem:[%s2462 + $0x72] sm:$0xff]
        %s2610 = scalar_lea.vmem [#allocation3], 32
        %v2611 = vld [vmem:[%s2610] sm:$0xff]
        %v2612 = vld [vmem:[%s2610 + $0x10] sm:$0xff]
        %v2613 = vld [vmem:[%s2610 + $0x20] sm:$0xff]
        %v2614 = vld [vmem:[%s2610 + $0x30] sm:$0xff]
        %v2615 = vld [vmem:[%s2610 + $0x40] sm:$0xff]
        %v2616 = vld [vmem:[%s2610 + $0x50] sm:$0xff]
        %v2617 = vld [vmem:[%s2610 + $0x60] sm:$0xff]
        %v2618 = vld [vmem:[%s2610 + $0x70] sm:$0xff]
        %v2619 = vld [vmem:[%s2610 + $0x1] sm:$0xff]
        %v2620 = vld [vmem:[%s2610 + $0x11] sm:$0xff]
        %v2621 = vld [vmem:[%s2610 + $0x21] sm:$0xff]
        %v2622 = vld [vmem:[%s2610 + $0x31] sm:$0xff]
        %v2623 = vld [vmem:[%s2610 + $0x41] sm:$0xff]
        %v2624 = vld [vmem:[%s2610 + $0x51] sm:$0xff]
        %v2625 = vld [vmem:[%s2610 + $0x61] sm:$0xff]
        %v2626 = vld [vmem:[%s2610 + $0x71] sm:$0xff]
        %v2627 = vld [vmem:[%s2610 + $0x2] sm:$0xff]
        %v2628 = vld [vmem:[%s2610 + $0x12] sm:$0xff]
        %v2629 = vld [vmem:[%s2610 + $0x22] sm:$0xff]
        %v2630 = vld [vmem:[%s2610 + $0x32] sm:$0xff]
        %v2631 = vld [vmem:[%s2610 + $0x42] sm:$0xff]
        %v2632 = vld [vmem:[%s2610 + $0x52] sm:$0xff]
        %v2633 = vld [vmem:[%s2610 + $0x62] sm:$0xff]
        %v2634 = vld [vmem:[%s2610 + $0x72] sm:$0xff]
        %2643 = vrot.lane.b32.xlu0 %v2570, 8
        %v2644 = vpop.permute.xlu0 %2643
        %2645 = vrot.lane.b32.xlu0 %v2571, 8
        %v2646 = vpop.permute.xlu0 %2645
        %2647 = vrot.lane.b32.xlu0 %v2572, 8
        %v2648 = vpop.permute.xlu0 %2647
        %2649 = vrot.lane.b32.xlu0 %v2573, 8
        %v2650 = vpop.permute.xlu0 %2649
        %2651 = vrot.lane.b32.xlu0 %v2574, 8
        %v2652 = vpop.permute.xlu0 %2651
        %2653 = vrot.lane.b32.xlu0 %v2575, 8
        %v2654 = vpop.permute.xlu0 %2653
        %2655 = vrot.lane.b32.xlu0 %v2576, 8
        %v2656 = vpop.permute.xlu0 %2655
        %2657 = vrot.lane.b32.xlu0 %v2577, 8
        %v2658 = vpop.permute.xlu0 %2657
        %2675 = vrot.lane.b32.xlu0 %v2578, 16
        %v2676 = vpop.permute.xlu0 %2675
        %2677 = vrot.lane.b32.xlu0 %v2579, 16
        %v2678 = vpop.permute.xlu0 %2677
        %2679 = vrot.lane.b32.xlu0 %v2580, 16
        %v2680 = vpop.permute.xlu0 %2679
        %2681 = vrot.lane.b32.xlu0 %v2581, 16
        %v2682 = vpop.permute.xlu0 %2681
        %2683 = vrot.lane.b32.xlu0 %v2582, 16
        %v2684 = vpop.permute.xlu0 %2683
        %2685 = vrot.lane.b32.xlu0 %v2583, 16
        %v2686 = vpop.permute.xlu0 %2685
        %2687 = vrot.lane.b32.xlu0 %v2584, 16
        %v2688 = vpop.permute.xlu0 %2687
        %2689 = vrot.lane.b32.xlu0 %v2585, 16
        %v2690 = vpop.permute.xlu0 %2689
        %2707 = vrot.lane.b32.xlu0 %v2586, 24
        %v2708 = vpop.permute.xlu0 %2707
        %2709 = vrot.lane.b32.xlu0 %v2587, 24
        %v2710 = vpop.permute.xlu0 %2709
        %2711 = vrot.lane.b32.xlu0 %v2588, 24
        %v2712 = vpop.permute.xlu0 %2711
        %2713 = vrot.lane.b32.xlu0 %v2589, 24
        %v2714 = vpop.permute.xlu0 %2713
        %2715 = vrot.lane.b32.xlu0 %v2590, 24
        %v2716 = vpop.permute.xlu0 %2715
        %2717 = vrot.lane.b32.xlu0 %v2591, 24
        %v2718 = vpop.permute.xlu0 %2717
        %2719 = vrot.lane.b32.xlu0 %v2592, 24
        %v2720 = vpop.permute.xlu0 %2719
        %2721 = vrot.lane.b32.xlu0 %v2593, 24
        %v2722 = vpop.permute.xlu0 %2721
        %2739 = vrot.lane.b32.xlu0 %v2594, 32
        %v2740 = vpop.permute.xlu0 %2739
        %2741 = vrot.lane.b32.xlu0 %v2595, 32
        %v2742 = vpop.permute.xlu0 %2741
        %2743 = vrot.lane.b32.xlu0 %v2596, 32
        %v2744 = vpop.permute.xlu0 %2743
        %2745 = vrot.lane.b32.xlu0 %v2597, 32
        %v2746 = vpop.permute.xlu0 %2745
        %2747 = vrot.lane.b32.xlu0 %v2598, 32
        %v2748 = vpop.permute.xlu0 %2747
        %2749 = vrot.lane.b32.xlu0 %v2599, 32
        %v2750 = vpop.permute.xlu0 %2749
        %2751 = vrot.lane.b32.xlu0 %v2600, 32
        %v2752 = vpop.permute.xlu0 %2751
        %2753 = vrot.lane.b32.xlu0 %v2601, 32
        %v2754 = vpop.permute.xlu0 %2753
        %2771 = vrot.lane.b32.xlu0 %v2602, 40
        %v2772 = vpop.permute.xlu0 %2771
        %2773 = vrot.lane.b32.xlu0 %v2603, 40
        %v2774 = vpop.permute.xlu0 %2773
        %2775 = vrot.lane.b32.xlu0 %v2604, 40
        %v2776 = vpop.permute.xlu0 %2775
        %2777 = vrot.lane.b32.xlu0 %v2605, 40
        %v2778 = vpop.permute.xlu0 %2777
        %2779 = vrot.lane.b32.xlu0 %v2606, 40
        %v2780 = vpop.permute.xlu0 %2779
        %2781 = vrot.lane.b32.xlu0 %v2607, 40
        %v2782 = vpop.permute.xlu0 %2781
        %2783 = vrot.lane.b32.xlu0 %v2608, 40
        %v2784 = vpop.permute.xlu0 %2783
        %2785 = vrot.lane.b32.xlu0 %v2609, 40
        %v2786 = vpop.permute.xlu0 %2785
        %2803 = vrot.lane.b32.xlu0 %v2611, 48
        %v2804 = vpop.permute.xlu0 %2803
        %2805 = vrot.lane.b32.xlu0 %v2612, 48
        %v2806 = vpop.permute.xlu0 %2805
        %2807 = vrot.lane.b32.xlu0 %v2613, 48
        %v2808 = vpop.permute.xlu0 %2807
        %2809 = vrot.lane.b32.xlu0 %v2614, 48
        %v2810 = vpop.permute.xlu0 %2809
        %2811 = vrot.lane.b32.xlu0 %v2615, 48
        %v2812 = vpop.permute.xlu0 %2811
        %2813 = vrot.lane.b32.xlu0 %v2616, 48
        %v2814 = vpop.permute.xlu0 %2813
        %2815 = vrot.lane.b32.xlu0 %v2617, 48
        %v2816 = vpop.permute.xlu0 %2815
        %2817 = vrot.lane.b32.xlu0 %v2618, 48
        %v2818 = vpop.permute.xlu0 %2817
        %2835 = vrot.lane.b32.xlu0 %v2619, 56
        %v2836 = vpop.permute.xlu0 %2835
        %2837 = vrot.lane.b32.xlu0 %v2620, 56
        %v2838 = vpop.permute.xlu0 %2837
        %2839 = vrot.lane.b32.xlu0 %v2621, 56
        %v2840 = vpop.permute.xlu0 %2839
        %2841 = vrot.lane.b32.xlu0 %v2622, 56
        %v2842 = vpop.permute.xlu0 %2841
        %2843 = vrot.lane.b32.xlu0 %v2623, 56
        %v2844 = vpop.permute.xlu0 %2843
        %2845 = vrot.lane.b32.xlu0 %v2624, 56
        %v2846 = vpop.permute.xlu0 %2845
        %2847 = vrot.lane.b32.xlu0 %v2625, 56
        %v2848 = vpop.permute.xlu0 %2847
        %2849 = vrot.lane.b32.xlu0 %v2626, 56
        %v2850 = vpop.permute.xlu0 %2849
        %2867 = vrot.lane.b32.xlu0 %v2627, 64
        %v2868 = vpop.permute.xlu0 %2867
        %2869 = vrot.lane.b32.xlu0 %v2628, 64
        %v2870 = vpop.permute.xlu0 %2869
        %2871 = vrot.lane.b32.xlu0 %v2629, 64
        %v2872 = vpop.permute.xlu0 %2871
        %2873 = vrot.lane.b32.xlu0 %v2630, 64
        %v2874 = vpop.permute.xlu0 %2873
        %2875 = vrot.lane.b32.xlu0 %v2631, 64
        %v2876 = vpop.permute.xlu0 %2875
        %2877 = vrot.lane.b32.xlu0 %v2632, 64
        %v2878 = vpop.permute.xlu0 %2877
        %2879 = vrot.lane.b32.xlu0 %v2633, 64
        %v2880 = vpop.permute.xlu0 %2879
        %2881 = vrot.lane.b32.xlu0 %v2634, 64
        %v2882 = vpop.permute.xlu0 %2881
        %v2891 = vsel %vm1786, %v2562, %v2644
        %v2892 = vsel %vm1786, %v2563, %v2646
        %v2893 = vsel %vm1786, %v2564, %v2648
        %v2894 = vsel %vm1786, %v2565, %v2650
        %v2895 = vsel %vm1786, %v2566, %v2652
        %v2896 = vsel %vm1786, %v2567, %v2654
        %v2897 = vsel %vm1786, %v2568, %v2656
        %v2898 = vsel %vm1786, %v2569, %v2658
        %v2899 = vsel %vm1852, %v2891, %v2676
        %v2900 = vsel %vm1852, %v2892, %v2678
        %v2901 = vsel %vm1852, %v2893, %v2680
        %v2902 = vsel %vm1852, %v2894, %v2682
        %v2903 = vsel %vm1852, %v2895, %v2684
        %v2904 = vsel %vm1852, %v2896, %v2686
        %v2905 = vsel %vm1852, %v2897, %v2688
        %v2906 = vsel %vm1852, %v2898, %v2690
        %v2907 = vsel %vm1918, %v2899, %v2708
        %v2908 = vsel %vm1918, %v2900, %v2710
        %v2909 = vsel %vm1918, %v2901, %v2712
        %v2910 = vsel %vm1918, %v2902, %v2714
        %v2911 = vsel %vm1918, %v2903, %v2716
        %v2912 = vsel %vm1918, %v2904, %v2718
        %v2913 = vsel %vm1918, %v2905, %v2720
        %v2914 = vsel %vm1918, %v2906, %v2722
        %v2915 = vsel %vm1984, %v2907, %v2740
        %v2916 = vsel %vm1984, %v2908, %v2742
        %v2917 = vsel %vm1984, %v2909, %v2744
        %v2918 = vsel %vm1984, %v2910, %v2746
        %v2919 = vsel %vm1984, %v2911, %v2748
        %v2920 = vsel %vm1984, %v2912, %v2750
        %v2921 = vsel %vm1984, %v2913, %v2752
        %v2922 = vsel %vm1984, %v2914, %v2754
        %vm2923 = vcmask 326656
        %v2924 = vsel %vm2923, %v2915, %v2772
        %v2925 = vsel %vm2923, %v2916, %v2774
        %v2926 = vsel %vm2923, %v2917, %v2776
        %v2927 = vsel %vm2923, %v2918, %v2778
        %v2928 = vsel %vm2923, %v2919, %v2780
        %v2929 = vsel %vm2923, %v2920, %v2782
        %v2930 = vsel %vm2923, %v2921, %v2784
        %v2931 = vsel %vm2923, %v2922, %v2786
        %vm2932 = vcmask 392192
        %v2933 = vsel %vm2932, %v2924, %v2804
        %v2934 = vsel %vm2932, %v2925, %v2806
        %v2935 = vsel %vm2932, %v2926, %v2808
        %v2936 = vsel %vm2932, %v2927, %v2810
        %v2937 = vsel %vm2932, %v2928, %v2812
        %v2938 = vsel %vm2932, %v2929, %v2814
        %v2939 = vsel %vm2932, %v2930, %v2816
        %v2940 = vsel %vm2932, %v2931, %v2818
        %vm2941 = vcmask 457728
        %v2942 = vsel %vm2941, %v2933, %v2836
        %v2943 = vsel %vm2941, %v2934, %v2838
        %v2944 = vsel %vm2941, %v2935, %v2840
        %v2945 = vsel %vm2941, %v2936, %v2842
        %v2946 = vsel %vm2941, %v2937, %v2844
        %v2947 = vsel %vm2941, %v2938, %v2846
        %v2948 = vsel %vm2941, %v2939, %v2848
        %v2949 = vsel %vm2941, %v2940, %v2850
        %vm2950 = vcmask 523264
        %v2951 = vsel %vm2950, %v2942, %v2868
        %v2952 = vsel %vm2950, %v2943, %v2870
        %v2953 = vsel %vm2950, %v2944, %v2872
        %v2954 = vsel %vm2950, %v2945, %v2874
        %v2955 = vsel %vm2950, %v2946, %v2876
        %v2956 = vsel %vm2950, %v2947, %v2878
        %v2957 = vsel %vm2950, %v2948, %v2880
        %v2958 = vsel %vm2950, %v2949, %v2882
        %v2959 = vld [vmem:[%s3] sm:$0xff]
        %v2960 = vld [vmem:[%s3 + $0x8] sm:$0xff]
        %v2961 = vld [vmem:[%s3 + $0x10] sm:$0xff]
        %v2962 = vld [vmem:[%s3 + $0x18] sm:$0xff]
        %v2963 = vld [vmem:[%s3 + $0x20] sm:$0xff]
        %v2964 = vld [vmem:[%s3 + $0x28] sm:$0xff]
        %v2965 = vld [vmem:[%s3 + $0x30] sm:$0xff]
        %v2966 = vld [vmem:[%s3 + $0x38] sm:$0xff]
        %v2967 = vld [vmem:[%s3 + $0x40] sm:$0xff]
        %v2968 = vld [vmem:[%s4] sm:$0x1]
        %v2970 = vlaneseq
        %v2971 = vshrl.u32 %v2970, 7
        %v2972 = vsub.s32 0, %v2971
        %v2973 = vrot.slane %v2968, %v2972
        %vm2975 = vcmask 588800
        %v2977 = vsel %vm2975, %v2951, 0
        %v2980 = vsel %vm2975, %v2952, 0
        %v2983 = vsel %vm2975, %v2953, 0
        %v2986 = vsel %vm2975, %v2954, 0
        %v2989 = vsel %vm2975, %v2955, 0
        %v2992 = vsel %vm2975, %v2956, 0
        %v2995 = vsel %vm2975, %v2957, 0
        %v2998 = vsel %vm2975, %v2958, 0
        %3000 = vmatprep.subr.mxu0 0.0
        %3001 = vmatpush1.msra.mxu0 %v2959
        %3002 = vmatprep.subr.mxu0 0.0
        %3003 = vmatpush1.msra.mxu0 %v2960
        %3004 = vmatprep.subr.mxu0 0.0
        %3005 = vmatpush1.msra.mxu0 %v2961
        %3006 = vmatprep.subr.mxu0 0.0
        %3007 = vmatpush1.msra.mxu0 %v2962
        %3008 = vmatprep.subr.mxu0 0.0
        %3009 = vmatpush1.msra.mxu0 %v2963
        %3010 = vmatprep.subr.mxu0 0.0
        %3011 = vmatpush1.msra.mxu0 %v2964
        %3012 = vmatprep.subr.mxu0 0.0
        %3013 = vmatpush1.msra.mxu0 %v2965
        %3014 = vmatprep.subr.mxu0 0.0
        %3015 = vmatpush1.msra.mxu0 %v2966
        %3016 = vmatprep.subr.mxu0 0.0
        %3017 = vmatpush1.msra.mxu0 %v2967
        %3018 = vmatprep.subr.mxu0 0.0
        %3019 = vmatpush1.msra.mxu0 0.0
        %3020 = vmatprep.subr.mxu0 0.0
        %3021 = vmatpush1.msra.mxu0 0.0
        %3022 = vmatprep.subr.mxu0 0.0
        %3023 = vmatpush1.msra.mxu0 0.0
        %3024 = vmatprep.subr.mxu0 0.0
        %3025 = vmatpush1.msra.mxu0 0.0
        %3026 = vmatprep.subr.mxu0 0.0
        %3027 = vmatpush1.msra.mxu0 0.0
        %3028 = vmatprep.subr.mxu0 0.0
        %3029 = vmatpush1.msra.mxu0 0.0
        %3030 = vmatprep.subr.mxu0 0.0
        %3031 = vmatpush1.msra.mxu0 0.0
        %3032 = vmatprep.subr.mxu0 0.0
        %3033 = vmatpush1.msra.mxu0 0.0
        %3034 = vmatprep.subr.mxu0 0.0
        %3035 = vmatpush1.msra.mxu0 0.0
        %3036 = vmatprep.subr.mxu0 0.0
        %3037 = vmatpush1.msra.mxu0 0.0
        %3038 = vmatprep.subr.mxu0 0.0
        %3039 = vmatpush1.msra.mxu0 0.0
        %3040 = vmatprep.subr.mxu0 0.0
        %3041 = vmatpush1.msra.mxu0 0.0
        %3042 = vmatprep.subr.mxu0 0.0
        %3043 = vmatpush1.msra.mxu0 0.0
        %3044 = vmatprep.subr.mxu0 0.0
        %3045 = vmatpush1.msra.mxu0 0.0
        %3046 = vmatprep.subr.mxu0 0.0
        %3047 = vmatpush1.msra.mxu0 0.0
        %3048 = vmatprep.subr.mxu0 0.0
        %3049 = vmatpush1.msra.mxu0 0.0
        %3050 = vmatprep.subr.mxu0 0.0
        %3051 = vmatpush1.msra.mxu0 0.0
        %3052 = vmatprep.subr.mxu0 0.0
        %3053 = vmatpush1.msra.mxu0 0.0
        %3054 = vmatprep.subr.mxu0 0.0
        %3055 = vmatpush1.msra.mxu0 0.0
        %3056 = vmatprep.subr.mxu0 0.0
        %3057 = vmatpush1.msra.mxu0 0.0
        %3058 = vmatprep.subr.mxu0 0.0
        %3059 = vmatpush1.msra.mxu0 0.0
        %3060 = vmatprep.subr.mxu0 0.0
        %3061 = vmatpush1.msra.mxu0 0.0
        %3062 = vmatprep.subr.mxu0 0.0
        %3063 = vmatpush1.msra.mxu0 0.0
        %3064 = vmatprep.mubr.f32.mxu0 0.0
        %3065 = vmatmul.mubr.f32.gmra.mrb[0].mxu0 %v2977
        %v3066 = vpop.f32.mrb[0].mxu0
        %v3067 = vadd.f32 %v2973, %v3066
        %v3068 = vpop.f32.mrb[0].mxu0
        %3069 = vmatprep.mubr.f32.mxu0 0.0
        %3070 = vmatmul.mubr.f32.gmra.mrb[0].mxu0 %v2980
        %v3071 = vpop.f32.mrb[0].mxu0
        %v3072 = vadd.f32 %v2973, %v3071
        %v3073 = vpop.f32.mrb[0].mxu0
        %3074 = vmatprep.mubr.f32.mxu0 0.0
        %3075 = vmatmul.mubr.f32.gmra.mrb[0].mxu0 %v2983
        %v3076 = vpop.f32.mrb[0].mxu0
        %v3077 = vadd.f32 %v2973, %v3076
        %v3078 = vpop.f32.mrb[0].mxu0
        %3079 = vmatprep.mubr.f32.mxu0 0.0
        %3080 = vmatmul.mubr.f32.gmra.mrb[0].mxu0 %v2986
        %v3081 = vpop.f32.mrb[0].mxu0
        %v3082 = vadd.f32 %v2973, %v3081
        %v3083 = vpop.f32.mrb[0].mxu0
        %3084 = vmatprep.mubr.f32.mxu0 0.0
        %3085 = vmatmul.mubr.f32.gmra.mrb[0].mxu0 %v2989
        %v3086 = vpop.f32.mrb[0].mxu0
        %v3087 = vadd.f32 %v2973, %v3086
        %v3088 = vpop.f32.mrb[0].mxu0
        %3089 = vmatprep.mubr.f32.mxu0 0.0
        %3090 = vmatmul.mubr.f32.gmra.mrb[0].mxu0 %v2992
        %v3091 = vpop.f32.mrb[0].mxu0
        %v3092 = vadd.f32 %v2973, %v3091
        %v3093 = vpop.f32.mrb[0].mxu0
        %3094 = vmatprep.mubr.f32.mxu0 0.0
        %3095 = vmatmul.mubr.f32.gmra.mrb[0].mxu0 %v2995
        %v3096 = vpop.f32.mrb[0].mxu0
        %v3097 = vadd.f32 %v2973, %v3096
        %v3098 = vpop.f32.mrb[0].mxu0
        %3099 = vmatprep.mubr.f32.mxu0 0.0
        %3100 = vmatmul.mubr.f32.gmra.mrb[0].mxu0 %v2998
        %v3101 = vpop.f32.mrb[0].mxu0
        %v3102 = vadd.f32 %v2973, %v3101
        %v3103 = vpop.f32.mrb[0].mxu0
        %3104 = vdwg.mxu0
        %v3105 = vmax.f32 %v3067, 0.0
        %v3106 = vmax.f32 %v3072, 0.0
        %v3107 = vmax.f32 %v3077, 0.0
        %v3108 = vmax.f32 %v3082, 0.0
        %v3109 = vmax.f32 %v3087, 0.0
        %v3110 = vmax.f32 %v3092, 0.0
        %v3111 = vmax.f32 %v3097, 0.0
        %v3112 = vmax.f32 %v3102, 0.0
        %v3113 = vmax.f32 %v3105, %v3106
        %v3114 = vmax.f32 %v3107, %v3108
        %v3115 = vmax.f32 %v3109, %v3110
        %v3116 = vmax.f32 %v3111, %v3112
        %v3118 = vrot.slane %v3113, 1
        %v3120 = vmax.f32 %v3113, %v3118
        %v3122 = vrot.slane %v3114, 1
        %v3124 = vmax.f32 %v3114, %v3122
        %v3126 = vrot.slane %v3115, 1
        %v3128 = vmax.f32 %v3115, %v3126
        %v3130 = vrot.slane %v3116, 1
        %v3132 = vmax.f32 %v3116, %v3130
        %v3134 = vrot.slane %v3120, 2
        %3135 = vrot.lane.b32.xlu0 %v3134, 16
        %v3136 = vpop.permute.xlu0 %3135
        %v3138 = vrot.slane %v3120, 4
        %3139 = vrot.lane.b32.xlu0 %v3138, 32
        %v3140 = vpop.permute.xlu0 %3139
        %v3142 = vrot.slane %v3120, 6
        %3143 = vrot.lane.b32.xlu0 %v3142, 48
        %v3144 = vpop.permute.xlu0 %3143
        %3147 = vrot.lane.b32.xlu0 %v3124, 64
        %v3148 = vpop.permute.xlu0 %3147
        %v3150 = vrot.slane %v3124, 2
        %3151 = vrot.lane.b32.xlu0 %v3150, 80
        %v3152 = vpop.permute.xlu0 %3151
        %v3154 = vrot.slane %v3124, 4
        %3155 = vrot.lane.b32.xlu0 %v3154, 96
        %v3156 = vpop.permute.xlu0 %3155
        %v3158 = vrot.slane %v3124, 6
        %3159 = vrot.lane.b32.xlu0 %v3158, 112
        %v3160 = vpop.permute.xlu0 %3159
        %v3163 = vrot.slane %v3128, 2
        %3164 = vrot.lane.b32.xlu0 %v3163, 16
        %v3165 = vpop.permute.xlu0 %3164
        %v3167 = vrot.slane %v3128, 4
        %3168 = vrot.lane.b32.xlu0 %v3167, 32
        %v3169 = vpop.permute.xlu0 %3168
        %v3171 = vrot.slane %v3128, 6
        %3172 = vrot.lane.b32.xlu0 %v3171, 48
        %v3173 = vpop.permute.xlu0 %3172
        %3176 = vrot.lane.b32.xlu0 %v3132, 64
        %v3177 = vpop.permute.xlu0 %3176
        %v3179 = vrot.slane %v3132, 2
        %3180 = vrot.lane.b32.xlu0 %v3179, 80
        %v3181 = vpop.permute.xlu0 %3180
        %v3183 = vrot.slane %v3132, 4
        %3184 = vrot.lane.b32.xlu0 %v3183, 96
        %v3185 = vpop.permute.xlu0 %3184
        %v3187 = vrot.slane %v3132, 6
        %3188 = vrot.lane.b32.xlu0 %v3187, 112
        %v3189 = vpop.permute.xlu0 %3188
        %v3191 = vsel %vm1852, %v3120, %v3136
        %v3192 = vsel %vm1984, %v3191, %v3140
        %v3193 = vsel %vm2932, %v3192, %v3144
        %v3194 = vsel %vm2950, %v3193, %v3148
        %vm3195 = vcmask 654336
        %v3196 = vsel %vm3195, %v3194, %v3152
        %vm3197 = vcmask 785408
        %v3198 = vsel %vm3197, %v3196, %v3156
        %vm3199 = vcmask 916480
        %v3200 = vsel %vm3199, %v3198, %v3160
        %v3201 = vsel %vm1852, %v3128, %v3165
        %v3202 = vsel %vm1984, %v3201, %v3169
        %v3203 = vsel %vm2932, %v3202, %v3173
        %v3204 = vsel %vm2950, %v3203, %v3177
        %v3205 = vsel %vm3195, %v3204, %v3181
        %v3206 = vsel %vm3197, %v3205, %v3185
        %v3207 = vsel %vm3199, %v3206, %v3189
        %v3208 = vld [vmem:[%s5] sm:$0xff]
        %v3209 = vld [vmem:[%s5 + $0x8] sm:$0xff]
        %v3210 = vld [vmem:[%s5 + $0x10] sm:$0xff]
        %v3211 = vld [vmem:[%s5 + $0x18] sm:$0xff]
        %v3212 = vld [vmem:[%s5 + $0x20] sm:$0xff]
        %v3213 = vld [vmem:[%s5 + $0x28] sm:$0xff]
        %v3214 = vld [vmem:[%s5 + $0x30] sm:$0xff]
        %v3215 = vld [vmem:[%s5 + $0x38] sm:$0xff]
        %v3216 = vld [vmem:[%s5 + $0x40] sm:$0xff]
        %v3217 = vld [vmem:[%s5 + $0x48] sm:$0xff]
        %v3218 = vld [vmem:[%s5 + $0x50] sm:$0xff]
        %v3219 = vld [vmem:[%s5 + $0x58] sm:$0xff]
        %v3220 = vld [vmem:[%s5 + $0x60] sm:$0xff]
        %v3221 = vld [vmem:[%s5 + $0x68] sm:$0xff]
        %v3222 = vld [vmem:[%s5 + $0x70] sm:$0xff]
        %v3223 = vld [vmem:[%s5 + $0x78] sm:$0xff]
        %v3224 = vld [vmem:[%s5 + $0x80] sm:$0xff]
        %v3225 = vld [vmem:[%s5 + $0x88] sm:$0xff]
        %v3226 = vld [vmem:[%s5 + $0x90] sm:$0xff]
        %v3227 = vld [vmem:[%s5 + $0x98] sm:$0xff]
        %v3228 = vld [vmem:[%s5 + $0xa0] sm:$0xff]
        %v3229 = vld [vmem:[%s5 + $0xa8] sm:$0xff]
        %v3230 = vld [vmem:[%s5 + $0xb0] sm:$0xff]
        %v3231 = vld [vmem:[%s5 + $0xb8] sm:$0xff]
        %v3232 = vld [vmem:[%s5 + $0xc0] sm:$0xff]
        %v3233 = vld [vmem:[%s5 + $0xc8] sm:$0xff]
        %v3234 = vld [vmem:[%s5 + $0xd0] sm:$0xff]
        %v3235 = vld [vmem:[%s5 + $0xd8] sm:$0xff]
        %v3236 = vld [vmem:[%s5 + $0xe0] sm:$0xff]
        %v3237 = vld [vmem:[%s5 + $0xe8] sm:$0xff]
        %v3238 = vld [vmem:[%s5 + $0xf0] sm:$0xff]
        %v3239 = vld [vmem:[%s5 + $0xf8] sm:$0xff]
        %v3240 = vld [vmem:[%s6] sm:$0x1]
        %3241 = vmatprep.subr.mxu0 0.0
        %3242 = vmatpush1.msra.mxu0 %v3208
        %3243 = vmatprep.subr.mxu0 0.0
        %3244 = vmatpush1.msra.mxu0 %v3209
        %3245 = vmatprep.subr.mxu0 0.0
        %3246 = vmatpush1.msra.mxu0 %v3210
        %3247 = vmatprep.subr.mxu0 0.0
        %3248 = vmatpush1.msra.mxu0 %v3211
        %3249 = vmatprep.subr.mxu0 0.0
        %3250 = vmatpush1.msra.mxu0 %v3212
        %3251 = vmatprep.subr.mxu0 0.0
        %3252 = vmatpush1.msra.mxu0 %v3213
        %3253 = vmatprep.subr.mxu0 0.0
        %3254 = vmatpush1.msra.mxu0 %v3214
        %3255 = vmatprep.subr.mxu0 0.0
        %3256 = vmatpush1.msra.mxu0 %v3215
        %3257 = vmatprep.subr.mxu0 0.0
        %3258 = vmatpush1.msra.mxu0 %v3216
        %3259 = vmatprep.subr.mxu0 0.0
        %3260 = vmatpush1.msra.mxu0 %v3217
        %3261 = vmatprep.subr.mxu0 0.0
        %3262 = vmatpush1.msra.mxu0 %v3218
        %3263 = vmatprep.subr.mxu0 0.0
        %3264 = vmatpush1.msra.mxu0 %v3219
        %3265 = vmatprep.subr.mxu0 0.0
        %3266 = vmatpush1.msra.mxu0 %v3220
        %3267 = vmatprep.subr.mxu0 0.0
        %3268 = vmatpush1.msra.mxu0 %v3221
        %3269 = vmatprep.subr.mxu0 0.0
        %3270 = vmatpush1.msra.mxu0 %v3222
        %3271 = vmatprep.subr.mxu0 0.0
        %3272 = vmatpush1.msra.mxu0 %v3223
        %3273 = vmatprep.subr.mxu0 0.0
        %3274 = vmatpush1.msra.mxu0 %v3224
        %3275 = vmatprep.subr.mxu0 0.0
        %3276 = vmatpush1.msra.mxu0 %v3225
        %3277 = vmatprep.subr.mxu0 0.0
        %3278 = vmatpush1.msra.mxu0 %v3226
        %3279 = vmatprep.subr.mxu0 0.0
        %3280 = vmatpush1.msra.mxu0 %v3227
        %3281 = vmatprep.subr.mxu0 0.0
        %3282 = vmatpush1.msra.mxu0 %v3228
        %3283 = vmatprep.subr.mxu0 0.0
        %3284 = vmatpush1.msra.mxu0 %v3229
        %3285 = vmatprep.subr.mxu0 0.0
        %3286 = vmatpush1.msra.mxu0 %v3230
        %3287 = vmatprep.subr.mxu0 0.0
        %3288 = vmatpush1.msra.mxu0 %v3231
        %3289 = vmatprep.subr.mxu0 0.0
        %3290 = vmatpush1.msra.mxu0 %v3232
        %3291 = vmatprep.subr.mxu0 0.0
        %3292 = vmatpush1.msra.mxu0 %v3233
        %3293 = vmatprep.subr.mxu0 0.0
        %3294 = vmatpush1.msra.mxu0 %v3234
        %3295 = vmatprep.subr.mxu0 0.0
        %3296 = vmatpush1.msra.mxu0 %v3235
        %3297 = vmatprep.subr.mxu0 0.0
        %3298 = vmatpush1.msra.mxu0 %v3236
        %3299 = vmatprep.subr.mxu0 0.0
        %3300 = vmatpush1.msra.mxu0 %v3237
        %3301 = vmatprep.subr.mxu0 0.0
        %3302 = vmatpush1.msra.mxu0 %v3238
        %3303 = vmatprep.subr.mxu0 0.0
        %3304 = vmatpush1.msra.mxu0 %v3239
        %3305 = vmatprep.mubr.f32.mxu0 %v3207
        %3306 = vmatmul.mubr.f32.gmra.mrb[0].mxu0 %v3200
        %v3307 = vpop.f32.mrb[0].mxu0
        %v3308 = vadd.f32 %v3240, %v3307
        %v3309 = vpop.f32.mrb[0].mxu0
        %3310 = vdwg.mxu0
        %v3311 = vmax.f32 %v3308, 0.0
        %v3312 = vld [vmem:[%s7] sm:$0xff]
        %v3313 = vld [vmem:[%s7 + $0x8] sm:$0xff]
        %v3314 = vld [vmem:[%s7 + $0x10] sm:$0xff]
        %v3315 = vld [vmem:[%s7 + $0x18] sm:$0xff]
        %v3316 = vld [vmem:[%s8] sm:$0x1]
        %v3318 = vsel %vm1984, %v3311, 0
        %3320 = vmatprep.subr.mxu0 0.0
        %3321 = vmatpush1.msra.mxu0 %v3312
        %3322 = vmatprep.subr.mxu0 0.0
        %3323 = vmatpush1.msra.mxu0 %v3313
        %3324 = vmatprep.subr.mxu0 0.0
        %3325 = vmatpush1.msra.mxu0 %v3314
        %3326 = vmatprep.subr.mxu0 0.0
        %3327 = vmatpush1.msra.mxu0 %v3315
        %3328 = vmatprep.subr.mxu0 0.0
        %3329 = vmatpush1.msra.mxu0 0.0
        %3330 = vmatprep.subr.mxu0 0.0
        %3331 = vmatpush1.msra.mxu0 0.0
        %3332 = vmatprep.subr.mxu0 0.0
        %3333 = vmatpush1.msra.mxu0 0.0
        %3334 = vmatprep.subr.mxu0 0.0
        %3335 = vmatpush1.msra.mxu0 0.0
        %3336 = vmatprep.subr.mxu0 0.0
        %3337 = vmatpush1.msra.mxu0 0.0
        %3338 = vmatprep.subr.mxu0 0.0
        %3339 = vmatpush1.msra.mxu0 0.0
        %3340 = vmatprep.subr.mxu0 0.0
        %3341 = vmatpush1.msra.mxu0 0.0
        %3342 = vmatprep.subr.mxu0 0.0
        %3343 = vmatpush1.msra.mxu0 0.0
        %3344 = vmatprep.subr.mxu0 0.0
        %3345 = vmatpush1.msra.mxu0 0.0
        %3346 = vmatprep.subr.mxu0 0.0
        %3347 = vmatpush1.msra.mxu0 0.0
        %3348 = vmatprep.subr.mxu0 0.0
        %3349 = vmatpush1.msra.mxu0 0.0
        %3350 = vmatprep.subr.mxu0 0.0
        %3351 = vmatpush1.msra.mxu0 0.0
        %3352 = vmatprep.subr.mxu0 0.0
        %3353 = vmatpush1.msra.mxu0 0.0
        %3354 = vmatprep.subr.mxu0 0.0
        %3355 = vmatpush1.msra.mxu0 0.0
        %3356 = vmatprep.subr.mxu0 0.0
        %3357 = vmatpush1.msra.mxu0 0.0
        %3358 = vmatprep.subr.mxu0 0.0
        %3359 = vmatpush1.msra.mxu0 0.0
        %3360 = vmatprep.subr.mxu0 0.0
        %3361 = vmatpush1.msra.mxu0 0.0
        %3362 = vmatprep.subr.mxu0 0.0
        %3363 = vmatpush1.msra.mxu0 0.0
        %3364 = vmatprep.subr.mxu0 0.0
        %3365 = vmatpush1.msra.mxu0 0.0
        %3366 = vmatprep.subr.mxu0 0.0
        %3367 = vmatpush1.msra.mxu0 0.0
        %3368 = vmatprep.subr.mxu0 0.0
        %3369 = vmatpush1.msra.mxu0 0.0
        %3370 = vmatprep.subr.mxu0 0.0
        %3371 = vmatpush1.msra.mxu0 0.0
        %3372 = vmatprep.subr.mxu0 0.0
        %3373 = vmatpush1.msra.mxu0 0.0
        %3374 = vmatprep.subr.mxu0 0.0
        %3375 = vmatpush1.msra.mxu0 0.0
        %3376 = vmatprep.subr.mxu0 0.0
        %3377 = vmatpush1.msra.mxu0 0.0
        %3378 = vmatprep.subr.mxu0 0.0
        %3379 = vmatpush1.msra.mxu0 0.0
        %3380 = vmatprep.subr.mxu0 0.0
        %3381 = vmatpush1.msra.mxu0 0.0
        %3382 = vmatprep.subr.mxu0 0.0
        %3383 = vmatpush1.msra.mxu0 0.0
        %3384 = vmatprep.mubr.f32.mxu0 0.0
        %3385 = vmatmul.mubr.f32.gmra.mrb[0].mxu0 %v3318
        %v3386 = vpop.f32.mrb[0].mxu0
        %v3387 = vadd.f32 %v3316, %v3386
        %v3388 = vpop.f32.mrb[0].mxu0
        %3389 = vdwg.mxu0
        %3390 = vst [vmem:[%s324] sm:$0x1] %v3387
        %s3391 = sand.u32 %s225, 1
        %s3392 = scalar_lea.sflag [#allocation5], %s3391
        %s3393 = sand.u32 %s225, 1
        %s3394 = scalar_lea.vmem [#allocation4], %s3393
        // Predicated region
        $region57: #{tpu_custom_call.1} parent=55 // pred_check
          %p3395 = pneg %p235
        $region58: #{tpu_custom_call.1} parent=55 // pred_check_branch
          %3397 = sbr.rel (%p3395) target = $region60
        $region59: #{tpu_custom_call.1} parent=55 // pred_region
          %s3399 = ssub.s32 16, 16
          %3400 = vsyncadd %s3392, %s3399
          %s3401 = smul.addr %s23, 16
          %s3402 = scalar_lea.hbm %s9, %s3401
          %s3404 = sshll.u32 %s3394, 4
          %s3405 = int_to_ptr.vmem [resolvable:$true] %s3404
          %3407 = dma.vmem_to_hbm [thread:$0]  %s3405, 16, %s3402, %s3392
        $region60: #{tpu_custom_call.1} parent=55 // pred_fallthru
          _
      $region56: #{tpu_custom_call.1} parent=5 // pred_fallthru
        _
      %p3408 = scmp.le.s32.totalorder 2, %s18
      // Predicated region
      $region61: #{tpu_custom_call.1} parent=5 // pred_check
        %p3409 = pneg %p3408
      $region62: #{tpu_custom_call.1} parent=5 // pred_check_branch
        %3411 = sbr.rel (%p3409) target = $region64
      $region63: #{tpu_custom_call.1} parent=5 // pred_region
        %s3412 = ssub.s32 %s18, 2
        // Predicated region
        $region65: #{tpu_custom_call.1} parent=63 // pred_check
          %p3413 = pneg %p241
        $region66: #{tpu_custom_call.1} parent=63 // pred_check_branch
          %3415 = sbr.rel (%p3413) target = $region68
        $region67: #{tpu_custom_call.1} parent=63 // pred_region
          %s3416 = sand.u32 %s226, 1
          %s3417 = scalar_lea.sflag [#allocation5], %s3416
          %s3418 = sand.u32 %s226, 1
          %s3419 = scalar_lea.vmem [#allocation4], %s3418
          %3420 = dma.done %s3417, 16
        $region68: #{tpu_custom_call.1} parent=63 // pred_fallthru
          _
      $region64: #{tpu_custom_call.1} parent=5 // pred_fallthru
        _
    $region6: #{tpu_custom_call.1} parent=1 // loop_footer
      %s22 = sadd.s32 1, %s18
    $region7: #{tpu_custom_call.1} parent=1 // loop_footer_branch
      %17 = sbr.rel target = $region3
    $region8: #{tpu_custom_call.1} parent=1 // loop_exit
      _
    %3421 = vsyncpa [#allocation5], 1
    %s3422 = scalar_lea.sflag [#allocation5], 1
    %3423 = vsyncpa %s3422, 1

</llo_original>
